<compile_context>
chip_gen: v6e
topology: v6e:2x2x1
jax: 0.10.0
libtpu: 0.0.40
codegen_flags: <defaults>
</compile_context>

<pallas_src>
import jax
import jax.numpy as jnp
from jax import lax
from jax.experimental import pallas as pl
from jax.experimental.pallas import tpu as pltpu

HIDDEN = 32      # hidden_size (small synthetic size)
MAXLEN = 12      # max_length
VOCAB = 64       # output_size (fr vocab, small synthetic size)
ATTN_COLS = 32   # w_attn_h padded to a 32-lane-aligned block inside the fused hid weight
PACK = 128       # lane-dense packed output width: [logp(64) | h(32) | attn_w(12) | pad(20)]


def attn_decoder_seq_kernel(tok_ref,                       # VMEM (T, 1) int32 tokens
                            h0_ref, enc_ref, emb_ref,      # VMEM (1,H), (L,H), (V,H)
                            w_attn_e_ref, b_attn_ref,      # (H,L), (1,L)
                            w_comb_e_ref, w_comb_a_ref, b_comb_ref,   # (H,H),(H,H),(1,H)
                            w_hid_ref,                     # (H,128) = [w_attn_h|pad|w_hh]
                            w_ih_ref, b_ih_ref, b_hh_ref,  # (H,3H),(1,3H),(1,3H)
                            w_out_ref, b_out_ref,          # (H,V),(1,V)
                            out_ref):                      # VMEM (T, 128) packed output
    H, L, V = HIDDEN, MAXLEN, VOCAB
    T = out_ref.shape[0]
    f32 = jnp.float32

    # ===== hoisted precompute (off the serial per-step dependency chain) =====
    # Embedding gather as a one-hot matmul: uses MXU sublanes for all T rows at once.
    toks = tok_ref[...]                                                  # (T, 1) int32
    onehot = (toks == lax.broadcasted_iota(jnp.int32, (T, V), 1)).astype(f32)
    emb_all = jnp.dot(onehot, emb_ref[...], preferred_element_type=f32)  # (T, H)
    # TODO(synk): dropout(p=0.1) on the embedding treated as identity (eval/inference).

    # Token-dependent halves of attn / attn_combine, batched over T, biases folded in.
    eatt_all = (jnp.dot(emb_all, w_attn_e_ref[...], preferred_element_type=f32)
                + b_attn_ref[...])                                       # (T, L)
    ecomb_all = (jnp.dot(emb_all, w_comb_e_ref[...], preferred_element_type=f32)
                 + b_comb_ref[...])                                      # (T, H)

    # Reassociated attention apply: (attn_w @ enc) @ w_comb_a == attn_w @ (enc @ w_comb_a).
    enc_proj = jnp.dot(enc_ref[...], w_comb_a_ref[...],
                       preferred_element_type=f32)                       # (L, H)

    w_hid = w_hid_ref[...]        # (H, 128): cols [0:L]=w_attn_h, [ATTN_COLS:]=w_hh [r|z|n]
    w_ih = w_ih_ref[...]          # (H, 3H)
    b_ih = b_ih_ref[...]          # (1, 3H)
    b_hh = b_hh_ref[...]          # (1, 3H)

    hid = h0_ref[...]             # (1, H)
    h_rows = []
    a_rows = []

    # ===== fully-unrolled decode loop (T static & small) =====
    # Only 3 MXU pushes remain on each step's serial hidden-state chain.
    for t in range(T):
        # One fused hid-LHS matmul: attention-logit half + GRU gh in one (1,128) result,
        # sliced at static (lane-aligned) offsets.
        hid_proj = jnp.dot(hid, w_hid, preferred_element_type=f32)      # (1, 128)

        # attn_weights = softmax(Linear_{2H->L}(cat(emb, hid)))  (concat eliminated)
        logits = eatt_all[t:t + 1, :] + hid_proj[:, 0:L]                # (1, L)
        m = jnp.max(logits, axis=1, keepdims=True)
        e = jnp.exp(logits - m)
        attn_w = e * pl.reciprocal(jnp.sum(e, axis=1, keepdims=True), approx=True)

        # attn apply (reassociated) + attn_combine (emb half precomputed) + relu
        x = jnp.maximum(
            ecomb_all[t:t + 1, :]
            + jnp.dot(attn_w, enc_proj, preferred_element_type=f32), 0.0)   # (1, H)

        # single-step GRU (PyTorch nn.GRU semantics), gates stacked [r|z|n]
        gi = jnp.dot(x, w_ih, preferred_element_type=f32) + b_ih        # (1, 3H)
        gh = hid_proj[:, ATTN_COLS:ATTN_COLS + 3 * H] + b_hh            # (1, 3H)
        r = jax.nn.sigmoid(gi[:, 0:H] + gh[:, 0:H])
        z = jax.nn.sigmoid(gi[:, H:2 * H] + gh[:, H:2 * H])
        n = jnp.tanh(gi[:, 2 * H:3 * H] + r * gh[:, 2 * H:3 * H])
        hid = (1.0 - z) * n + z * hid                                   # (1, H)

        h_rows.append(hid)
        a_rows.append(attn_w)

    # ===== deferred epilogue: batched output projection + log_softmax =====
    h_seq = jnp.concatenate(h_rows, axis=0)                             # (T, H)
    attn_seq = jnp.concatenate(a_rows, axis=0)                          # (T, L)
    o = (jnp.dot(h_seq, w_out_ref[...], preferred_element_type=f32)
         + b_out_ref[...])                                              # (T, V)
    om = jnp.max(o, axis=1, keepdims=True)
    osh = o - om
    logp = osh - jnp.log(jnp.sum(jnp.exp(osh), axis=1, keepdims=True))  # (T, V)

    # single lane-dense packed store: [logp | h | attn_w | pad]
    pad = jnp.zeros((T, PACK - V - H - L), f32)
    out_ref[...] = jnp.concatenate([logp, h_seq, attn_seq, pad], axis=1)


def init_params(key, hidden=HIDDEN, max_length=MAXLEN, vocab=VOCAB):
    ks = jax.random.split(key, 14)
    s = 0.1
    return dict(
        embedding=jax.random.normal(ks[0], (vocab, hidden), jnp.float32) * s,
        # nn.Linear(2H, L): split along the input dim into [emb | hid] halves
        w_attn_e=jax.random.normal(ks[1], (hidden, max_length), jnp.float32) * s,
        w_attn_h=jax.random.normal(ks[2], (hidden, max_length), jnp.float32) * s,
        b_attn=jax.random.normal(ks[3], (1, max_length), jnp.float32) * s,
        # nn.Linear(2H, H): split along the input dim into [emb | attn_applied]
        w_comb_e=jax.random.normal(ks[4], (hidden, hidden), jnp.float32) * s,
        w_comb_a=jax.random.normal(ks[5], (hidden, hidden), jnp.float32) * s,
        b_comb=jax.random.normal(ks[6], (1, hidden), jnp.float32) * s,
        # GRU: gates stacked along lanes [r|z|n]; stored (H_in, 3H) so x @ W
        w_ih=jax.random.normal(ks[7], (hidden, 3 * hidden), jnp.float32) * s,
        b_ih=jax.random.normal(ks[8], (1, 3 * hidden), jnp.float32) * s,
        w_hh=jax.random.normal(ks[9], (hidden, 3 * hidden), jnp.float32) * s,
        b_hh=jax.random.normal(ks[10], (1, 3 * hidden), jnp.float32) * s,
        # nn.Linear(H, V): stored transposed (H, V)
        w_out=jax.random.normal(ks[11], (hidden, vocab), jnp.float32) * s,
        b_out=jax.random.normal(ks[12], (1, vocab), jnp.float32) * s,
    )


def attn_decoder_decode(params, tokens, hidden0, encoder_outputs):
    """Fused multi-step decode (teacher-forced token sequence).
    tokens: (T,) int32; hidden0: (1,1,H); encoder_outputs: (L,H).
    Returns (log_probs (T,V), hiddens (T,H), attn_weights (T,L))."""
    T = tokens.shape[0]
    vmem = pl.BlockSpec(memory_space=pltpu.MemorySpace.VMEM)

    # Fuse the two hid-LHS weights once: [w_attn_h (H,12) -> pad to (H,32) | w_hh (H,96)]
    w_hid = jnp.concatenate(
        [jnp.pad(params['w_attn_h'], ((0, 0), (0, ATTN_COLS - MAXLEN))),
         params['w_hh']], axis=1)                                       # (H, 128)

    packed = pl.pallas_call(
        attn_decoder_seq_kernel,
        out_shape=jax.ShapeDtypeStruct((T, PACK), jnp.float32),
        in_specs=[vmem] * 15,
        out_specs=vmem,
    )(tokens.astype(jnp.int32).reshape(T, 1),
      hidden0.reshape(1, HIDDEN), encoder_outputs,
      params['embedding'],
      params['w_attn_e'], params['b_attn'],
      params['w_comb_e'], params['w_comb_a'], params['b_comb'],
      w_hid, params['w_ih'], params['b_ih'], params['b_hh'],
      params['w_out'], params['b_out'])

    logp = packed[:, :VOCAB]
    h_seq = packed[:, VOCAB:VOCAB + HIDDEN]
    attn_w = packed[:, VOCAB + HIDDEN:VOCAB + HIDDEN + MAXLEN]
    return logp, h_seq, attn_w


def attn_decoder_forward(params, token, hidden, encoder_outputs):
    """Single decoder step, matching the PyTorch module's forward signature.
    token: int32 scalar; hidden: (1,1,H); encoder_outputs: (L,H).
    Returns (log_probs (1,V), hidden (1,1,H), attn_weights (1,L))."""
    toks = jnp.reshape(jnp.asarray(token, jnp.int32), (1,))
    logp, h_seq, attn_w = attn_decoder_decode(params, toks, hidden, encoder_outputs)
    return logp, h_seq.reshape(1, 1, HIDDEN), attn_w


def reference_decode(params, tokens, hidden0, encoder_outputs):
    """Pure-JAX reference mirroring the PyTorch forward per step (eval mode)."""
    H = HIDDEN
    hid = hidden0.reshape(1, H)
    logps, hs, attns = [], [], []
    for t in range(tokens.shape[0]):
        emb = params['embedding'][tokens[t]].reshape(1, H)
        # TODO(synk): dropout(p=0.1) treated as identity (eval mode, deterministic).
        logits = emb @ params['w_attn_e'] + hid @ params['w_attn_h'] + params['b_attn']
        attn_w = jax.nn.softmax(logits, axis=1)
        attn_applied = attn_w @ encoder_outputs
        x = jax.nn.relu(emb @ params['w_comb_e']
                        + attn_applied @ params['w_comb_a'] + params['b_comb'])
        gi = x @ params['w_ih'] + params['b_ih']
        gh = hid @ params['w_hh'] + params['b_hh']
        r = jax.nn.sigmoid(gi[:, :H] + gh[:, :H])
        z = jax.nn.sigmoid(gi[:, H:2 * H] + gh[:, H:2 * H])
        n = jnp.tanh(gi[:, 2 * H:] + r * gh[:, 2 * H:])
        hid = (1.0 - z) * n + z * hid
        o = hid @ params['w_out'] + params['b_out']
        logps.append(jax.nn.log_softmax(o, axis=1))
        hs.append(hid)
        attns.append(attn_w)
    return (jnp.concatenate(logps, 0), jnp.concatenate(hs, 0),
            jnp.concatenate(attns, 0))


if __name__ == "__main__":
    key = jax.random.PRNGKey(0)
    pkey, hkey, ekey, tkey = jax.random.split(key, 4)

    params = init_params(pkey)
    T = 8  # decode steps fused into one kernel call
    tokens = jax.random.randint(tkey, (T,), 0, VOCAB, dtype=jnp.int32)
    hidden0 = jax.random.normal(hkey, (1, 1, HIDDEN), jnp.float32)     # GRU hidden
    encoder_outputs = jax.random.normal(ekey, (MAXLEN, HIDDEN), jnp.float32)

    # fused multi-step decode
    logp, h_seq, attn_w = attn_decoder_decode(params, tokens, hidden0, encoder_outputs)
    jax.block_until_ready((logp, h_seq, attn_w))

    # sanity check against pure-JAX reference (per-step).
    # Tolerance accounts for the approx-reciprocal softmax divide and the reassociated
    # attention-apply matmul (f32-level deltas only).
    r_logp, r_h, r_aw = reference_decode(params, tokens, hidden0, encoder_outputs)
    assert jnp.allclose(logp, r_logp, atol=2e-3), "log_softmax mismatch"
    assert jnp.allclose(h_seq, r_h, atol=2e-3), "hidden mismatch"
    assert jnp.allclose(attn_w, r_aw, atol=2e-3), "attn_weights mismatch"

    # single-step wrapper matching the original module's forward signature
    logp1, h1, aw1 = attn_decoder_forward(params, tokens[0], hidden0, encoder_outputs)
    jax.block_until_ready((logp1, h1, aw1))
    assert jnp.allclose(logp1, r_logp[:1], atol=2e-3), "single-step logp mismatch"
    assert jnp.allclose(h1.reshape(1, HIDDEN), r_h[:1], atol=2e-3), "single-step hidden mismatch"
    assert jnp.allclose(aw1, r_aw[:1], atol=2e-3), "single-step attn mismatch"

    print("KERNEL_OK")
</pallas_src>

<mosaic_0001>
module attributes {stable_mosaic.version = 11 : i64} {
  func.func @attn_decoder_seq_kernel(%arg0: memref<8x1xi32, #tpu.memory_space<vmem>>, %arg1: memref<1x32xf32, #tpu.memory_space<vmem>>, %arg2: memref<12x32xf32, #tpu.memory_space<vmem>>, %arg3: memref<64x32xf32, #tpu.memory_space<vmem>>, %arg4: memref<32x12xf32, #tpu.memory_space<vmem>>, %arg5: memref<1x12xf32, #tpu.memory_space<vmem>>, %arg6: memref<32x32xf32, #tpu.memory_space<vmem>>, %arg7: memref<32x32xf32, #tpu.memory_space<vmem>>, %arg8: memref<1x32xf32, #tpu.memory_space<vmem>>, %arg9: memref<32x128xf32, #tpu.memory_space<vmem>>, %arg10: memref<32x96xf32, #tpu.memory_space<vmem>>, %arg11: memref<1x96xf32, #tpu.memory_space<vmem>>, %arg12: memref<1x96xf32, #tpu.memory_space<vmem>>, %arg13: memref<32x64xf32, #tpu.memory_space<vmem>>, %arg14: memref<1x64xf32, #tpu.memory_space<vmem>>, %arg15: memref<8x128xf32, #tpu.memory_space<vmem>>) attributes {dimension_semantics = [], scalar_prefetch = 0 : i64, scratch_operands = 0 : i64, tpu.core_type = #tpu.core_type<tc>} {
    %c0 = arith.constant 0 : index
    %c0_0 = arith.constant 0 : index
    %0 = vector.load %arg0[%c0, %c0_0] : memref<8x1xi32, #tpu.memory_space<vmem>>, vector<8x1xi32>
    %1 = tpu.iota {dimensions = array<i32: 1>} : vector<8x64xi32>
    %2 = vector.broadcast %0 : vector<8x1xi32> to vector<8x64xi32>
    %3 = arith.cmpi eq, %2, %1 : vector<8x64xi32>
    %4 = arith.extui %3 : vector<8x64xi1> to vector<8x64xi32>
    %5 = arith.sitofp %4 : vector<8x64xi32> to vector<8x64xf32>
    %c0_1 = arith.constant 0 : index
    %c0_2 = arith.constant 0 : index
    %6 = vector.load %arg3[%c0_1, %c0_2] : memref<64x32xf32, #tpu.memory_space<vmem>>, vector<64x32xf32>
    %cst = arith.constant dense<0.000000e+00> : vector<8x32xf32>
    %7 = tpu.matmul %5, %6, %cst {dimension_numbers = #tpu.dot_dimension_numbers<[1], [0], [0], [1], [0, 0, 1, 1], [], []>} : vector<8x64xf32>, vector<64x32xf32>, vector<8x32xf32> -> vector<8x32xf32>
    %c0_3 = arith.constant 0 : index
    %c0_4 = arith.constant 0 : index
    %8 = vector.load %arg4[%c0_3, %c0_4] : memref<32x12xf32, #tpu.memory_space<vmem>>, vector<32x12xf32>
    %cst_5 = arith.constant dense<0.000000e+00> : vector<8x12xf32>
    %9 = tpu.matmul %7, %8, %cst_5 {dimension_numbers = #tpu.dot_dimension_numbers<[1], [0], [0], [1], [0, 0, 1, 1], [], []>} : vector<8x32xf32>, vector<32x12xf32>, vector<8x12xf32> -> vector<8x12xf32>
    %c0_6 = arith.constant 0 : index
    %c0_7 = arith.constant 0 : index
    %10 = vector.load %arg5[%c0_6, %c0_7] : memref<1x12xf32, #tpu.memory_space<vmem>>, vector<1x12xf32>
    %11 = vector.broadcast %10 : vector<1x12xf32> to vector<8x12xf32>
    %12 = arith.addf %9, %11 : vector<8x12xf32>
    %c0_8 = arith.constant 0 : index
    %c0_9 = arith.constant 0 : index
    %13 = vector.load %arg6[%c0_8, %c0_9] : memref<32x32xf32, #tpu.memory_space<vmem>>, vector<32x32xf32>
    %cst_10 = arith.constant dense<0.000000e+00> : vector<8x32xf32>
    %14 = tpu.matmul %7, %13, %cst_10 {dimension_numbers = #tpu.dot_dimension_numbers<[1], [0], [0], [1], [0, 0, 1, 1], [], []>} : vector<8x32xf32>, vector<32x32xf32>, vector<8x32xf32> -> vector<8x32xf32>
    %c0_11 = arith.constant 0 : index
    %c0_12 = arith.constant 0 : index
    %15 = vector.load %arg8[%c0_11, %c0_12] : memref<1x32xf32, #tpu.memory_space<vmem>>, vector<1x32xf32>
    %16 = vector.broadcast %15 : vector<1x32xf32> to vector<8x32xf32>
    %17 = arith.addf %14, %16 : vector<8x32xf32>
    %c0_13 = arith.constant 0 : index
    %c0_14 = arith.constant 0 : index
    %18 = vector.load %arg2[%c0_13, %c0_14] : memref<12x32xf32, #tpu.memory_space<vmem>>, vector<12x32xf32>
    %c0_15 = arith.constant 0 : index
    %c0_16 = arith.constant 0 : index
    %19 = vector.load %arg7[%c0_15, %c0_16] : memref<32x32xf32, #tpu.memory_space<vmem>>, vector<32x32xf32>
    %cst_17 = arith.constant dense<0.000000e+00> : vector<12x32xf32>
    %20 = tpu.matmul %18, %19, %cst_17 {dimension_numbers = #tpu.dot_dimension_numbers<[1], [0], [0], [1], [0, 0, 1, 1], [], []>} : vector<12x32xf32>, vector<32x32xf32>, vector<12x32xf32> -> vector<12x32xf32>
    %c0_18 = arith.constant 0 : index
    %c0_19 = arith.constant 0 : index
    %21 = vector.load %arg9[%c0_18, %c0_19] : memref<32x128xf32, #tpu.memory_space<vmem>>, vector<32x128xf32>
    %c0_20 = arith.constant 0 : index
    %c0_21 = arith.constant 0 : index
    %22 = vector.load %arg10[%c0_20, %c0_21] : memref<32x96xf32, #tpu.memory_space<vmem>>, vector<32x96xf32>
    %c0_22 = arith.constant 0 : index
    %c0_23 = arith.constant 0 : index
    %23 = vector.load %arg11[%c0_22, %c0_23] : memref<1x96xf32, #tpu.memory_space<vmem>>, vector<1x96xf32>
    %c0_24 = arith.constant 0 : index
    %c0_25 = arith.constant 0 : index
    %24 = vector.load %arg12[%c0_24, %c0_25] : memref<1x96xf32, #tpu.memory_space<vmem>>, vector<1x96xf32>
    %c0_26 = arith.constant 0 : index
    %c0_27 = arith.constant 0 : index
    %25 = vector.load %arg1[%c0_26, %c0_27] : memref<1x32xf32, #tpu.memory_space<vmem>>, vector<1x32xf32>
    %cst_28 = arith.constant dense<0.000000e+00> : vector<1x128xf32>
    %26 = tpu.matmul %25, %21, %cst_28 {dimension_numbers = #tpu.dot_dimension_numbers<[1], [0], [0], [1], [0, 0, 1, 1], [], []>} : vector<1x32xf32>, vector<32x128xf32>, vector<1x128xf32> -> vector<1x128xf32>
    %27 = vector.extract_strided_slice %12 {offsets = [0, 0], sizes = [1, 12], strides = [1, 1]} : vector<8x12xf32> to vector<1x12xf32>
    %28 = vector.extract_strided_slice %26 {offsets = [0, 0], sizes = [1, 12], strides = [1, 1]} : vector<1x128xf32> to vector<1x12xf32>
    %29 = arith.addf %27, %28 : vector<1x12xf32>
    %cst_29 = arith.constant dense<0xFF800000> : vector<1xf32>
    %30 = vector.multi_reduction <maximumf>, %29, %cst_29 [1] : vector<1x12xf32> to vector<1xf32>
    %31 = vector.shape_cast %30 : vector<1xf32> to vector<1x1xf32>
    %32 = vector.broadcast %31 : vector<1x1xf32> to vector<1x12xf32>
    %33 = arith.subf %29, %32 : vector<1x12xf32>
    %34 = math.exp %33 : vector<1x12xf32>
    %cst_30 = arith.constant dense<0.000000e+00> : vector<1xf32>
    %35 = vector.multi_reduction <add>, %34, %cst_30 [1] : vector<1x12xf32> to vector<1xf32>
    %36 = vector.shape_cast %35 : vector<1xf32> to vector<1x1xf32>
    %37 = tpu.reciprocal %36 {approx = true} : vector<1x1xf32> -> vector<1x1xf32>
    %38 = vector.broadcast %37 : vector<1x1xf32> to vector<1x12xf32>
    %39 = arith.mulf %34, %38 : vector<1x12xf32>
    %40 = vector.extract_strided_slice %17 {offsets = [0, 0], sizes = [1, 32], strides = [1, 1]} : vector<8x32xf32> to vector<1x32xf32>
    %cst_31 = arith.constant dense<0.000000e+00> : vector<1x32xf32>
    %41 = tpu.matmul %39, %20, %cst_31 {dimension_numbers = #tpu.dot_dimension_numbers<[1], [0], [0], [1], [0, 0, 1, 1], [], []>} : vector<1x12xf32>, vector<12x32xf32>, vector<1x32xf32> -> vector<1x32xf32>
    %42 = arith.addf %40, %41 : vector<1x32xf32>
    %cst_32 = arith.constant 0.000000e+00 : f32
    %43 = vector.broadcast %cst_32 : f32 to vector<1x32xf32>
    %44 = arith.maximumf %42, %43 : vector<1x32xf32>
    %cst_33 = arith.constant dense<0.000000e+00> : vector<1x96xf32>
    %45 = tpu.matmul %44, %22, %cst_33 {dimension_numbers = #tpu.dot_dimension_numbers<[1], [0], [0], [1], [0, 0, 1, 1], [], []>} : vector<1x32xf32>, vector<32x96xf32>, vector<1x96xf32> -> vector<1x96xf32>
    %46 = arith.addf %45, %23 : vector<1x96xf32>
    %47 = vector.extract_strided_slice %26 {offsets = [0, 32], sizes = [1, 96], strides = [1, 1]} : vector<1x128xf32> to vector<1x96xf32>
    %48 = arith.addf %47, %24 : vector<1x96xf32>
    %49 = vector.extract_strided_slice %46 {offsets = [0, 0], sizes = [1, 32], strides = [1, 1]} : vector<1x96xf32> to vector<1x32xf32>
    %50 = vector.extract_strided_slice %48 {offsets = [0, 0], sizes = [1, 32], strides = [1, 1]} : vector<1x96xf32> to vector<1x32xf32>
    %51 = arith.addf %49, %50 : vector<1x32xf32>
    %52 = arith.negf %51 : vector<1x32xf32>
    %53 = math.exp %52 : vector<1x32xf32>
    %cst_34 = arith.constant 1.000000e+00 : f32
    %54 = vector.broadcast %cst_34 : f32 to vector<1x32xf32>
    %55 = arith.addf %54, %53 : vector<1x32xf32>
    %56 = arith.divf %54, %55 : vector<1x32xf32>
    %57 = vector.extract_strided_slice %46 {offsets = [0, 32], sizes = [1, 32], strides = [1, 1]} : vector<1x96xf32> to vector<1x32xf32>
    %58 = vector.extract_strided_slice %48 {offsets = [0, 32], sizes = [1, 32], strides = [1, 1]} : vector<1x96xf32> to vector<1x32xf32>
    %59 = arith.addf %57, %58 : vector<1x32xf32>
    %60 = arith.negf %59 : vector<1x32xf32>
    %61 = math.exp %60 : vector<1x32xf32>
    %cst_35 = arith.constant 1.000000e+00 : f32
    %62 = vector.broadcast %cst_35 : f32 to vector<1x32xf32>
    %63 = arith.addf %62, %61 : vector<1x32xf32>
    %64 = arith.divf %62, %63 : vector<1x32xf32>
    %65 = vector.extract_strided_slice %46 {offsets = [0, 64], sizes = [1, 32], strides = [1, 1]} : vector<1x96xf32> to vector<1x32xf32>
    %66 = vector.extract_strided_slice %48 {offsets = [0, 64], sizes = [1, 32], strides = [1, 1]} : vector<1x96xf32> to vector<1x32xf32>
    %67 = arith.mulf %56, %66 : vector<1x32xf32>
    %68 = arith.addf %65, %67 : vector<1x32xf32>
    %69 = math.tanh %68 : vector<1x32xf32>
    %cst_36 = arith.constant 1.000000e+00 : f32
    %70 = vector.broadcast %cst_36 : f32 to vector<1x32xf32>
    %71 = arith.subf %70, %64 : vector<1x32xf32>
    %72 = arith.mulf %71, %69 : vector<1x32xf32>
    %73 = arith.mulf %64, %25 : vector<1x32xf32>
    %74 = arith.addf %72, %73 : vector<1x32xf32>
    %cst_37 = arith.constant dense<0.000000e+00> : vector<1x128xf32>
    %75 = tpu.matmul %74, %21, %cst_37 {dimension_numbers = #tpu.dot_dimension_numbers<[1], [0], [0], [1], [0, 0, 1, 1], [], []>} : vector<1x32xf32>, vector<32x128xf32>, vector<1x128xf32> -> vector<1x128xf32>
    %76 = vector.extract_strided_slice %12 {offsets = [1, 0], sizes = [1, 12], strides = [1, 1]} : vector<8x12xf32> to vector<1x12xf32>
    %77 = vector.extract_strided_slice %75 {offsets = [0, 0], sizes = [1, 12], strides = [1, 1]} : vector<1x128xf32> to vector<1x12xf32>
    %78 = arith.addf %76, %77 : vector<1x12xf32>
    %cst_38 = arith.constant dense<0xFF800000> : vector<1xf32>
    %79 = vector.multi_reduction <maximumf>, %78, %cst_38 [1] : vector<1x12xf32> to vector<1xf32>
    %80 = vector.shape_cast %79 : vector<1xf32> to vector<1x1xf32>
    %81 = vector.broadcast %80 : vector<1x1xf32> to vector<1x12xf32>
    %82 = arith.subf %78, %81 : vector<1x12xf32>
    %83 = math.exp %82 : vector<1x12xf32>
    %cst_39 = arith.constant dense<0.000000e+00> : vector<1xf32>
    %84 = vector.multi_reduction <add>, %83, %cst_39 [1] : vector<1x12xf32> to vector<1xf32>
    %85 = vector.shape_cast %84 : vector<1xf32> to vector<1x1xf32>
    %86 = tpu.reciprocal %85 {approx = true} : vector<1x1xf32> -> vector<1x1xf32>
    %87 = vector.broadcast %86 : vector<1x1xf32> to vector<1x12xf32>
    %88 = arith.mulf %83, %87 : vector<1x12xf32>
    %89 = vector.extract_strided_slice %17 {offsets = [1, 0], sizes = [1, 32], strides = [1, 1]} : vector<8x32xf32> to vector<1x32xf32>
    %cst_40 = arith.constant dense<0.000000e+00> : vector<1x32xf32>
    %90 = tpu.matmul %88, %20, %cst_40 {dimension_numbers = #tpu.dot_dimension_numbers<[1], [0], [0], [1], [0, 0, 1, 1], [], []>} : vector<1x12xf32>, vector<12x32xf32>, vector<1x32xf32> -> vector<1x32xf32>
    %91 = arith.addf %89, %90 : vector<1x32xf32>
    %cst_41 = arith.constant 0.000000e+00 : f32
    %92 = vector.broadcast %cst_41 : f32 to vector<1x32xf32>
    %93 = arith.maximumf %91, %92 : vector<1x32xf32>
    %cst_42 = arith.constant dense<0.000000e+00> : vector<1x96xf32>
    %94 = tpu.matmul %93, %22, %cst_42 {dimension_numbers = #tpu.dot_dimension_numbers<[1], [0], [0], [1], [0, 0, 1, 1], [], []>} : vector<1x32xf32>, vector<32x96xf32>, vector<1x96xf32> -> vector<1x96xf32>
    %95 = arith.addf %94, %23 : vector<1x96xf32>
    %96 = vector.extract_strided_slice %75 {offsets = [0, 32], sizes = [1, 96], strides = [1, 1]} : vector<1x128xf32> to vector<1x96xf32>
    %97 = arith.addf %96, %24 : vector<1x96xf32>
    %98 = vector.extract_strided_slice %95 {offsets = [0, 0], sizes = [1, 32], strides = [1, 1]} : vector<1x96xf32> to vector<1x32xf32>
    %99 = vector.extract_strided_slice %97 {offsets = [0, 0], sizes = [1, 32], strides = [1, 1]} : vector<1x96xf32> to vector<1x32xf32>
    %100 = arith.addf %98, %99 : vector<1x32xf32>
    %101 = arith.negf %100 : vector<1x32xf32>
    %102 = math.exp %101 : vector<1x32xf32>
    %cst_43 = arith.constant 1.000000e+00 : f32
    %103 = vector.broadcast %cst_43 : f32 to vector<1x32xf32>
    %104 = arith.addf %103, %102 : vector<1x32xf32>
    %105 = arith.divf %103, %104 : vector<1x32xf32>
    %106 = vector.extract_strided_slice %95 {offsets = [0, 32], sizes = [1, 32], strides = [1, 1]} : vector<1x96xf32> to vector<1x32xf32>
    %107 = vector.extract_strided_slice %97 {offsets = [0, 32], sizes = [1, 32], strides = [1, 1]} : vector<1x96xf32> to vector<1x32xf32>
    %108 = arith.addf %106, %107 : vector<1x32xf32>
    %109 = arith.negf %108 : vector<1x32xf32>
    %110 = math.exp %109 : vector<1x32xf32>
    %cst_44 = arith.constant 1.000000e+00 : f32
    %111 = vector.broadcast %cst_44 : f32 to vector<1x32xf32>
    %112 = arith.addf %111, %110 : vector<1x32xf32>
    %113 = arith.divf %111, %112 : vector<1x32xf32>
    %114 = vector.extract_strided_slice %95 {offsets = [0, 64], sizes = [1, 32], strides = [1, 1]} : vector<1x96xf32> to vector<1x32xf32>
    %115 = vector.extract_strided_slice %97 {offsets = [0, 64], sizes = [1, 32], strides = [1, 1]} : vector<1x96xf32> to vector<1x32xf32>
    %116 = arith.mulf %105, %115 : vector<1x32xf32>
    %117 = arith.addf %114, %116 : vector<1x32xf32>
    %118 = math.tanh %117 : vector<1x32xf32>
    %cst_45 = arith.constant 1.000000e+00 : f32
    %119 = vector.broadcast %cst_45 : f32 to vector<1x32xf32>
    %120 = arith.subf %119, %113 : vector<1x32xf32>
    %121 = arith.mulf %120, %118 : vector<1x32xf32>
    %122 = arith.mulf %113, %74 : vector<1x32xf32>
    %123 = arith.addf %121, %122 : vector<1x32xf32>
    %cst_46 = arith.constant dense<0.000000e+00> : vector<1x128xf32>
    %124 = tpu.matmul %123, %21, %cst_46 {dimension_numbers = #tpu.dot_dimension_numbers<[1], [0], [0], [1], [0, 0, 1, 1], [], []>} : vector<1x32xf32>, vector<32x128xf32>, vector<1x128xf32> -> vector<1x128xf32>
    %125 = vector.extract_strided_slice %12 {offsets = [2, 0], sizes = [1, 12], strides = [1, 1]} : vector<8x12xf32> to vector<1x12xf32>
    %126 = vector.extract_strided_slice %124 {offsets = [0, 0], sizes = [1, 12], strides = [1, 1]} : vector<1x128xf32> to vector<1x12xf32>
    %127 = arith.addf %125, %126 : vector<1x12xf32>
    %cst_47 = arith.constant dense<0xFF800000> : vector<1xf32>
    %128 = vector.multi_reduction <maximumf>, %127, %cst_47 [1] : vector<1x12xf32> to vector<1xf32>
    %129 = vector.shape_cast %128 : vector<1xf32> to vector<1x1xf32>
    %130 = vector.broadcast %129 : vector<1x1xf32> to vector<1x12xf32>
    %131 = arith.subf %127, %130 : vector<1x12xf32>
    %132 = math.exp %131 : vector<1x12xf32>
    %cst_48 = arith.constant dense<0.000000e+00> : vector<1xf32>
    %133 = vector.multi_reduction <add>, %132, %cst_48 [1] : vector<1x12xf32> to vector<1xf32>
    %134 = vector.shape_cast %133 : vector<1xf32> to vector<1x1xf32>
    %135 = tpu.reciprocal %134 {approx = true} : vector<1x1xf32> -> vector<1x1xf32>
    %136 = vector.broadcast %135 : vector<1x1xf32> to vector<1x12xf32>
    %137 = arith.mulf %132, %136 : vector<1x12xf32>
    %138 = vector.extract_strided_slice %17 {offsets = [2, 0], sizes = [1, 32], strides = [1, 1]} : vector<8x32xf32> to vector<1x32xf32>
    %cst_49 = arith.constant dense<0.000000e+00> : vector<1x32xf32>
    %139 = tpu.matmul %137, %20, %cst_49 {dimension_numbers = #tpu.dot_dimension_numbers<[1], [0], [0], [1], [0, 0, 1, 1], [], []>} : vector<1x12xf32>, vector<12x32xf32>, vector<1x32xf32> -> vector<1x32xf32>
    %140 = arith.addf %138, %139 : vector<1x32xf32>
    %cst_50 = arith.constant 0.000000e+00 : f32
    %141 = vector.broadcast %cst_50 : f32 to vector<1x32xf32>
    %142 = arith.maximumf %140, %141 : vector<1x32xf32>
    %cst_51 = arith.constant dense<0.000000e+00> : vector<1x96xf32>
    %143 = tpu.matmul %142, %22, %cst_51 {dimension_numbers = #tpu.dot_dimension_numbers<[1], [0], [0], [1], [0, 0, 1, 1], [], []>} : vector<1x32xf32>, vector<32x96xf32>, vector<1x96xf32> -> vector<1x96xf32>
    %144 = arith.addf %143, %23 : vector<1x96xf32>
    %145 = vector.extract_strided_slice %124 {offsets = [0, 32], sizes = [1, 96], strides = [1, 1]} : vector<1x128xf32> to vector<1x96xf32>
    %146 = arith.addf %145, %24 : vector<1x96xf32>
    %147 = vector.extract_strided_slice %144 {offsets = [0, 0], sizes = [1, 32], strides = [1, 1]} : vector<1x96xf32> to vector<1x32xf32>
    %148 = vector.extract_strided_slice %146 {offsets = [0, 0], sizes = [1, 32], strides = [1, 1]} : vector<1x96xf32> to vector<1x32xf32>
    %149 = arith.addf %147, %148 : vector<1x32xf32>
    %150 = arith.negf %149 : vector<1x32xf32>
    %151 = math.exp %150 : vector<1x32xf32>
    %cst_52 = arith.constant 1.000000e+00 : f32
    %152 = vector.broadcast %cst_52 : f32 to vector<1x32xf32>
    %153 = arith.addf %152, %151 : vector<1x32xf32>
    %154 = arith.divf %152, %153 : vector<1x32xf32>
    %155 = vector.extract_strided_slice %144 {offsets = [0, 32], sizes = [1, 32], strides = [1, 1]} : vector<1x96xf32> to vector<1x32xf32>
    %156 = vector.extract_strided_slice %146 {offsets = [0, 32], sizes = [1, 32], strides = [1, 1]} : vector<1x96xf32> to vector<1x32xf32>
    %157 = arith.addf %155, %156 : vector<1x32xf32>
    %158 = arith.negf %157 : vector<1x32xf32>
    %159 = math.exp %158 : vector<1x32xf32>
    %cst_53 = arith.constant 1.000000e+00 : f32
    %160 = vector.broadcast %cst_53 : f32 to vector<1x32xf32>
    %161 = arith.addf %160, %159 : vector<1x32xf32>
    %162 = arith.divf %160, %161 : vector<1x32xf32>
    %163 = vector.extract_strided_slice %144 {offsets = [0, 64], sizes = [1, 32], strides = [1, 1]} : vector<1x96xf32> to vector<1x32xf32>
    %164 = vector.extract_strided_slice %146 {offsets = [0, 64], sizes = [1, 32], strides = [1, 1]} : vector<1x96xf32> to vector<1x32xf32>
    %165 = arith.mulf %154, %164 : vector<1x32xf32>
    %166 = arith.addf %163, %165 : vector<1x32xf32>
    %167 = math.tanh %166 : vector<1x32xf32>
    %cst_54 = arith.constant 1.000000e+00 : f32
    %168 = vector.broadcast %cst_54 : f32 to vector<1x32xf32>
    %169 = arith.subf %168, %162 : vector<1x32xf32>
    %170 = arith.mulf %169, %167 : vector<1x32xf32>
    %171 = arith.mulf %162, %123 : vector<1x32xf32>
    %172 = arith.addf %170, %171 : vector<1x32xf32>
    %cst_55 = arith.constant dense<0.000000e+00> : vector<1x128xf32>
    %173 = tpu.matmul %172, %21, %cst_55 {dimension_numbers = #tpu.dot_dimension_numbers<[1], [0], [0], [1], [0, 0, 1, 1], [], []>} : vector<1x32xf32>, vector<32x128xf32>, vector<1x128xf32> -> vector<1x128xf32>
    %174 = vector.extract_strided_slice %12 {offsets = [3, 0], sizes = [1, 12], strides = [1, 1]} : vector<8x12xf32> to vector<1x12xf32>
    %175 = vector.extract_strided_slice %173 {offsets = [0, 0], sizes = [1, 12], strides = [1, 1]} : vector<1x128xf32> to vector<1x12xf32>
    %176 = arith.addf %174, %175 : vector<1x12xf32>
    %cst_56 = arith.constant dense<0xFF800000> : vector<1xf32>
    %177 = vector.multi_reduction <maximumf>, %176, %cst_56 [1] : vector<1x12xf32> to vector<1xf32>
    %178 = vector.shape_cast %177 : vector<1xf32> to vector<1x1xf32>
    %179 = vector.broadcast %178 : vector<1x1xf32> to vector<1x12xf32>
    %180 = arith.subf %176, %179 : vector<1x12xf32>
    %181 = math.exp %180 : vector<1x12xf32>
    %cst_57 = arith.constant dense<0.000000e+00> : vector<1xf32>
    %182 = vector.multi_reduction <add>, %181, %cst_57 [1] : vector<1x12xf32> to vector<1xf32>
    %183 = vector.shape_cast %182 : vector<1xf32> to vector<1x1xf32>
    %184 = tpu.reciprocal %183 {approx = true} : vector<1x1xf32> -> vector<1x1xf32>
    %185 = vector.broadcast %184 : vector<1x1xf32> to vector<1x12xf32>
    %186 = arith.mulf %181, %185 : vector<1x12xf32>
    %187 = vector.extract_strided_slice %17 {offsets = [3, 0], sizes = [1, 32], strides = [1, 1]} : vector<8x32xf32> to vector<1x32xf32>
    %cst_58 = arith.constant dense<0.000000e+00> : vector<1x32xf32>
    %188 = tpu.matmul %186, %20, %cst_58 {dimension_numbers = #tpu.dot_dimension_numbers<[1], [0], [0], [1], [0, 0, 1, 1], [], []>} : vector<1x12xf32>, vector<12x32xf32>, vector<1x32xf32> -> vector<1x32xf32>
    %189 = arith.addf %187, %188 : vector<1x32xf32>
    %cst_59 = arith.constant 0.000000e+00 : f32
    %190 = vector.broadcast %cst_59 : f32 to vector<1x32xf32>
    %191 = arith.maximumf %189, %190 : vector<1x32xf32>
    %cst_60 = arith.constant dense<0.000000e+00> : vector<1x96xf32>
    %192 = tpu.matmul %191, %22, %cst_60 {dimension_numbers = #tpu.dot_dimension_numbers<[1], [0], [0], [1], [0, 0, 1, 1], [], []>} : vector<1x32xf32>, vector<32x96xf32>, vector<1x96xf32> -> vector<1x96xf32>
    %193 = arith.addf %192, %23 : vector<1x96xf32>
    %194 = vector.extract_strided_slice %173 {offsets = [0, 32], sizes = [1, 96], strides = [1, 1]} : vector<1x128xf32> to vector<1x96xf32>
    %195 = arith.addf %194, %24 : vector<1x96xf32>
    %196 = vector.extract_strided_slice %193 {offsets = [0, 0], sizes = [1, 32], strides = [1, 1]} : vector<1x96xf32> to vector<1x32xf32>
    %197 = vector.extract_strided_slice %195 {offsets = [0, 0], sizes = [1, 32], strides = [1, 1]} : vector<1x96xf32> to vector<1x32xf32>
    %198 = arith.addf %196, %197 : vector<1x32xf32>
    %199 = arith.negf %198 : vector<1x32xf32>
    %200 = math.exp %199 : vector<1x32xf32>
    %cst_61 = arith.constant 1.000000e+00 : f32
    %201 = vector.broadcast %cst_61 : f32 to vector<1x32xf32>
    %202 = arith.addf %201, %200 : vector<1x32xf32>
    %203 = arith.divf %201, %202 : vector<1x32xf32>
    %204 = vector.extract_strided_slice %193 {offsets = [0, 32], sizes = [1, 32], strides = [1, 1]} : vector<1x96xf32> to vector<1x32xf32>
    %205 = vector.extract_strided_slice %195 {offsets = [0, 32], sizes = [1, 32], strides = [1, 1]} : vector<1x96xf32> to vector<1x32xf32>
    %206 = arith.addf %204, %205 : vector<1x32xf32>
    %207 = arith.negf %206 : vector<1x32xf32>
    %208 = math.exp %207 : vector<1x32xf32>
    %cst_62 = arith.constant 1.000000e+00 : f32
    %209 = vector.broadcast %cst_62 : f32 to vector<1x32xf32>
    %210 = arith.addf %209, %208 : vector<1x32xf32>
    %211 = arith.divf %209, %210 : vector<1x32xf32>
    %212 = vector.extract_strided_slice %193 {offsets = [0, 64], sizes = [1, 32], strides = [1, 1]} : vector<1x96xf32> to vector<1x32xf32>
    %213 = vector.extract_strided_slice %195 {offsets = [0, 64], sizes = [1, 32], strides = [1, 1]} : vector<1x96xf32> to vector<1x32xf32>
    %214 = arith.mulf %203, %213 : vector<1x32xf32>
    %215 = arith.addf %212, %214 : vector<1x32xf32>
    %216 = math.tanh %215 : vector<1x32xf32>
    %cst_63 = arith.constant 1.000000e+00 : f32
    %217 = vector.broadcast %cst_63 : f32 to vector<1x32xf32>
    %218 = arith.subf %217, %211 : vector<1x32xf32>
    %219 = arith.mulf %218, %216 : vector<1x32xf32>
    %220 = arith.mulf %211, %172 : vector<1x32xf32>
    %221 = arith.addf %219, %220 : vector<1x32xf32>
    %cst_64 = arith.constant dense<0.000000e+00> : vector<1x128xf32>
    %222 = tpu.matmul %221, %21, %cst_64 {dimension_numbers = #tpu.dot_dimension_numbers<[1], [0], [0], [1], [0, 0, 1, 1], [], []>} : vector<1x32xf32>, vector<32x128xf32>, vector<1x128xf32> -> vector<1x128xf32>
    %223 = vector.extract_strided_slice %12 {offsets = [4, 0], sizes = [1, 12], strides = [1, 1]} : vector<8x12xf32> to vector<1x12xf32>
    %224 = vector.extract_strided_slice %222 {offsets = [0, 0], sizes = [1, 12], strides = [1, 1]} : vector<1x128xf32> to vector<1x12xf32>
    %225 = arith.addf %223, %224 : vector<1x12xf32>
    %cst_65 = arith.constant dense<0xFF800000> : vector<1xf32>
    %226 = vector.multi_reduction <maximumf>, %225, %cst_65 [1] : vector<1x12xf32> to vector<1xf32>
    %227 = vector.shape_cast %226 : vector<1xf32> to vector<1x1xf32>
    %228 = vector.broadcast %227 : vector<1x1xf32> to vector<1x12xf32>
    %229 = arith.subf %225, %228 : vector<1x12xf32>
    %230 = math.exp %229 : vector<1x12xf32>
    %cst_66 = arith.constant dense<0.000000e+00> : vector<1xf32>
    %231 = vector.multi_reduction <add>, %230, %cst_66 [1] : vector<1x12xf32> to vector<1xf32>
    %232 = vector.shape_cast %231 : vector<1xf32> to vector<1x1xf32>
    %233 = tpu.reciprocal %232 {approx = true} : vector<1x1xf32> -> vector<1x1xf32>
    %234 = vector.broadcast %233 : vector<1x1xf32> to vector<1x12xf32>
    %235 = arith.mulf %230, %234 : vector<1x12xf32>
    %236 = vector.extract_strided_slice %17 {offsets = [4, 0], sizes = [1, 32], strides = [1, 1]} : vector<8x32xf32> to vector<1x32xf32>
    %cst_67 = arith.constant dense<0.000000e+00> : vector<1x32xf32>
    %237 = tpu.matmul %235, %20, %cst_67 {dimension_numbers = #tpu.dot_dimension_numbers<[1], [0], [0], [1], [0, 0, 1, 1], [], []>} : vector<1x12xf32>, vector<12x32xf32>, vector<1x32xf32> -> vector<1x32xf32>
    %238 = arith.addf %236, %237 : vector<1x32xf32>
    %cst_68 = arith.constant 0.000000e+00 : f32
    %239 = vector.broadcast %cst_68 : f32 to vector<1x32xf32>
    %240 = arith.maximumf %238, %239 : vector<1x32xf32>
    %cst_69 = arith.constant dense<0.000000e+00> : vector<1x96xf32>
    %241 = tpu.matmul %240, %22, %cst_69 {dimension_numbers = #tpu.dot_dimension_numbers<[1], [0], [0], [1], [0, 0, 1, 1], [], []>} : vector<1x32xf32>, vector<32x96xf32>, vector<1x96xf32> -> vector<1x96xf32>
    %242 = arith.addf %241, %23 : vector<1x96xf32>
    %243 = vector.extract_strided_slice %222 {offsets = [0, 32], sizes = [1, 96], strides = [1, 1]} : vector<1x128xf32> to vector<1x96xf32>
    %244 = arith.addf %243, %24 : vector<1x96xf32>
    %245 = vector.extract_strided_slice %242 {offsets = [0, 0], sizes = [1, 32], strides = [1, 1]} : vector<1x96xf32> to vector<1x32xf32>
    %246 = vector.extract_strided_slice %244 {offsets = [0, 0], sizes = [1, 32], strides = [1, 1]} : vector<1x96xf32> to vector<1x32xf32>
    %247 = arith.addf %245, %246 : vector<1x32xf32>
    %248 = arith.negf %247 : vector<1x32xf32>
    %249 = math.exp %248 : vector<1x32xf32>
    %cst_70 = arith.constant 1.000000e+00 : f32
    %250 = vector.broadcast %cst_70 : f32 to vector<1x32xf32>
    %251 = arith.addf %250, %249 : vector<1x32xf32>
    %252 = arith.divf %250, %251 : vector<1x32xf32>
    %253 = vector.extract_strided_slice %242 {offsets = [0, 32], sizes = [1, 32], strides = [1, 1]} : vector<1x96xf32> to vector<1x32xf32>
    %254 = vector.extract_strided_slice %244 {offsets = [0, 32], sizes = [1, 32], strides = [1, 1]} : vector<1x96xf32> to vector<1x32xf32>
    %255 = arith.addf %253, %254 : vector<1x32xf32>
    %256 = arith.negf %255 : vector<1x32xf32>
    %257 = math.exp %256 : vector<1x32xf32>
    %cst_71 = arith.constant 1.000000e+00 : f32
    %258 = vector.broadcast %cst_71 : f32 to vector<1x32xf32>
    %259 = arith.addf %258, %257 : vector<1x32xf32>
    %260 = arith.divf %258, %259 : vector<1x32xf32>
    %261 = vector.extract_strided_slice %242 {offsets = [0, 64], sizes = [1, 32], strides = [1, 1]} : vector<1x96xf32> to vector<1x32xf32>
    %262 = vector.extract_strided_slice %244 {offsets = [0, 64], sizes = [1, 32], strides = [1, 1]} : vector<1x96xf32> to vector<1x32xf32>
    %263 = arith.mulf %252, %262 : vector<1x32xf32>
    %264 = arith.addf %261, %263 : vector<1x32xf32>
    %265 = math.tanh %264 : vector<1x32xf32>
    %cst_72 = arith.constant 1.000000e+00 : f32
    %266 = vector.broadcast %cst_72 : f32 to vector<1x32xf32>
    %267 = arith.subf %266, %260 : vector<1x32xf32>
    %268 = arith.mulf %267, %265 : vector<1x32xf32>
    %269 = arith.mulf %260, %221 : vector<1x32xf32>
    %270 = arith.addf %268, %269 : vector<1x32xf32>
    %cst_73 = arith.constant dense<0.000000e+00> : vector<1x128xf32>
    %271 = tpu.matmul %270, %21, %cst_73 {dimension_numbers = #tpu.dot_dimension_numbers<[1], [0], [0], [1], [0, 0, 1, 1], [], []>} : vector<1x32xf32>, vector<32x128xf32>, vector<1x128xf32> -> vector<1x128xf32>
    %272 = vector.extract_strided_slice %12 {offsets = [5, 0], sizes = [1, 12], strides = [1, 1]} : vector<8x12xf32> to vector<1x12xf32>
    %273 = vector.extract_strided_slice %271 {offsets = [0, 0], sizes = [1, 12], strides = [1, 1]} : vector<1x128xf32> to vector<1x12xf32>
    %274 = arith.addf %272, %273 : vector<1x12xf32>
    %cst_74 = arith.constant dense<0xFF800000> : vector<1xf32>
    %275 = vector.multi_reduction <maximumf>, %274, %cst_74 [1] : vector<1x12xf32> to vector<1xf32>
    %276 = vector.shape_cast %275 : vector<1xf32> to vector<1x1xf32>
    %277 = vector.broadcast %276 : vector<1x1xf32> to vector<1x12xf32>
    %278 = arith.subf %274, %277 : vector<1x12xf32>
    %279 = math.exp %278 : vector<1x12xf32>
    %cst_75 = arith.constant dense<0.000000e+00> : vector<1xf32>
    %280 = vector.multi_reduction <add>, %279, %cst_75 [1] : vector<1x12xf32> to vector<1xf32>
    %281 = vector.shape_cast %280 : vector<1xf32> to vector<1x1xf32>
    %282 = tpu.reciprocal %281 {approx = true} : vector<1x1xf32> -> vector<1x1xf32>
    %283 = vector.broadcast %282 : vector<1x1xf32> to vector<1x12xf32>
    %284 = arith.mulf %279, %283 : vector<1x12xf32>
    %285 = vector.extract_strided_slice %17 {offsets = [5, 0], sizes = [1, 32], strides = [1, 1]} : vector<8x32xf32> to vector<1x32xf32>
    %cst_76 = arith.constant dense<0.000000e+00> : vector<1x32xf32>
    %286 = tpu.matmul %284, %20, %cst_76 {dimension_numbers = #tpu.dot_dimension_numbers<[1], [0], [0], [1], [0, 0, 1, 1], [], []>} : vector<1x12xf32>, vector<12x32xf32>, vector<1x32xf32> -> vector<1x32xf32>
    %287 = arith.addf %285, %286 : vector<1x32xf32>
    %cst_77 = arith.constant 0.000000e+00 : f32
    %288 = vector.broadcast %cst_77 : f32 to vector<1x32xf32>
    %289 = arith.maximumf %287, %288 : vector<1x32xf32>
    %cst_78 = arith.constant dense<0.000000e+00> : vector<1x96xf32>
    %290 = tpu.matmul %289, %22, %cst_78 {dimension_numbers = #tpu.dot_dimension_numbers<[1], [0], [0], [1], [0, 0, 1, 1], [], []>} : vector<1x32xf32>, vector<32x96xf32>, vector<1x96xf32> -> vector<1x96xf32>
    %291 = arith.addf %290, %23 : vector<1x96xf32>
    %292 = vector.extract_strided_slice %271 {offsets = [0, 32], sizes = [1, 96], strides = [1, 1]} : vector<1x128xf32> to vector<1x96xf32>
    %293 = arith.addf %292, %24 : vector<1x96xf32>
    %294 = vector.extract_strided_slice %291 {offsets = [0, 0], sizes = [1, 32], strides = [1, 1]} : vector<1x96xf32> to vector<1x32xf32>
    %295 = vector.extract_strided_slice %293 {offsets = [0, 0], sizes = [1, 32], strides = [1, 1]} : vector<1x96xf32> to vector<1x32xf32>
    %296 = arith.addf %294, %295 : vector<1x32xf32>
    %297 = arith.negf %296 : vector<1x32xf32>
    %298 = math.exp %297 : vector<1x32xf32>
    %cst_79 = arith.constant 1.000000e+00 : f32
    %299 = vector.broadcast %cst_79 : f32 to vector<1x32xf32>
    %300 = arith.addf %299, %298 : vector<1x32xf32>
    %301 = arith.divf %299, %300 : vector<1x32xf32>
    %302 = vector.extract_strided_slice %291 {offsets = [0, 32], sizes = [1, 32], strides = [1, 1]} : vector<1x96xf32> to vector<1x32xf32>
    %303 = vector.extract_strided_slice %293 {offsets = [0, 32], sizes = [1, 32], strides = [1, 1]} : vector<1x96xf32> to vector<1x32xf32>
    %304 = arith.addf %302, %303 : vector<1x32xf32>
    %305 = arith.negf %304 : vector<1x32xf32>
    %306 = math.exp %305 : vector<1x32xf32>
    %cst_80 = arith.constant 1.000000e+00 : f32
    %307 = vector.broadcast %cst_80 : f32 to vector<1x32xf32>
    %308 = arith.addf %307, %306 : vector<1x32xf32>
    %309 = arith.divf %307, %308 : vector<1x32xf32>
    %310 = vector.extract_strided_slice %291 {offsets = [0, 64], sizes = [1, 32], strides = [1, 1]} : vector<1x96xf32> to vector<1x32xf32>
    %311 = vector.extract_strided_slice %293 {offsets = [0, 64], sizes = [1, 32], strides = [1, 1]} : vector<1x96xf32> to vector<1x32xf32>
    %312 = arith.mulf %301, %311 : vector<1x32xf32>
    %313 = arith.addf %310, %312 : vector<1x32xf32>
    %314 = math.tanh %313 : vector<1x32xf32>
    %cst_81 = arith.constant 1.000000e+00 : f32
    %315 = vector.broadcast %cst_81 : f32 to vector<1x32xf32>
    %316 = arith.subf %315, %309 : vector<1x32xf32>
    %317 = arith.mulf %316, %314 : vector<1x32xf32>
    %318 = arith.mulf %309, %270 : vector<1x32xf32>
    %319 = arith.addf %317, %318 : vector<1x32xf32>
    %cst_82 = arith.constant dense<0.000000e+00> : vector<1x128xf32>
    %320 = tpu.matmul %319, %21, %cst_82 {dimension_numbers = #tpu.dot_dimension_numbers<[1], [0], [0], [1], [0, 0, 1, 1], [], []>} : vector<1x32xf32>, vector<32x128xf32>, vector<1x128xf32> -> vector<1x128xf32>
    %321 = vector.extract_strided_slice %12 {offsets = [6, 0], sizes = [1, 12], strides = [1, 1]} : vector<8x12xf32> to vector<1x12xf32>
    %322 = vector.extract_strided_slice %320 {offsets = [0, 0], sizes = [1, 12], strides = [1, 1]} : vector<1x128xf32> to vector<1x12xf32>
    %323 = arith.addf %321, %322 : vector<1x12xf32>
    %cst_83 = arith.constant dense<0xFF800000> : vector<1xf32>
    %324 = vector.multi_reduction <maximumf>, %323, %cst_83 [1] : vector<1x12xf32> to vector<1xf32>
    %325 = vector.shape_cast %324 : vector<1xf32> to vector<1x1xf32>
    %326 = vector.broadcast %325 : vector<1x1xf32> to vector<1x12xf32>
    %327 = arith.subf %323, %326 : vector<1x12xf32>
    %328 = math.exp %327 : vector<1x12xf32>
    %cst_84 = arith.constant dense<0.000000e+00> : vector<1xf32>
    %329 = vector.multi_reduction <add>, %328, %cst_84 [1] : vector<1x12xf32> to vector<1xf32>
    %330 = vector.shape_cast %329 : vector<1xf32> to vector<1x1xf32>
    %331 = tpu.reciprocal %330 {approx = true} : vector<1x1xf32> -> vector<1x1xf32>
    %332 = vector.broadcast %331 : vector<1x1xf32> to vector<1x12xf32>
    %333 = arith.mulf %328, %332 : vector<1x12xf32>
    %334 = vector.extract_strided_slice %17 {offsets = [6, 0], sizes = [1, 32], strides = [1, 1]} : vector<8x32xf32> to vector<1x32xf32>
    %cst_85 = arith.constant dense<0.000000e+00> : vector<1x32xf32>
    %335 = tpu.matmul %333, %20, %cst_85 {dimension_numbers = #tpu.dot_dimension_numbers<[1], [0], [0], [1], [0, 0, 1, 1], [], []>} : vector<1x12xf32>, vector<12x32xf32>, vector<1x32xf32> -> vector<1x32xf32>
    %336 = arith.addf %334, %335 : vector<1x32xf32>
    %cst_86 = arith.constant 0.000000e+00 : f32
    %337 = vector.broadcast %cst_86 : f32 to vector<1x32xf32>
    %338 = arith.maximumf %336, %337 : vector<1x32xf32>
    %cst_87 = arith.constant dense<0.000000e+00> : vector<1x96xf32>
    %339 = tpu.matmul %338, %22, %cst_87 {dimension_numbers = #tpu.dot_dimension_numbers<[1], [0], [0], [1], [0, 0, 1, 1], [], []>} : vector<1x32xf32>, vector<32x96xf32>, vector<1x96xf32> -> vector<1x96xf32>
    %340 = arith.addf %339, %23 : vector<1x96xf32>
    %341 = vector.extract_strided_slice %320 {offsets = [0, 32], sizes = [1, 96], strides = [1, 1]} : vector<1x128xf32> to vector<1x96xf32>
    %342 = arith.addf %341, %24 : vector<1x96xf32>
    %343 = vector.extract_strided_slice %340 {offsets = [0, 0], sizes = [1, 32], strides = [1, 1]} : vector<1x96xf32> to vector<1x32xf32>
    %344 = vector.extract_strided_slice %342 {offsets = [0, 0], sizes = [1, 32], strides = [1, 1]} : vector<1x96xf32> to vector<1x32xf32>
    %345 = arith.addf %343, %344 : vector<1x32xf32>
    %346 = arith.negf %345 : vector<1x32xf32>
    %347 = math.exp %346 : vector<1x32xf32>
    %cst_88 = arith.constant 1.000000e+00 : f32
    %348 = vector.broadcast %cst_88 : f32 to vector<1x32xf32>
    %349 = arith.addf %348, %347 : vector<1x32xf32>
    %350 = arith.divf %348, %349 : vector<1x32xf32>
    %351 = vector.extract_strided_slice %340 {offsets = [0, 32], sizes = [1, 32], strides = [1, 1]} : vector<1x96xf32> to vector<1x32xf32>
    %352 = vector.extract_strided_slice %342 {offsets = [0, 32], sizes = [1, 32], strides = [1, 1]} : vector<1x96xf32> to vector<1x32xf32>
    %353 = arith.addf %351, %352 : vector<1x32xf32>
    %354 = arith.negf %353 : vector<1x32xf32>
    %355 = math.exp %354 : vector<1x32xf32>
    %cst_89 = arith.constant 1.000000e+00 : f32
    %356 = vector.broadcast %cst_89 : f32 to vector<1x32xf32>
    %357 = arith.addf %356, %355 : vector<1x32xf32>
    %358 = arith.divf %356, %357 : vector<1x32xf32>
    %359 = vector.extract_strided_slice %340 {offsets = [0, 64], sizes = [1, 32], strides = [1, 1]} : vector<1x96xf32> to vector<1x32xf32>
    %360 = vector.extract_strided_slice %342 {offsets = [0, 64], sizes = [1, 32], strides = [1, 1]} : vector<1x96xf32> to vector<1x32xf32>
    %361 = arith.mulf %350, %360 : vector<1x32xf32>
    %362 = arith.addf %359, %361 : vector<1x32xf32>
    %363 = math.tanh %362 : vector<1x32xf32>
    %cst_90 = arith.constant 1.000000e+00 : f32
    %364 = vector.broadcast %cst_90 : f32 to vector<1x32xf32>
    %365 = arith.subf %364, %358 : vector<1x32xf32>
    %366 = arith.mulf %365, %363 : vector<1x32xf32>
    %367 = arith.mulf %358, %319 : vector<1x32xf32>
    %368 = arith.addf %366, %367 : vector<1x32xf32>
    %cst_91 = arith.constant dense<0.000000e+00> : vector<1x128xf32>
    %369 = tpu.matmul %368, %21, %cst_91 {dimension_numbers = #tpu.dot_dimension_numbers<[1], [0], [0], [1], [0, 0, 1, 1], [], []>} : vector<1x32xf32>, vector<32x128xf32>, vector<1x128xf32> -> vector<1x128xf32>
    %370 = vector.extract_strided_slice %12 {offsets = [7, 0], sizes = [1, 12], strides = [1, 1]} : vector<8x12xf32> to vector<1x12xf32>
    %371 = vector.extract_strided_slice %369 {offsets = [0, 0], sizes = [1, 12], strides = [1, 1]} : vector<1x128xf32> to vector<1x12xf32>
    %372 = arith.addf %370, %371 : vector<1x12xf32>
    %cst_92 = arith.constant dense<0xFF800000> : vector<1xf32>
    %373 = vector.multi_reduction <maximumf>, %372, %cst_92 [1] : vector<1x12xf32> to vector<1xf32>
    %374 = vector.shape_cast %373 : vector<1xf32> to vector<1x1xf32>
    %375 = vector.broadcast %374 : vector<1x1xf32> to vector<1x12xf32>
    %376 = arith.subf %372, %375 : vector<1x12xf32>
    %377 = math.exp %376 : vector<1x12xf32>
    %cst_93 = arith.constant dense<0.000000e+00> : vector<1xf32>
    %378 = vector.multi_reduction <add>, %377, %cst_93 [1] : vector<1x12xf32> to vector<1xf32>
    %379 = vector.shape_cast %378 : vector<1xf32> to vector<1x1xf32>
    %380 = tpu.reciprocal %379 {approx = true} : vector<1x1xf32> -> vector<1x1xf32>
    %381 = vector.broadcast %380 : vector<1x1xf32> to vector<1x12xf32>
    %382 = arith.mulf %377, %381 : vector<1x12xf32>
    %383 = vector.extract_strided_slice %17 {offsets = [7, 0], sizes = [1, 32], strides = [1, 1]} : vector<8x32xf32> to vector<1x32xf32>
    %cst_94 = arith.constant dense<0.000000e+00> : vector<1x32xf32>
    %384 = tpu.matmul %382, %20, %cst_94 {dimension_numbers = #tpu.dot_dimension_numbers<[1], [0], [0], [1], [0, 0, 1, 1], [], []>} : vector<1x12xf32>, vector<12x32xf32>, vector<1x32xf32> -> vector<1x32xf32>
    %385 = arith.addf %383, %384 : vector<1x32xf32>
    %cst_95 = arith.constant 0.000000e+00 : f32
    %386 = vector.broadcast %cst_95 : f32 to vector<1x32xf32>
    %387 = arith.maximumf %385, %386 : vector<1x32xf32>
    %cst_96 = arith.constant dense<0.000000e+00> : vector<1x96xf32>
    %388 = tpu.matmul %387, %22, %cst_96 {dimension_numbers = #tpu.dot_dimension_numbers<[1], [0], [0], [1], [0, 0, 1, 1], [], []>} : vector<1x32xf32>, vector<32x96xf32>, vector<1x96xf32> -> vector<1x96xf32>
    %389 = arith.addf %388, %23 : vector<1x96xf32>
    %390 = vector.extract_strided_slice %369 {offsets = [0, 32], sizes = [1, 96], strides = [1, 1]} : vector<1x128xf32> to vector<1x96xf32>
    %391 = arith.addf %390, %24 : vector<1x96xf32>
    %392 = vector.extract_strided_slice %389 {offsets = [0, 0], sizes = [1, 32], strides = [1, 1]} : vector<1x96xf32> to vector<1x32xf32>
    %393 = vector.extract_strided_slice %391 {offsets = [0, 0], sizes = [1, 32], strides = [1, 1]} : vector<1x96xf32> to vector<1x32xf32>
    %394 = arith.addf %392, %393 : vector<1x32xf32>
    %395 = arith.negf %394 : vector<1x32xf32>
    %396 = math.exp %395 : vector<1x32xf32>
    %cst_97 = arith.constant 1.000000e+00 : f32
    %397 = vector.broadcast %cst_97 : f32 to vector<1x32xf32>
    %398 = arith.addf %397, %396 : vector<1x32xf32>
    %399 = arith.divf %397, %398 : vector<1x32xf32>
    %400 = vector.extract_strided_slice %389 {offsets = [0, 32], sizes = [1, 32], strides = [1, 1]} : vector<1x96xf32> to vector<1x32xf32>
    %401 = vector.extract_strided_slice %391 {offsets = [0, 32], sizes = [1, 32], strides = [1, 1]} : vector<1x96xf32> to vector<1x32xf32>
    %402 = arith.addf %400, %401 : vector<1x32xf32>
    %403 = arith.negf %402 : vector<1x32xf32>
    %404 = math.exp %403 : vector<1x32xf32>
    %cst_98 = arith.constant 1.000000e+00 : f32
    %405 = vector.broadcast %cst_98 : f32 to vector<1x32xf32>
    %406 = arith.addf %405, %404 : vector<1x32xf32>
    %407 = arith.divf %405, %406 : vector<1x32xf32>
    %408 = vector.extract_strided_slice %389 {offsets = [0, 64], sizes = [1, 32], strides = [1, 1]} : vector<1x96xf32> to vector<1x32xf32>
    %409 = vector.extract_strided_slice %391 {offsets = [0, 64], sizes = [1, 32], strides = [1, 1]} : vector<1x96xf32> to vector<1x32xf32>
    %410 = arith.mulf %399, %409 : vector<1x32xf32>
    %411 = arith.addf %408, %410 : vector<1x32xf32>
    %412 = math.tanh %411 : vector<1x32xf32>
    %cst_99 = arith.constant 1.000000e+00 : f32
    %413 = vector.broadcast %cst_99 : f32 to vector<1x32xf32>
    %414 = arith.subf %413, %407 : vector<1x32xf32>
    %415 = arith.mulf %414, %412 : vector<1x32xf32>
    %416 = arith.mulf %407, %368 : vector<1x32xf32>
    %417 = arith.addf %415, %416 : vector<1x32xf32>
    %418 = tpu.concatenate %74, %123, %172, %221, %270, %319, %368, %417 in 0 : vector<1x32xf32>, vector<1x32xf32>, vector<1x32xf32>, vector<1x32xf32>, vector<1x32xf32>, vector<1x32xf32>, vector<1x32xf32>, vector<1x32xf32> -> vector<8x32xf32>
    %419 = tpu.concatenate %39, %88, %137, %186, %235, %284, %333, %382 in 0 : vector<1x12xf32>, vector<1x12xf32>, vector<1x12xf32>, vector<1x12xf32>, vector<1x12xf32>, vector<1x12xf32>, vector<1x12xf32>, vector<1x12xf32> -> vector<8x12xf32>
    %c0_100 = arith.constant 0 : index
    %c0_101 = arith.constant 0 : index
    %420 = vector.load %arg13[%c0_100, %c0_101] : memref<32x64xf32, #tpu.memory_space<vmem>>, vector<32x64xf32>
    %cst_102 = arith.constant dense<0.000000e+00> : vector<8x64xf32>
    %421 = tpu.matmul %418, %420, %cst_102 {dimension_numbers = #tpu.dot_dimension_numbers<[1], [0], [0], [1], [0, 0, 1, 1], [], []>} : vector<8x32xf32>, vector<32x64xf32>, vector<8x64xf32> -> vector<8x64xf32>
    %c0_103 = arith.constant 0 : index
    %c0_104 = arith.constant 0 : index
    %422 = vector.load %arg14[%c0_103, %c0_104] : memref<1x64xf32, #tpu.memory_space<vmem>>, vector<1x64xf32>
    %423 = vector.broadcast %422 : vector<1x64xf32> to vector<8x64xf32>
    %424 = arith.addf %421, %423 : vector<8x64xf32>
    %cst_105 = arith.constant dense<0xFF800000> : vector<8xf32>
    %425 = vector.multi_reduction <maximumf>, %424, %cst_105 [1] : vector<8x64xf32> to vector<8xf32>
    %426 = vector.shape_cast %425 : vector<8xf32> to vector<8x1xf32>
    %427 = vector.broadcast %426 : vector<8x1xf32> to vector<8x64xf32>
    %428 = arith.subf %424, %427 : vector<8x64xf32>
    %429 = math.exp %428 : vector<8x64xf32>
    %cst_106 = arith.constant dense<0.000000e+00> : vector<8xf32>
    %430 = vector.multi_reduction <add>, %429, %cst_106 [1] : vector<8x64xf32> to vector<8xf32>
    %431 = vector.shape_cast %430 : vector<8xf32> to vector<8x1xf32>
    %432 = math.log %431 : vector<8x1xf32>
    %433 = vector.broadcast %432 : vector<8x1xf32> to vector<8x64xf32>
    %434 = arith.subf %428, %433 : vector<8x64xf32>
    %cst_107 = arith.constant 0.000000e+00 : f32
    %435 = vector.broadcast %cst_107 : f32 to vector<8x20xf32>
    %436 = tpu.concatenate %434, %418, %419, %435 in 1 : vector<8x64xf32>, vector<8x32xf32>, vector<8x12xf32>, vector<8x20xf32> -> vector<8x128xf32>
    %c0_108 = arith.constant 0 : index
    %c0_109 = arith.constant 0 : index
    %437 = vector.load %arg15[%c0_108, %c0_109] : memref<8x128xf32, #tpu.memory_space<vmem>>, vector<8x128xf32>
    tpu.vector_store %arg15[%c0_108, %c0_109], %436 {strides = array<i32>} : memref<8x128xf32, #tpu.memory_space<vmem>>, vector<8x128xf32>,
    return
  }
}

</mosaic_0001>

<llo_original>
// kernel: tpu_custom_call.1
$region0: #{tpu_custom_call.1}
  #allocation0 [shape = 'u32[]', space=smem, size = 0x4, offset = 0x4, fixed_abs, tag = 'smem constant byte address 0x4 - core index']
  #allocation1 [shape = 'u32[144,128]{1,0:T(1,128)}', space=vmem, size = 0x12000, scoped, tag = 'internal scratch']
  %s0 = inlined_call_operand.vmem [shape: s32[8,1], index: 0, kind: input, shape index: {}]
  %s1 = inlined_call_operand.hbm [shape: f32[1,32], index: 1, kind: input, shape index: {}]
  %s2 = inlined_call_operand.hbm [shape: f32[12,32], index: 2, kind: input, shape index: {}]
  %s3 = inlined_call_operand.vmem [shape: f32[64,32], index: 3, kind: input, shape index: {}]
  %s4 = inlined_call_operand.vmem [shape: f32[32,12], index: 4, kind: input, shape index: {}]
  %s5 = inlined_call_operand.vmem [shape: f32[1,12], index: 5, kind: input, shape index: {}]
  %s6 = inlined_call_operand.vmem [shape: f32[32,32], index: 6, kind: input, shape index: {}]
  %s7 = inlined_call_operand.vmem [shape: f32[32,32], index: 7, kind: input, shape index: {}]
  %s8 = inlined_call_operand.vmem [shape: f32[1,32], index: 8, kind: input, shape index: {}]
  %s9 = inlined_call_operand.vmem [shape: f32[32,128], index: 9, kind: input, shape index: {}]
  %s10 = inlined_call_operand.vmem [shape: f32[32,96], index: 10, kind: input, shape index: {}]
  %s11 = inlined_call_operand.vmem [shape: f32[1,96], index: 11, kind: input, shape index: {}]
  %s12 = inlined_call_operand.vmem [shape: f32[1,96], index: 12, kind: input, shape index: {}]
  %s13 = inlined_call_operand.hbm [shape: f32[32,64], index: 13, kind: input, shape index: {}]
  %s14 = inlined_call_operand.vmem [shape: f32[1,64], index: 14, kind: input, shape index: {}]
  %s15 = inlined_call_operand.hbm [shape: f32[8,128], index: 15, kind: output, shape index: {}]
  %s16 = sld [smem:[#allocation0]]
  $region82: #{tpu_custom_call.1} parent=0
    _
  %s18 = ssub.s32 1, %s16
  %s19 = scalar_select 0, %s18, %s16
  $region1: #{tpu_custom_call.1} parent=0
    #allocation2 [shape = 'u8[512]{0}', space=vmem, size = 0x400, scoped, tag = 'input window, operand 1, single buffered']
    #allocation3 [shape = 's32[1]{0}', space=sflag, size = 0x4, scoped, tag = 'scoped memory for tpu_custom_call.1']
    #allocation4 [shape = 's32[1]{0}', space=sflag, size = 0x4, scoped, tag = 'scoped memory for tpu_custom_call.1']
    #allocation5 [shape = 'u8[8192]{0}', space=vmem, size = 0x2000, scoped, tag = 'input window, operand 2, single buffered']
    #allocation6 [shape = 's32[1]{0}', space=sflag, size = 0x4, scoped, tag = 'scoped memory for tpu_custom_call.1']
    #allocation7 [shape = 'u8[16384]{0}', space=vmem, size = 0x4000, scoped, tag = 'input window, operand 13, single buffered']
    #allocation8 [shape = 'u8[4096]{0}', space=vmem, size = 0x1000, scoped, tag = 'output window, operand 0, single buffered']
    %20 = vsyncpa [#allocation3], 0
    %21 = vsyncpa [#allocation6], 0
    %22 = vsyncpa [#allocation4], 0
    // Predicated region
    $region2: #{tpu_custom_call.1} parent=1 // pred_check
      _
    $region3: #{tpu_custom_call.1} parent=1 // pred_check_branch
      %24 = sbr.rel (0) target = $region5
    $region4: #{tpu_custom_call.1} parent=1 // pred_region
      _
    $region5: #{tpu_custom_call.1} parent=1 // pred_fallthru
      _
    // Predicated region
    $region6: #{tpu_custom_call.1} parent=1 // pred_check
      _
    $region7: #{tpu_custom_call.1} parent=1 // pred_check_branch
      %26 = sbr.rel (0) target = $region9
    $region8: #{tpu_custom_call.1} parent=1 // pred_region
      %s28 = ssub.s32 16, 16
      %29 = vsyncadd [#allocation3], %s28
      %s31 = sshll.u32 [#allocation2], 4
      %s32 = int_to_ptr.vmem [resolvable:$true] %s31
      %34 = dma.hbm_to_vmem [thread:$0]  %s1, 16, %s32, [#allocation3]
    $region9: #{tpu_custom_call.1} parent=1 // pred_fallthru
      _
    // Predicated region
    $region10: #{tpu_custom_call.1} parent=1 // pred_check
      _
    $region11: #{tpu_custom_call.1} parent=1 // pred_check_branch
      %36 = sbr.rel (0) target = $region13
    $region12: #{tpu_custom_call.1} parent=1 // pred_region
      %s38 = ssub.s32 256, 256
      %39 = vsyncadd [#allocation6], %s38
      %s40 = sshll.u32 [#allocation5], 4
      %s41 = int_to_ptr.vmem [resolvable:$true] %s40
      %46 = dma.hbm_to_vmem [thread:$0]  %s2, 256, %s41, [#allocation6], 128, 128, 8
    $region13: #{tpu_custom_call.1} parent=1 // pred_fallthru
      _
    // Predicated region
    $region14: #{tpu_custom_call.1} parent=1 // pred_check
      _
    $region15: #{tpu_custom_call.1} parent=1 // pred_check_branch
      %48 = sbr.rel (0) target = $region17
    $region16: #{tpu_custom_call.1} parent=1 // pred_region
      _
    $region17: #{tpu_custom_call.1} parent=1 // pred_fallthru
      _
    // Predicated region
    $region18: #{tpu_custom_call.1} parent=1 // pred_check
      _
    $region19: #{tpu_custom_call.1} parent=1 // pred_check_branch
      %50 = sbr.rel (0) target = $region21
    $region20: #{tpu_custom_call.1} parent=1 // pred_region
      _
    $region21: #{tpu_custom_call.1} parent=1 // pred_fallthru
      _
    // Predicated region
    $region22: #{tpu_custom_call.1} parent=1 // pred_check
      _
    $region23: #{tpu_custom_call.1} parent=1 // pred_check_branch
      %52 = sbr.rel (0) target = $region25
    $region24: #{tpu_custom_call.1} parent=1 // pred_region
      _
    $region25: #{tpu_custom_call.1} parent=1 // pred_fallthru
      _
    // Predicated region
    $region26: #{tpu_custom_call.1} parent=1 // pred_check
      _
    $region27: #{tpu_custom_call.1} parent=1 // pred_check_branch
      %54 = sbr.rel (0) target = $region29
    $region28: #{tpu_custom_call.1} parent=1 // pred_region
      _
    $region29: #{tpu_custom_call.1} parent=1 // pred_fallthru
      _
    // Predicated region
    $region30: #{tpu_custom_call.1} parent=1 // pred_check
      _
    $region31: #{tpu_custom_call.1} parent=1 // pred_check_branch
      %56 = sbr.rel (0) target = $region33
    $region32: #{tpu_custom_call.1} parent=1 // pred_region
      _
    $region33: #{tpu_custom_call.1} parent=1 // pred_fallthru
      _
    // Predicated region
    $region34: #{tpu_custom_call.1} parent=1 // pred_check
      _
    $region35: #{tpu_custom_call.1} parent=1 // pred_check_branch
      %58 = sbr.rel (0) target = $region37
    $region36: #{tpu_custom_call.1} parent=1 // pred_region
      _
    $region37: #{tpu_custom_call.1} parent=1 // pred_fallthru
      _
    // Predicated region
    $region38: #{tpu_custom_call.1} parent=1 // pred_check
      _
    $region39: #{tpu_custom_call.1} parent=1 // pred_check_branch
      %60 = sbr.rel (0) target = $region41
    $region40: #{tpu_custom_call.1} parent=1 // pred_region
      _
    $region41: #{tpu_custom_call.1} parent=1 // pred_fallthru
      _
    // Predicated region
    $region42: #{tpu_custom_call.1} parent=1 // pred_check
      _
    $region43: #{tpu_custom_call.1} parent=1 // pred_check_branch
      %62 = sbr.rel (0) target = $region45
    $region44: #{tpu_custom_call.1} parent=1 // pred_region
      _
    $region45: #{tpu_custom_call.1} parent=1 // pred_fallthru
      _
    // Predicated region
    $region46: #{tpu_custom_call.1} parent=1 // pred_check
      _
    $region47: #{tpu_custom_call.1} parent=1 // pred_check_branch
      %64 = sbr.rel (0) target = $region49
    $region48: #{tpu_custom_call.1} parent=1 // pred_region
      _
    $region49: #{tpu_custom_call.1} parent=1 // pred_fallthru
      _
    // Predicated region
    $region50: #{tpu_custom_call.1} parent=1 // pred_check
      _
    $region51: #{tpu_custom_call.1} parent=1 // pred_check_branch
      %66 = sbr.rel (0) target = $region53
    $region52: #{tpu_custom_call.1} parent=1 // pred_region
      _
    $region53: #{tpu_custom_call.1} parent=1 // pred_fallthru
      _
    // Predicated region
    $region54: #{tpu_custom_call.1} parent=1 // pred_check
      _
    $region55: #{tpu_custom_call.1} parent=1 // pred_check_branch
      %68 = sbr.rel (0) target = $region57
    $region56: #{tpu_custom_call.1} parent=1 // pred_region
      %s70 = ssub.s32 512, 512
      %71 = vsyncadd [#allocation6], %s70
      %s72 = sshll.u32 [#allocation7], 4
      %s73 = int_to_ptr.vmem [resolvable:$true] %s72
      %78 = dma.hbm_to_vmem [thread:$0]  %s13, 512, %s73, [#allocation6], 128, 128, 8
    $region57: #{tpu_custom_call.1} parent=1 // pred_fallthru
      _
    // Predicated region
    $region58: #{tpu_custom_call.1} parent=1 // pred_check
      _
    $region59: #{tpu_custom_call.1} parent=1 // pred_check_branch
      %80 = sbr.rel (0) target = $region61
    $region60: #{tpu_custom_call.1} parent=1 // pred_region
      _
    $region61: #{tpu_custom_call.1} parent=1 // pred_fallthru
      _
    // Predicated region
    $region62: #{tpu_custom_call.1} parent=1 // pred_check
      _
    $region63: #{tpu_custom_call.1} parent=1 // pred_check_branch
      %82 = sbr.rel (0) target = $region65
    $region64: #{tpu_custom_call.1} parent=1 // pred_region
      %83 = dma.done [#allocation3], 16
    $region65: #{tpu_custom_call.1} parent=1 // pred_fallthru
      _
    // Predicated region
    $region66: #{tpu_custom_call.1} parent=1 // pred_check
      _
    $region67: #{tpu_custom_call.1} parent=1 // pred_check_branch
      %85 = sbr.rel (0) target = $region69
    $region68: #{tpu_custom_call.1} parent=1 // pred_region
      %86 = dma.done [#allocation6], 256
    $region69: #{tpu_custom_call.1} parent=1 // pred_fallthru
      _
    // Predicated region
    $region70: #{tpu_custom_call.1} parent=1 // pred_check
      _
    $region71: #{tpu_custom_call.1} parent=1 // pred_check_branch
      %88 = sbr.rel (0) target = $region73
    $region72: #{tpu_custom_call.1} parent=1 // pred_region
      %89 = dma.done [#allocation6], 512
    $region73: #{tpu_custom_call.1} parent=1 // pred_fallthru
      _
    %v90 = vld [vmem:[%s0] sm:$0xff]
    %v91 = vlaneseq
    %v92 = vand.u32 %v91, 127
    %93 = vset.pattern.permute.xlu0 0
    %94 = vperm.xlu0 %93, %v90
    %v95 = vpop.permute.xlu0 %94
    %vm96 = vcmp.eq.s32.totalorder %v95, %v92
    %v97 = vsel %vm96, 1, 0
    %v98 = vcvt.s32.f32 %v97
    %v99 = vld [vmem:[%s3] sm:$0xff]
    %v100 = vld [vmem:[%s3 + $0x8] sm:$0xff]
    %v101 = vld [vmem:[%s3 + $0x10] sm:$0xff]
    %v102 = vld [vmem:[%s3 + $0x18] sm:$0xff]
    %v103 = vld [vmem:[%s3 + $0x20] sm:$0xff]
    %v104 = vld [vmem:[%s3 + $0x28] sm:$0xff]
    %v105 = vld [vmem:[%s3 + $0x30] sm:$0xff]
    %v106 = vld [vmem:[%s3 + $0x38] sm:$0xff]
    %vm107 = vcmask 523264
    %v109 = vsel %vm107, %v98, 0
    %111 = vmatprep.subr.mxu0 0.0
    %112 = vmatpush1.msra.mxu0 0.0
    %113 = vmatprep.subr.mxu0 0.0
    %114 = vmatpush1.msra.mxu0 0.0
    %115 = vmatprep.subr.mxu0 0.0
    %116 = vmatpush1.msra.mxu0 0.0
    %117 = vmatprep.subr.mxu0 0.0
    %118 = vmatpush1.msra.mxu0 0.0
    %119 = vmatprep.subr.mxu0 0.0
    %120 = vmatpush1.msra.mxu0 0.0
    %121 = vmatprep.subr.mxu0 0.0
    %122 = vmatpush1.msra.mxu0 0.0
    %123 = vmatprep.subr.mxu0 0.0
    %124 = vmatpush1.msra.mxu0 0.0
    %125 = vmatprep.subr.mxu0 0.0
    %126 = vmatpush1.msra.mxu0 0.0
    %127 = vmatprep.subr.mxu0 0.0
    %128 = vmatpush1.msra.mxu0 %v106
    %129 = vmatprep.subr.mxu0 0.0
    %130 = vmatpush1.msra.mxu0 %v105
    %131 = vmatprep.subr.mxu0 0.0
    %132 = vmatpush1.msra.mxu0 %v104
    %133 = vmatprep.subr.mxu0 0.0
    %134 = vmatpush1.msra.mxu0 %v103
    %135 = vmatprep.subr.mxu0 0.0
    %136 = vmatpush1.msra.mxu0 %v102
    %137 = vmatprep.subr.mxu0 0.0
    %138 = vmatpush1.msra.mxu0 %v101
    %139 = vmatprep.subr.mxu0 0.0
    %140 = vmatpush1.msra.mxu0 %v100
    %141 = vmatprep.subr.mxu0 0.0
    %142 = vmatpush1.msra.mxu0 %v99
    %143 = vmatprep.subr.mxu0 0.0
    %144 = vmatpush2.msra.mxu0 0.0
    %145 = vmatprep.subr.mxu0 0.0
    %146 = vmatpush2.msra.mxu0 0.0
    %147 = vmatprep.subr.mxu0 0.0
    %148 = vmatpush2.msra.mxu0 0.0
    %149 = vmatprep.subr.mxu0 0.0
    %150 = vmatpush2.msra.mxu0 0.0
    %151 = vmatprep.subr.mxu0 0.0
    %152 = vmatpush2.msra.mxu0 0.0
    %153 = vmatprep.subr.mxu0 0.0
    %154 = vmatpush2.msra.mxu0 0.0
    %155 = vmatprep.subr.mxu0 0.0
    %156 = vmatpush2.msra.mxu0 0.0
    %157 = vmatprep.subr.mxu0 0.0
    %158 = vmatpush2.msra.mxu0 0.0
    %159 = vmatprep.subr.mxu0 0.0
    %160 = vmatpush2.msra.mxu0 0.0
    %161 = vmatprep.subr.mxu0 0.0
    %162 = vmatpush2.msra.mxu0 0.0
    %163 = vmatprep.subr.mxu0 0.0
    %164 = vmatpush2.msra.mxu0 0.0
    %165 = vmatprep.subr.mxu0 0.0
    %166 = vmatpush2.msra.mxu0 0.0
    %167 = vmatprep.subr.mxu0 0.0
    %168 = vmatpush2.msra.mxu0 0.0
    %169 = vmatprep.subr.mxu0 0.0
    %170 = vmatpush2.msra.mxu0 0.0
    %171 = vmatprep.subr.mxu0 0.0
    %172 = vmatpush2.msra.mxu0 0.0
    %173 = vmatprep.subr.mxu0 0.0
    %174 = vmatpush2.msra.mxu0 0.0
    %175 = vmatprep.mubr.f32.mxu0 0.0
    %176 = vmatmul.mubr.f32.gmra.mxu0 %v109
    %v177 = vpop.f32.mrf.mxu0
    %v178 = vadd.f32 0.0, %v177
    %v179 = vpop.f32.mrf.mxu0
    %180 = vdwg.mxu0
    %v181 = vld [vmem:[%s4] sm:$0xff]
    %v182 = vld [vmem:[%s4 + $0x8] sm:$0xff]
    %v183 = vld [vmem:[%s4 + $0x10] sm:$0xff]
    %v184 = vld [vmem:[%s4 + $0x18] sm:$0xff]
    %v185 = vld [vmem:[%s5] sm:$0x1]
    %v187 = vlaneseq
    %v188 = vshrl.u32 %v187, 7
    %v189 = vsub.s32 0, %v188
    %v190 = vrot.slane %v185, %v189
    %vm192 = vcmask 261120
    %v194 = vsel %vm192, %v178, 0
    %196 = vmatprep.subr.mxu0 0.0
    %197 = vmatpush1.msra.mxu0 0.0
    %198 = vmatprep.subr.mxu0 0.0
    %199 = vmatpush1.msra.mxu0 0.0
    %200 = vmatprep.subr.mxu0 0.0
    %201 = vmatpush1.msra.mxu0 0.0
    %202 = vmatprep.subr.mxu0 0.0
    %203 = vmatpush1.msra.mxu0 0.0
    %204 = vmatprep.subr.mxu0 0.0
    %205 = vmatpush1.msra.mxu0 0.0
    %206 = vmatprep.subr.mxu0 0.0
    %207 = vmatpush1.msra.mxu0 0.0
    %208 = vmatprep.subr.mxu0 0.0
    %209 = vmatpush1.msra.mxu0 0.0
    %210 = vmatprep.subr.mxu0 0.0
    %211 = vmatpush1.msra.mxu0 0.0
    %212 = vmatprep.subr.mxu0 0.0
    %213 = vmatpush1.msra.mxu0 0.0
    %214 = vmatprep.subr.mxu0 0.0
    %215 = vmatpush1.msra.mxu0 0.0
    %216 = vmatprep.subr.mxu0 0.0
    %217 = vmatpush1.msra.mxu0 0.0
    %218 = vmatprep.subr.mxu0 0.0
    %219 = vmatpush1.msra.mxu0 0.0
    %220 = vmatprep.subr.mxu0 0.0
    %221 = vmatpush1.msra.mxu0 %v184
    %222 = vmatprep.subr.mxu0 0.0
    %223 = vmatpush1.msra.mxu0 %v183
    %224 = vmatprep.subr.mxu0 0.0
    %225 = vmatpush1.msra.mxu0 %v182
    %226 = vmatprep.subr.mxu0 0.0
    %227 = vmatpush1.msra.mxu0 %v181
    %228 = vmatprep.subr.mxu0 0.0
    %229 = vmatpush2.msra.mxu0 0.0
    %230 = vmatprep.subr.mxu0 0.0
    %231 = vmatpush2.msra.mxu0 0.0
    %232 = vmatprep.subr.mxu0 0.0
    %233 = vmatpush2.msra.mxu0 0.0
    %234 = vmatprep.subr.mxu0 0.0
    %235 = vmatpush2.msra.mxu0 0.0
    %236 = vmatprep.subr.mxu0 0.0
    %237 = vmatpush2.msra.mxu0 0.0
    %238 = vmatprep.subr.mxu0 0.0
    %239 = vmatpush2.msra.mxu0 0.0
    %240 = vmatprep.subr.mxu0 0.0
    %241 = vmatpush2.msra.mxu0 0.0
    %242 = vmatprep.subr.mxu0 0.0
    %243 = vmatpush2.msra.mxu0 0.0
    %244 = vmatprep.subr.mxu0 0.0
    %245 = vmatpush2.msra.mxu0 0.0
    %246 = vmatprep.subr.mxu0 0.0
    %247 = vmatpush2.msra.mxu0 0.0
    %248 = vmatprep.subr.mxu0 0.0
    %249 = vmatpush2.msra.mxu0 0.0
    %250 = vmatprep.subr.mxu0 0.0
    %251 = vmatpush2.msra.mxu0 0.0
    %252 = vmatprep.subr.mxu0 0.0
    %253 = vmatpush2.msra.mxu0 0.0
    %254 = vmatprep.subr.mxu0 0.0
    %255 = vmatpush2.msra.mxu0 0.0
    %256 = vmatprep.subr.mxu0 0.0
    %257 = vmatpush2.msra.mxu0 0.0
    %258 = vmatprep.subr.mxu0 0.0
    %259 = vmatpush2.msra.mxu0 0.0
    %260 = vmatprep.mubr.f32.mxu0 0.0
    %261 = vmatmul.mubr.f32.gmra.mxu0 %v194
    %v262 = vpop.f32.mrf.mxu0
    %v263 = vadd.f32 %v190, %v262
    %v264 = vpop.f32.mrf.mxu0
    %265 = vdwg.mxu0
    %v266 = vld [vmem:[%s6] sm:$0xff]
    %v267 = vld [vmem:[%s6 + $0x8] sm:$0xff]
    %v268 = vld [vmem:[%s6 + $0x10] sm:$0xff]
    %v269 = vld [vmem:[%s6 + $0x18] sm:$0xff]
    %v270 = vld [vmem:[%s8] sm:$0x1]
    %v272 = vlaneseq
    %v273 = vshrl.u32 %v272, 7
    %v274 = vsub.s32 0, %v273
    %v275 = vrot.slane %v270, %v274
    %277 = vmatprep.subr.mxu0 0.0
    %278 = vmatpush1.msra.mxu0 0.0
    %279 = vmatprep.subr.mxu0 0.0
    %280 = vmatpush1.msra.mxu0 0.0
    %281 = vmatprep.subr.mxu0 0.0
    %282 = vmatpush1.msra.mxu0 0.0
    %283 = vmatprep.subr.mxu0 0.0
    %284 = vmatpush1.msra.mxu0 0.0
    %285 = vmatprep.subr.mxu0 0.0
    %286 = vmatpush1.msra.mxu0 0.0
    %287 = vmatprep.subr.mxu0 0.0
    %288 = vmatpush1.msra.mxu0 0.0
    %289 = vmatprep.subr.mxu0 0.0
    %290 = vmatpush1.msra.mxu0 0.0
    %291 = vmatprep.subr.mxu0 0.0
    %292 = vmatpush1.msra.mxu0 0.0
    %293 = vmatprep.subr.mxu0 0.0
    %294 = vmatpush1.msra.mxu0 0.0
    %295 = vmatprep.subr.mxu0 0.0
    %296 = vmatpush1.msra.mxu0 0.0
    %297 = vmatprep.subr.mxu0 0.0
    %298 = vmatpush1.msra.mxu0 0.0
    %299 = vmatprep.subr.mxu0 0.0
    %300 = vmatpush1.msra.mxu0 0.0
    %301 = vmatprep.subr.mxu0 0.0
    %302 = vmatpush1.msra.mxu0 %v269
    %303 = vmatprep.subr.mxu0 0.0
    %304 = vmatpush1.msra.mxu0 %v268
    %305 = vmatprep.subr.mxu0 0.0
    %306 = vmatpush1.msra.mxu0 %v267
    %307 = vmatprep.subr.mxu0 0.0
    %308 = vmatpush1.msra.mxu0 %v266
    %309 = vmatprep.subr.mxu0 0.0
    %310 = vmatpush2.msra.mxu0 0.0
    %311 = vmatprep.subr.mxu0 0.0
    %312 = vmatpush2.msra.mxu0 0.0
    %313 = vmatprep.subr.mxu0 0.0
    %314 = vmatpush2.msra.mxu0 0.0
    %315 = vmatprep.subr.mxu0 0.0
    %316 = vmatpush2.msra.mxu0 0.0
    %317 = vmatprep.subr.mxu0 0.0
    %318 = vmatpush2.msra.mxu0 0.0
    %319 = vmatprep.subr.mxu0 0.0
    %320 = vmatpush2.msra.mxu0 0.0
    %321 = vmatprep.subr.mxu0 0.0
    %322 = vmatpush2.msra.mxu0 0.0
    %323 = vmatprep.subr.mxu0 0.0
    %324 = vmatpush2.msra.mxu0 0.0
    %325 = vmatprep.subr.mxu0 0.0
    %326 = vmatpush2.msra.mxu0 0.0
    %327 = vmatprep.subr.mxu0 0.0
    %328 = vmatpush2.msra.mxu0 0.0
    %329 = vmatprep.subr.mxu0 0.0
    %330 = vmatpush2.msra.mxu0 0.0
    %331 = vmatprep.subr.mxu0 0.0
    %332 = vmatpush2.msra.mxu0 0.0
    %333 = vmatprep.subr.mxu0 0.0
    %334 = vmatpush2.msra.mxu0 0.0
    %335 = vmatprep.subr.mxu0 0.0
    %336 = vmatpush2.msra.mxu0 0.0
    %337 = vmatprep.subr.mxu0 0.0
    %338 = vmatpush2.msra.mxu0 0.0
    %339 = vmatprep.subr.mxu0 0.0
    %340 = vmatpush2.msra.mxu0 0.0
    %341 = vmatprep.mubr.f32.mxu0 0.0
    %342 = vmatmul.mubr.f32.gmra.mxu0 %v194
    %v343 = vpop.f32.mrf.mxu0
    %v344 = vadd.f32 %v275, %v343
    %v345 = vpop.f32.mrf.mxu0
    %346 = vdwg.mxu0
    %v347 = vld [vmem:[#allocation5] sm:$0xff]
    %v348 = vld [vmem:[#allocation5 + $0x8] sm:$0xf]
    %v349 = vld [vmem:[%s7] sm:$0xff]
    %v350 = vld [vmem:[%s7 + $0x8] sm:$0xff]
    %v351 = vld [vmem:[%s7 + $0x10] sm:$0xff]
    %v352 = vld [vmem:[%s7 + $0x18] sm:$0xff]
    %v354 = vsel %vm192, %v347, 0
    %v357 = vsel %vm192, %v348, 0
    %359 = vmatprep.subr.mxu0 0.0
    %360 = vmatpush1.msra.mxu0 0.0
    %361 = vmatprep.subr.mxu0 0.0
    %362 = vmatpush1.msra.mxu0 0.0
    %363 = vmatprep.subr.mxu0 0.0
    %364 = vmatpush1.msra.mxu0 0.0
    %365 = vmatprep.subr.mxu0 0.0
    %366 = vmatpush1.msra.mxu0 0.0
    %367 = vmatprep.subr.mxu0 0.0
    %368 = vmatpush1.msra.mxu0 0.0
    %369 = vmatprep.subr.mxu0 0.0
    %370 = vmatpush1.msra.mxu0 0.0
    %371 = vmatprep.subr.mxu0 0.0
    %372 = vmatpush1.msra.mxu0 0.0
    %373 = vmatprep.subr.mxu0 0.0
    %374 = vmatpush1.msra.mxu0 0.0
    %375 = vmatprep.subr.mxu0 0.0
    %376 = vmatpush1.msra.mxu0 0.0
    %377 = vmatprep.subr.mxu0 0.0
    %378 = vmatpush1.msra.mxu0 0.0
    %379 = vmatprep.subr.mxu0 0.0
    %380 = vmatpush1.msra.mxu0 0.0
    %381 = vmatprep.subr.mxu0 0.0
    %382 = vmatpush1.msra.mxu0 0.0
    %383 = vmatprep.subr.mxu0 0.0
    %384 = vmatpush1.msra.mxu0 %v352
    %385 = vmatprep.subr.mxu0 0.0
    %386 = vmatpush1.msra.mxu0 %v351
    %387 = vmatprep.subr.mxu0 0.0
    %388 = vmatpush1.msra.mxu0 %v350
    %389 = vmatprep.subr.mxu0 0.0
    %390 = vmatpush1.msra.mxu0 %v349
    %391 = vmatprep.subr.mxu0 0.0
    %392 = vmatpush2.msra.mxu0 0.0
    %393 = vmatprep.subr.mxu0 0.0
    %394 = vmatpush2.msra.mxu0 0.0
    %395 = vmatprep.subr.mxu0 0.0
    %396 = vmatpush2.msra.mxu0 0.0
    %397 = vmatprep.subr.mxu0 0.0
    %398 = vmatpush2.msra.mxu0 0.0
    %399 = vmatprep.subr.mxu0 0.0
    %400 = vmatpush2.msra.mxu0 0.0
    %401 = vmatprep.subr.mxu0 0.0
    %402 = vmatpush2.msra.mxu0 0.0
    %403 = vmatprep.subr.mxu0 0.0
    %404 = vmatpush2.msra.mxu0 0.0
    %405 = vmatprep.subr.mxu0 0.0
    %406 = vmatpush2.msra.mxu0 0.0
    %407 = vmatprep.subr.mxu0 0.0
    %408 = vmatpush2.msra.mxu0 0.0
    %409 = vmatprep.subr.mxu0 0.0
    %410 = vmatpush2.msra.mxu0 0.0
    %411 = vmatprep.subr.mxu0 0.0
    %412 = vmatpush2.msra.mxu0 0.0
    %413 = vmatprep.subr.mxu0 0.0
    %414 = vmatpush2.msra.mxu0 0.0
    %415 = vmatprep.subr.mxu0 0.0
    %416 = vmatpush2.msra.mxu0 0.0
    %417 = vmatprep.subr.mxu0 0.0
    %418 = vmatpush2.msra.mxu0 0.0
    %419 = vmatprep.subr.mxu0 0.0
    %420 = vmatpush2.msra.mxu0 0.0
    %421 = vmatprep.subr.mxu0 0.0
    %422 = vmatpush2.msra.mxu0 0.0
    %423 = vmatprep.mubr.f32.mxu0 0.0
    %424 = vmatmul.mubr.f32.gmra.mxu0 %v354
    %v425 = vpop.f32.mrf.mxu0
    %v426 = vadd.f32 0.0, %v425
    %v427 = vpop.f32.mrf.mxu0
    %428 = vmatprep.mubr.f32.mxu0 0.0
    %429 = vmatmul.mubr.f32.gmra.mxu0 %v357
    %v430 = vpop.f32.mrf.mxu0
    %v431 = vadd.f32 0.0, %v430
    %v432 = vpop.f32.mrf.mxu0
    %433 = vdwg.mxu0
    %v434 = vld [vmem:[%s9] sm:$0xff]
    %v435 = vld [vmem:[%s9 + $0x8] sm:$0xff]
    %v436 = vld [vmem:[%s9 + $0x10] sm:$0xff]
    %v437 = vld [vmem:[%s9 + $0x18] sm:$0xff]
    %v438 = vld [vmem:[%s10] sm:$0xff]
    %v439 = vld [vmem:[%s10 + $0x8] sm:$0xff]
    %v440 = vld [vmem:[%s10 + $0x10] sm:$0xff]
    %v441 = vld [vmem:[%s10 + $0x18] sm:$0xff]
    %v442 = vld [vmem:[%s11] sm:$0x1]
    %v443 = vld [vmem:[%s12] sm:$0x1]
    %v444 = vld [vmem:[#allocation2] sm:$0x1]
    %v446 = vsel %vm192, %v444, 0
    %448 = vmatprep.subr.mxu0 0.0
    %449 = vmatpush1.msra.mxu0 0.0
    %450 = vmatprep.subr.mxu0 0.0
    %451 = vmatpush1.msra.mxu0 0.0
    %452 = vmatprep.subr.mxu0 0.0
    %453 = vmatpush1.msra.mxu0 0.0
    %454 = vmatprep.subr.mxu0 0.0
    %455 = vmatpush1.msra.mxu0 0.0
    %456 = vmatprep.subr.mxu0 0.0
    %457 = vmatpush1.msra.mxu0 0.0
    %458 = vmatprep.subr.mxu0 0.0
    %459 = vmatpush1.msra.mxu0 0.0
    %460 = vmatprep.subr.mxu0 0.0
    %461 = vmatpush1.msra.mxu0 0.0
    %462 = vmatprep.subr.mxu0 0.0
    %463 = vmatpush1.msra.mxu0 0.0
    %464 = vmatprep.subr.mxu0 0.0
    %465 = vmatpush1.msra.mxu0 0.0
    %466 = vmatprep.subr.mxu0 0.0
    %467 = vmatpush1.msra.mxu0 0.0
    %468 = vmatprep.subr.mxu0 0.0
    %469 = vmatpush1.msra.mxu0 0.0
    %470 = vmatprep.subr.mxu0 0.0
    %471 = vmatpush1.msra.mxu0 0.0
    %472 = vmatprep.subr.mxu0 0.0
    %473 = vmatpush1.msra.mxu0 %v437
    %474 = vmatprep.subr.mxu0 0.0
    %475 = vmatpush1.msra.mxu0 %v436
    %476 = vmatprep.subr.mxu0 0.0
    %477 = vmatpush1.msra.mxu0 %v435
    %478 = vmatprep.subr.mxu0 0.0
    %479 = vmatpush1.msra.mxu0 %v434
    %480 = vmatprep.subr.mxu0 0.0
    %481 = vmatpush2.msra.mxu0 0.0
    %482 = vmatprep.subr.mxu0 0.0
    %483 = vmatpush2.msra.mxu0 0.0
    %484 = vmatprep.subr.mxu0 0.0
    %485 = vmatpush2.msra.mxu0 0.0
    %486 = vmatprep.subr.mxu0 0.0
    %487 = vmatpush2.msra.mxu0 0.0
    %488 = vmatprep.subr.mxu0 0.0
    %489 = vmatpush2.msra.mxu0 0.0
    %490 = vmatprep.subr.mxu0 0.0
    %491 = vmatpush2.msra.mxu0 0.0
    %492 = vmatprep.subr.mxu0 0.0
    %493 = vmatpush2.msra.mxu0 0.0
    %494 = vmatprep.subr.mxu0 0.0
    %495 = vmatpush2.msra.mxu0 0.0
    %496 = vmatprep.subr.mxu0 0.0
    %497 = vmatpush2.msra.mxu0 0.0
    %498 = vmatprep.subr.mxu0 0.0
    %499 = vmatpush2.msra.mxu0 0.0
    %500 = vmatprep.subr.mxu0 0.0
    %501 = vmatpush2.msra.mxu0 0.0
    %502 = vmatprep.subr.mxu0 0.0
    %503 = vmatpush2.msra.mxu0 0.0
    %504 = vmatprep.subr.mxu0 0.0
    %505 = vmatpush2.msra.mxu0 0.0
    %506 = vmatprep.subr.mxu0 0.0
    %507 = vmatpush2.msra.mxu0 0.0
    %508 = vmatprep.subr.mxu0 0.0
    %509 = vmatpush2.msra.mxu0 0.0
    %510 = vmatprep.subr.mxu0 0.0
    %511 = vmatpush2.msra.mxu0 0.0
    %512 = vmatprep.mubr.f32.mxu0 0.0
    %513 = vmatmul.mubr.f32.gmra.mxu0 %v446
    %v514 = vpop.f32.mrf.mxu0
    %v515 = vadd.f32 0.0, %v514
    %v516 = vpop.f32.mrf.mxu0
    %517 = vdwg.mxu0
    %v518 = vadd.f32 %v263, %v515
    %vm519 = vcmask 90112
    %v520 = vsel %vm519, %v518, -inf
    %521 = vmax.xlane.f32.xlu0 %v520
    %v522 = vpop.xlane.xlu0 %521
    %v523 = vsub.f32 %v518, %v522
    %v524 = vmul.f32 %v523, 1.442695
    %v525 = vpow.pop %v524
    %v526 = vsel %vm519, %v525, 0.0
    %527 = vadd.xlane.f32.xlu0 %v526
    %v528 = vpop.xlane.xlu0 %527
    %v529 = vrcp.pop %v528
    %v530 = vmul.f32 %v525, %v529
    %vm531 = vcmask 97280
    %v533 = vsel %vm531, %v530, 0
    %vm535 = vcmask 1043456
    %v537 = vsel %vm535, %v431, 0
    %539 = vmatprep.subr.mxu0 0.0
    %540 = vmatpush1.msra.mxu0 0.0
    %541 = vmatprep.subr.mxu0 0.0
    %542 = vmatpush1.msra.mxu0 0.0
    %543 = vmatprep.subr.mxu0 0.0
    %544 = vmatpush1.msra.mxu0 0.0
    %545 = vmatprep.subr.mxu0 0.0
    %546 = vmatpush1.msra.mxu0 0.0
    %547 = vmatprep.subr.mxu0 0.0
    %548 = vmatpush1.msra.mxu0 0.0
    %549 = vmatprep.subr.mxu0 0.0
    %550 = vmatpush1.msra.mxu0 0.0
    %551 = vmatprep.subr.mxu0 0.0
    %552 = vmatpush1.msra.mxu0 0.0
    %553 = vmatprep.subr.mxu0 0.0
    %554 = vmatpush1.msra.mxu0 0.0
    %555 = vmatprep.subr.mxu0 0.0
    %556 = vmatpush1.msra.mxu0 0.0
    %557 = vmatprep.subr.mxu0 0.0
    %558 = vmatpush1.msra.mxu0 0.0
    %559 = vmatprep.subr.mxu0 0.0
    %560 = vmatpush1.msra.mxu0 0.0
    %561 = vmatprep.subr.mxu0 0.0
    %562 = vmatpush1.msra.mxu0 0.0
    %563 = vmatprep.subr.mxu0 0.0
    %564 = vmatpush1.msra.mxu0 0.0
    %565 = vmatprep.subr.mxu0 0.0
    %566 = vmatpush1.msra.mxu0 0.0
    %567 = vmatprep.subr.mxu0 0.0
    %568 = vmatpush1.msra.mxu0 %v537
    %569 = vmatprep.subr.mxu0 0.0
    %570 = vmatpush1.msra.mxu0 %v426
    %571 = vmatprep.subr.mxu0 0.0
    %572 = vmatpush2.msra.mxu0 0.0
    %573 = vmatprep.subr.mxu0 0.0
    %574 = vmatpush2.msra.mxu0 0.0
    %575 = vmatprep.subr.mxu0 0.0
    %576 = vmatpush2.msra.mxu0 0.0
    %577 = vmatprep.subr.mxu0 0.0
    %578 = vmatpush2.msra.mxu0 0.0
    %579 = vmatprep.subr.mxu0 0.0
    %580 = vmatpush2.msra.mxu0 0.0
    %581 = vmatprep.subr.mxu0 0.0
    %582 = vmatpush2.msra.mxu0 0.0
    %583 = vmatprep.subr.mxu0 0.0
    %584 = vmatpush2.msra.mxu0 0.0
    %585 = vmatprep.subr.mxu0 0.0
    %586 = vmatpush2.msra.mxu0 0.0
    %587 = vmatprep.subr.mxu0 0.0
    %588 = vmatpush2.msra.mxu0 0.0
    %589 = vmatprep.subr.mxu0 0.0
    %590 = vmatpush2.msra.mxu0 0.0
    %591 = vmatprep.subr.mxu0 0.0
    %592 = vmatpush2.msra.mxu0 0.0
    %593 = vmatprep.subr.mxu0 0.0
    %594 = vmatpush2.msra.mxu0 0.0
    %595 = vmatprep.subr.mxu0 0.0
    %596 = vmatpush2.msra.mxu0 0.0
    %597 = vmatprep.subr.mxu0 0.0
    %598 = vmatpush2.msra.mxu0 0.0
    %599 = vmatprep.subr.mxu0 0.0
    %600 = vmatpush2.msra.mxu0 0.0
    %601 = vmatprep.subr.mxu0 0.0
    %602 = vmatpush2.msra.mxu0 0.0
    %603 = vmatprep.mubr.f32.mxu0 0.0
    %604 = vmatmul.mubr.f32.gmra.mxu0 %v533
    %v605 = vpop.f32.mrf.mxu0
    %v606 = vadd.f32 0.0, %v605
    %v607 = vpop.f32.mrf.mxu0
    %608 = vdwg.mxu0
    %v609 = vadd.f32 %v344, %v606
    %v610 = vmax.f32 %v609, 0.0
    %v612 = vsel %vm192, %v610, 0
    %614 = vmatprep.subr.mxu0 0.0
    %615 = vmatpush1.msra.mxu0 0.0
    %616 = vmatprep.subr.mxu0 0.0
    %617 = vmatpush1.msra.mxu0 0.0
    %618 = vmatprep.subr.mxu0 0.0
    %619 = vmatpush1.msra.mxu0 0.0
    %620 = vmatprep.subr.mxu0 0.0
    %621 = vmatpush1.msra.mxu0 0.0
    %622 = vmatprep.subr.mxu0 0.0
    %623 = vmatpush1.msra.mxu0 0.0
    %624 = vmatprep.subr.mxu0 0.0
    %625 = vmatpush1.msra.mxu0 0.0
    %626 = vmatprep.subr.mxu0 0.0
    %627 = vmatpush1.msra.mxu0 0.0
    %628 = vmatprep.subr.mxu0 0.0
    %629 = vmatpush1.msra.mxu0 0.0
    %630 = vmatprep.subr.mxu0 0.0
    %631 = vmatpush1.msra.mxu0 0.0
    %632 = vmatprep.subr.mxu0 0.0
    %633 = vmatpush1.msra.mxu0 0.0
    %634 = vmatprep.subr.mxu0 0.0
    %635 = vmatpush1.msra.mxu0 0.0
    %636 = vmatprep.subr.mxu0 0.0
    %637 = vmatpush1.msra.mxu0 0.0
    %638 = vmatprep.subr.mxu0 0.0
    %639 = vmatpush1.msra.mxu0 %v441
    %640 = vmatprep.subr.mxu0 0.0
    %641 = vmatpush1.msra.mxu0 %v440
    %642 = vmatprep.subr.mxu0 0.0
    %643 = vmatpush1.msra.mxu0 %v439
    %644 = vmatprep.subr.mxu0 0.0
    %645 = vmatpush1.msra.mxu0 %v438
    %646 = vmatprep.subr.mxu0 0.0
    %647 = vmatpush2.msra.mxu0 0.0
    %648 = vmatprep.subr.mxu0 0.0
    %649 = vmatpush2.msra.mxu0 0.0
    %650 = vmatprep.subr.mxu0 0.0
    %651 = vmatpush2.msra.mxu0 0.0
    %652 = vmatprep.subr.mxu0 0.0
    %653 = vmatpush2.msra.mxu0 0.0
    %654 = vmatprep.subr.mxu0 0.0
    %655 = vmatpush2.msra.mxu0 0.0
    %656 = vmatprep.subr.mxu0 0.0
    %657 = vmatpush2.msra.mxu0 0.0
    %658 = vmatprep.subr.mxu0 0.0
    %659 = vmatpush2.msra.mxu0 0.0
    %660 = vmatprep.subr.mxu0 0.0
    %661 = vmatpush2.msra.mxu0 0.0
    %662 = vmatprep.subr.mxu0 0.0
    %663 = vmatpush2.msra.mxu0 0.0
    %664 = vmatprep.subr.mxu0 0.0
    %665 = vmatpush2.msra.mxu0 0.0
    %666 = vmatprep.subr.mxu0 0.0
    %667 = vmatpush2.msra.mxu0 0.0
    %668 = vmatprep.subr.mxu0 0.0
    %669 = vmatpush2.msra.mxu0 0.0
    %670 = vmatprep.subr.mxu0 0.0
    %671 = vmatpush2.msra.mxu0 0.0
    %672 = vmatprep.subr.mxu0 0.0
    %673 = vmatpush2.msra.mxu0 0.0
    %674 = vmatprep.subr.mxu0 0.0
    %675 = vmatpush2.msra.mxu0 0.0
    %676 = vmatprep.subr.mxu0 0.0
    %677 = vmatpush2.msra.mxu0 0.0
    %678 = vmatprep.mubr.f32.mxu0 0.0
    %679 = vmatmul.mubr.f32.gmra.mxu0 %v612
    %v680 = vpop.f32.mrf.mxu0
    %v681 = vadd.f32 %v442, %v680
    %v682 = vpop.f32.mrf.mxu0
    %683 = vdwg.mxu0
    %v685 = vlaneseq
    %v686 = vshrl.u32 %v685, 7
    %v687 = vsub.s32 0, %v686
    %v688 = vrot.slane %v443, %v687
    %689 = vrot.lane.b32.xlu0 %v688, 32
    %v690 = vpop.permute.xlu0 %689
    %v692 = vadd.f32 %v515, %v690
    %694 = vrot.lane.b32.xlu0 %v692, 96
    %v695 = vpop.permute.xlu0 %694
    %v697 = vadd.f32 %v681, %v695
    %v698 = vxor.u32 %v697, 2147483648
    %v699 = vmul.f32 %v698, 1.442695
    %v700 = vpow.pop %v699
    %v701 = vadd.f32 %v700, 1.0
    %v702 = vrcp.pop %v701
    %v703 = vmul.f32 1.0, %v702
    %704 = vrot.lane.b32.xlu0 %v692, 32
    %v705 = vpop.permute.xlu0 %704
    %v707 = vmul.f32 %v703, %v705
    %709 = vrot.lane.b32.xlu0 %v707, 64
    %v710 = vpop.permute.xlu0 %709
    %v712 = vadd.f32 %v681, %v710
    %v713 = vtanh.pop %v712
    %v714 = vsub.f32 1.0, %v703
    %716 = vrot.lane.b32.xlu0 %v713, 96
    %v717 = vpop.permute.xlu0 %716
    %v719 = vmul.f32 %v714, %v717
    %v720 = vlaneseq
    %v721 = vshrl.u32 %v720, 7
    %v722 = vsub.s32 0, %v721
    %v723 = vrot.slane %v444, %v722
    %724 = vrot.lane.b32.xlu0 %v723, 32
    %v725 = vpop.permute.xlu0 %724
    %v727 = vmul.f32 %v703, %v725
    %v728 = vadd.f32 %v719, %v727
    %730 = vrot.lane.b32.xlu0 %v728, 96
    %v731 = vpop.permute.xlu0 %730
    %v732 = vsel %vm192, %v731, 0
    %734 = vmatprep.subr.mxu0 0.0
    %735 = vmatpush1.msra.mxu0 0.0
    %736 = vmatprep.subr.mxu0 0.0
    %737 = vmatpush1.msra.mxu0 0.0
    %738 = vmatprep.subr.mxu0 0.0
    %739 = vmatpush1.msra.mxu0 0.0
    %740 = vmatprep.subr.mxu0 0.0
    %741 = vmatpush1.msra.mxu0 0.0
    %742 = vmatprep.subr.mxu0 0.0
    %743 = vmatpush1.msra.mxu0 0.0
    %744 = vmatprep.subr.mxu0 0.0
    %745 = vmatpush1.msra.mxu0 0.0
    %746 = vmatprep.subr.mxu0 0.0
    %747 = vmatpush1.msra.mxu0 0.0
    %748 = vmatprep.subr.mxu0 0.0
    %749 = vmatpush1.msra.mxu0 0.0
    %750 = vmatprep.subr.mxu0 0.0
    %751 = vmatpush1.msra.mxu0 0.0
    %752 = vmatprep.subr.mxu0 0.0
    %753 = vmatpush1.msra.mxu0 0.0
    %754 = vmatprep.subr.mxu0 0.0
    %755 = vmatpush1.msra.mxu0 0.0
    %756 = vmatprep.subr.mxu0 0.0
    %757 = vmatpush1.msra.mxu0 0.0
    %758 = vmatprep.subr.mxu0 0.0
    %759 = vmatpush1.msra.mxu0 %v437
    %760 = vmatprep.subr.mxu0 0.0
    %761 = vmatpush1.msra.mxu0 %v436
    %762 = vmatprep.subr.mxu0 0.0
    %763 = vmatpush1.msra.mxu0 %v435
    %764 = vmatprep.subr.mxu0 0.0
    %765 = vmatpush1.msra.mxu0 %v434
    %766 = vmatprep.subr.mxu0 0.0
    %767 = vmatpush2.msra.mxu0 0.0
    %768 = vmatprep.subr.mxu0 0.0
    %769 = vmatpush2.msra.mxu0 0.0
    %770 = vmatprep.subr.mxu0 0.0
    %771 = vmatpush2.msra.mxu0 0.0
    %772 = vmatprep.subr.mxu0 0.0
    %773 = vmatpush2.msra.mxu0 0.0
    %774 = vmatprep.subr.mxu0 0.0
    %775 = vmatpush2.msra.mxu0 0.0
    %776 = vmatprep.subr.mxu0 0.0
    %777 = vmatpush2.msra.mxu0 0.0
    %778 = vmatprep.subr.mxu0 0.0
    %779 = vmatpush2.msra.mxu0 0.0
    %780 = vmatprep.subr.mxu0 0.0
    %781 = vmatpush2.msra.mxu0 0.0
    %782 = vmatprep.subr.mxu0 0.0
    %783 = vmatpush2.msra.mxu0 0.0
    %784 = vmatprep.subr.mxu0 0.0
    %785 = vmatpush2.msra.mxu0 0.0
    %786 = vmatprep.subr.mxu0 0.0
    %787 = vmatpush2.msra.mxu0 0.0
    %788 = vmatprep.subr.mxu0 0.0
    %789 = vmatpush2.msra.mxu0 0.0
    %790 = vmatprep.subr.mxu0 0.0
    %791 = vmatpush2.msra.mxu0 0.0
    %792 = vmatprep.subr.mxu0 0.0
    %793 = vmatpush2.msra.mxu0 0.0
    %794 = vmatprep.subr.mxu0 0.0
    %795 = vmatpush2.msra.mxu0 0.0
    %796 = vmatprep.subr.mxu0 0.0
    %797 = vmatpush2.msra.mxu0 0.0
    %798 = vmatprep.mubr.f32.mxu0 0.0
    %799 = vmatmul.mubr.f32.gmra.mxu0 %v732
    %v800 = vpop.f32.mrf.mxu0
    %v801 = vadd.f32 0.0, %v800
    %v802 = vpop.f32.mrf.mxu0
    %803 = vdwg.mxu0
    %v805 = vrot.slane %v801, 7
    %v807 = vadd.f32 %v263, %v805
    %vm808 = vcmask 91137
    %v809 = vsel %vm808, %v807, -inf
    %810 = vmax.xlane.f32.xlu0 %v809
    %v811 = vpop.xlane.xlu0 %810
    %v812 = vsub.f32 %v807, %v811
    %v813 = vmul.f32 %v812, 1.442695
    %v814 = vpow.pop %v813
    %v815 = vsel %vm808, %v814, 0.0
    %816 = vadd.xlane.f32.xlu0 %v815
    %v817 = vpop.xlane.xlu0 %816
    %v818 = vrcp.pop %v817
    %v819 = vmul.f32 %v814, %v818
    %v821 = vrot.slane %v819, 1
    %v822 = vsel %vm531, %v821, 0
    %824 = vmatprep.subr.mxu0 0.0
    %825 = vmatpush1.msra.mxu0 0.0
    %826 = vmatprep.subr.mxu0 0.0
    %827 = vmatpush1.msra.mxu0 0.0
    %828 = vmatprep.subr.mxu0 0.0
    %829 = vmatpush1.msra.mxu0 0.0
    %830 = vmatprep.subr.mxu0 0.0
    %831 = vmatpush1.msra.mxu0 0.0
    %832 = vmatprep.subr.mxu0 0.0
    %833 = vmatpush1.msra.mxu0 0.0
    %834 = vmatprep.subr.mxu0 0.0
    %835 = vmatpush1.msra.mxu0 0.0
    %836 = vmatprep.subr.mxu0 0.0
    %837 = vmatpush1.msra.mxu0 0.0
    %838 = vmatprep.subr.mxu0 0.0
    %839 = vmatpush1.msra.mxu0 0.0
    %840 = vmatprep.subr.mxu0 0.0
    %841 = vmatpush1.msra.mxu0 0.0
    %842 = vmatprep.subr.mxu0 0.0
    %843 = vmatpush1.msra.mxu0 0.0
    %844 = vmatprep.subr.mxu0 0.0
    %845 = vmatpush1.msra.mxu0 0.0
    %846 = vmatprep.subr.mxu0 0.0
    %847 = vmatpush1.msra.mxu0 0.0
    %848 = vmatprep.subr.mxu0 0.0
    %849 = vmatpush1.msra.mxu0 0.0
    %850 = vmatprep.subr.mxu0 0.0
    %851 = vmatpush1.msra.mxu0 0.0
    %852 = vmatprep.subr.mxu0 0.0
    %853 = vmatpush1.msra.mxu0 %v537
    %854 = vmatprep.subr.mxu0 0.0
    %855 = vmatpush1.msra.mxu0 %v426
    %856 = vmatprep.subr.mxu0 0.0
    %857 = vmatpush2.msra.mxu0 0.0
    %858 = vmatprep.subr.mxu0 0.0
    %859 = vmatpush2.msra.mxu0 0.0
    %860 = vmatprep.subr.mxu0 0.0
    %861 = vmatpush2.msra.mxu0 0.0
    %862 = vmatprep.subr.mxu0 0.0
    %863 = vmatpush2.msra.mxu0 0.0
    %864 = vmatprep.subr.mxu0 0.0
    %865 = vmatpush2.msra.mxu0 0.0
    %866 = vmatprep.subr.mxu0 0.0
    %867 = vmatpush2.msra.mxu0 0.0
    %868 = vmatprep.subr.mxu0 0.0
    %869 = vmatpush2.msra.mxu0 0.0
    %870 = vmatprep.subr.mxu0 0.0
    %871 = vmatpush2.msra.mxu0 0.0
    %872 = vmatprep.subr.mxu0 0.0
    %873 = vmatpush2.msra.mxu0 0.0
    %874 = vmatprep.subr.mxu0 0.0
    %875 = vmatpush2.msra.mxu0 0.0
    %876 = vmatprep.subr.mxu0 0.0
    %877 = vmatpush2.msra.mxu0 0.0
    %878 = vmatprep.subr.mxu0 0.0
    %879 = vmatpush2.msra.mxu0 0.0
    %880 = vmatprep.subr.mxu0 0.0
    %881 = vmatpush2.msra.mxu0 0.0
    %882 = vmatprep.subr.mxu0 0.0
    %883 = vmatpush2.msra.mxu0 0.0
    %884 = vmatprep.subr.mxu0 0.0
    %885 = vmatpush2.msra.mxu0 0.0
    %886 = vmatprep.subr.mxu0 0.0
    %887 = vmatpush2.msra.mxu0 0.0
    %888 = vmatprep.mubr.f32.mxu0 0.0
    %889 = vmatmul.mubr.f32.gmra.mxu0 %v822
    %v890 = vpop.f32.mrf.mxu0
    %v891 = vadd.f32 0.0, %v890
    %v892 = vpop.f32.mrf.mxu0
    %893 = vdwg.mxu0
    %v895 = vrot.slane %v891, 7
    %v897 = vadd.f32 %v344, %v895
    %v898 = vmax.f32 %v897, 0.0
    %v900 = vrot.slane %v898, 1
    %v901 = vsel %vm192, %v900, 0
    %903 = vmatprep.subr.mxu0 0.0
    %904 = vmatpush1.msra.mxu0 0.0
    %905 = vmatprep.subr.mxu0 0.0
    %906 = vmatpush1.msra.mxu0 0.0
    %907 = vmatprep.subr.mxu0 0.0
    %908 = vmatpush1.msra.mxu0 0.0
    %909 = vmatprep.subr.mxu0 0.0
    %910 = vmatpush1.msra.mxu0 0.0
    %911 = vmatprep.subr.mxu0 0.0
    %912 = vmatpush1.msra.mxu0 0.0
    %913 = vmatprep.subr.mxu0 0.0
    %914 = vmatpush1.msra.mxu0 0.0
    %915 = vmatprep.subr.mxu0 0.0
    %916 = vmatpush1.msra.mxu0 0.0
    %917 = vmatprep.subr.mxu0 0.0
    %918 = vmatpush1.msra.mxu0 0.0
    %919 = vmatprep.subr.mxu0 0.0
    %920 = vmatpush1.msra.mxu0 0.0
    %921 = vmatprep.subr.mxu0 0.0
    %922 = vmatpush1.msra.mxu0 0.0
    %923 = vmatprep.subr.mxu0 0.0
    %924 = vmatpush1.msra.mxu0 0.0
    %925 = vmatprep.subr.mxu0 0.0
    %926 = vmatpush1.msra.mxu0 0.0
    %927 = vmatprep.subr.mxu0 0.0
    %928 = vmatpush1.msra.mxu0 %v441
    %929 = vmatprep.subr.mxu0 0.0
    %930 = vmatpush1.msra.mxu0 %v440
    %931 = vmatprep.subr.mxu0 0.0
    %932 = vmatpush1.msra.mxu0 %v439
    %933 = vmatprep.subr.mxu0 0.0
    %934 = vmatpush1.msra.mxu0 %v438
    %935 = vmatprep.subr.mxu0 0.0
    %936 = vmatpush2.msra.mxu0 0.0
    %937 = vmatprep.subr.mxu0 0.0
    %938 = vmatpush2.msra.mxu0 0.0
    %939 = vmatprep.subr.mxu0 0.0
    %940 = vmatpush2.msra.mxu0 0.0
    %941 = vmatprep.subr.mxu0 0.0
    %942 = vmatpush2.msra.mxu0 0.0
    %943 = vmatprep.subr.mxu0 0.0
    %944 = vmatpush2.msra.mxu0 0.0
    %945 = vmatprep.subr.mxu0 0.0
    %946 = vmatpush2.msra.mxu0 0.0
    %947 = vmatprep.subr.mxu0 0.0
    %948 = vmatpush2.msra.mxu0 0.0
    %949 = vmatprep.subr.mxu0 0.0
    %950 = vmatpush2.msra.mxu0 0.0
    %951 = vmatprep.subr.mxu0 0.0
    %952 = vmatpush2.msra.mxu0 0.0
    %953 = vmatprep.subr.mxu0 0.0
    %954 = vmatpush2.msra.mxu0 0.0
    %955 = vmatprep.subr.mxu0 0.0
    %956 = vmatpush2.msra.mxu0 0.0
    %957 = vmatprep.subr.mxu0 0.0
    %958 = vmatpush2.msra.mxu0 0.0
    %959 = vmatprep.subr.mxu0 0.0
    %960 = vmatpush2.msra.mxu0 0.0
    %961 = vmatprep.subr.mxu0 0.0
    %962 = vmatpush2.msra.mxu0 0.0
    %963 = vmatprep.subr.mxu0 0.0
    %964 = vmatpush2.msra.mxu0 0.0
    %965 = vmatprep.subr.mxu0 0.0
    %966 = vmatpush2.msra.mxu0 0.0
    %967 = vmatprep.mubr.f32.mxu0 0.0
    %968 = vmatmul.mubr.f32.gmra.mxu0 %v901
    %v969 = vpop.f32.mrf.mxu0
    %v970 = vadd.f32 %v442, %v969
    %v971 = vpop.f32.mrf.mxu0
    %972 = vdwg.mxu0
    %v973 = vadd.f32 %v801, %v690
    %975 = vrot.lane.b32.xlu0 %v973, 96
    %v976 = vpop.permute.xlu0 %975
    %v978 = vadd.f32 %v970, %v976
    %v979 = vxor.u32 %v978, 2147483648
    %v980 = vmul.f32 %v979, 1.442695
    %v981 = vpow.pop %v980
    %v982 = vadd.f32 %v981, 1.0
    %v983 = vrcp.pop %v982
    %v984 = vmul.f32 1.0, %v983
    %985 = vrot.lane.b32.xlu0 %v973, 32
    %v986 = vpop.permute.xlu0 %985
    %v988 = vmul.f32 %v984, %v986
    %990 = vrot.lane.b32.xlu0 %v988, 64
    %v991 = vpop.permute.xlu0 %990
    %v993 = vadd.f32 %v970, %v991
    %v994 = vtanh.pop %v993
    %v995 = vsub.f32 1.0, %v984
    %997 = vrot.lane.b32.xlu0 %v994, 96
    %v998 = vpop.permute.xlu0 %997
    %v1000 = vmul.f32 %v995, %v998
    %v1001 = vmul.f32 %v984, %v728
    %v1002 = vadd.f32 %v1000, %v1001
    %1004 = vrot.lane.b32.xlu0 %v1002, 96
    %v1005 = vpop.permute.xlu0 %1004
    %v1006 = vsel %vm192, %v1005, 0
    %1008 = vmatprep.subr.mxu0 0.0
    %1009 = vmatpush1.msra.mxu0 0.0
    %1010 = vmatprep.subr.mxu0 0.0
    %1011 = vmatpush1.msra.mxu0 0.0
    %1012 = vmatprep.subr.mxu0 0.0
    %1013 = vmatpush1.msra.mxu0 0.0
    %1014 = vmatprep.subr.mxu0 0.0
    %1015 = vmatpush1.msra.mxu0 0.0
    %1016 = vmatprep.subr.mxu0 0.0
    %1017 = vmatpush1.msra.mxu0 0.0
    %1018 = vmatprep.subr.mxu0 0.0
    %1019 = vmatpush1.msra.mxu0 0.0
    %1020 = vmatprep.subr.mxu0 0.0
    %1021 = vmatpush1.msra.mxu0 0.0
    %1022 = vmatprep.subr.mxu0 0.0
    %1023 = vmatpush1.msra.mxu0 0.0
    %1024 = vmatprep.subr.mxu0 0.0
    %1025 = vmatpush1.msra.mxu0 0.0
    %1026 = vmatprep.subr.mxu0 0.0
    %1027 = vmatpush1.msra.mxu0 0.0
    %1028 = vmatprep.subr.mxu0 0.0
    %1029 = vmatpush1.msra.mxu0 0.0
    %1030 = vmatprep.subr.mxu0 0.0
    %1031 = vmatpush1.msra.mxu0 0.0
    %1032 = vmatprep.subr.mxu0 0.0
    %1033 = vmatpush1.msra.mxu0 %v437
    %1034 = vmatprep.subr.mxu0 0.0
    %1035 = vmatpush1.msra.mxu0 %v436
    %1036 = vmatprep.subr.mxu0 0.0
    %1037 = vmatpush1.msra.mxu0 %v435
    %1038 = vmatprep.subr.mxu0 0.0
    %1039 = vmatpush1.msra.mxu0 %v434
    %1040 = vmatprep.subr.mxu0 0.0
    %1041 = vmatpush2.msra.mxu0 0.0
    %1042 = vmatprep.subr.mxu0 0.0
    %1043 = vmatpush2.msra.mxu0 0.0
    %1044 = vmatprep.subr.mxu0 0.0
    %1045 = vmatpush2.msra.mxu0 0.0
    %1046 = vmatprep.subr.mxu0 0.0
    %1047 = vmatpush2.msra.mxu0 0.0
    %1048 = vmatprep.subr.mxu0 0.0
    %1049 = vmatpush2.msra.mxu0 0.0
    %1050 = vmatprep.subr.mxu0 0.0
    %1051 = vmatpush2.msra.mxu0 0.0
    %1052 = vmatprep.subr.mxu0 0.0
    %1053 = vmatpush2.msra.mxu0 0.0
    %1054 = vmatprep.subr.mxu0 0.0
    %1055 = vmatpush2.msra.mxu0 0.0
    %1056 = vmatprep.subr.mxu0 0.0
    %1057 = vmatpush2.msra.mxu0 0.0
    %1058 = vmatprep.subr.mxu0 0.0
    %1059 = vmatpush2.msra.mxu0 0.0
    %1060 = vmatprep.subr.mxu0 0.0
    %1061 = vmatpush2.msra.mxu0 0.0
    %1062 = vmatprep.subr.mxu0 0.0
    %1063 = vmatpush2.msra.mxu0 0.0
    %1064 = vmatprep.subr.mxu0 0.0
    %1065 = vmatpush2.msra.mxu0 0.0
    %1066 = vmatprep.subr.mxu0 0.0
    %1067 = vmatpush2.msra.mxu0 0.0
    %1068 = vmatprep.subr.mxu0 0.0
    %1069 = vmatpush2.msra.mxu0 0.0
    %1070 = vmatprep.subr.mxu0 0.0
    %1071 = vmatpush2.msra.mxu0 0.0
    %1072 = vmatprep.mubr.f32.mxu0 0.0
    %1073 = vmatmul.mubr.f32.gmra.mxu0 %v1006
    %v1074 = vpop.f32.mrf.mxu0
    %v1075 = vadd.f32 0.0, %v1074
    %v1076 = vpop.f32.mrf.mxu0
    %1077 = vdwg.mxu0
    %v1079 = vrot.slane %v1075, 6
    %v1081 = vadd.f32 %v263, %v1079
    %vm1082 = vcmask 92162
    %v1083 = vsel %vm1082, %v1081, -inf
    %1084 = vmax.xlane.f32.xlu0 %v1083
    %v1085 = vpop.xlane.xlu0 %1084
    %v1086 = vsub.f32 %v1081, %v1085
    %v1087 = vmul.f32 %v1086, 1.442695
    %v1088 = vpow.pop %v1087
    %v1089 = vsel %vm1082, %v1088, 0.0
    %1090 = vadd.xlane.f32.xlu0 %v1089
    %v1091 = vpop.xlane.xlu0 %1090
    %v1092 = vrcp.pop %v1091
    %v1093 = vmul.f32 %v1088, %v1092
    %v1095 = vrot.slane %v1093, 2
    %v1096 = vsel %vm531, %v1095, 0
    %1098 = vmatprep.subr.mxu0 0.0
    %1099 = vmatpush1.msra.mxu0 0.0
    %1100 = vmatprep.subr.mxu0 0.0
    %1101 = vmatpush1.msra.mxu0 0.0
    %1102 = vmatprep.subr.mxu0 0.0
    %1103 = vmatpush1.msra.mxu0 0.0
    %1104 = vmatprep.subr.mxu0 0.0
    %1105 = vmatpush1.msra.mxu0 0.0
    %1106 = vmatprep.subr.mxu0 0.0
    %1107 = vmatpush1.msra.mxu0 0.0
    %1108 = vmatprep.subr.mxu0 0.0
    %1109 = vmatpush1.msra.mxu0 0.0
    %1110 = vmatprep.subr.mxu0 0.0
    %1111 = vmatpush1.msra.mxu0 0.0
    %1112 = vmatprep.subr.mxu0 0.0
    %1113 = vmatpush1.msra.mxu0 0.0
    %1114 = vmatprep.subr.mxu0 0.0
    %1115 = vmatpush1.msra.mxu0 0.0
    %1116 = vmatprep.subr.mxu0 0.0
    %1117 = vmatpush1.msra.mxu0 0.0
    %1118 = vmatprep.subr.mxu0 0.0
    %1119 = vmatpush1.msra.mxu0 0.0
    %1120 = vmatprep.subr.mxu0 0.0
    %1121 = vmatpush1.msra.mxu0 0.0
    %1122 = vmatprep.subr.mxu0 0.0
    %1123 = vmatpush1.msra.mxu0 0.0
    %1124 = vmatprep.subr.mxu0 0.0
    %1125 = vmatpush1.msra.mxu0 0.0
    %1126 = vmatprep.subr.mxu0 0.0
    %1127 = vmatpush1.msra.mxu0 %v537
    %1128 = vmatprep.subr.mxu0 0.0
    %1129 = vmatpush1.msra.mxu0 %v426
    %1130 = vmatprep.subr.mxu0 0.0
    %1131 = vmatpush2.msra.mxu0 0.0
    %1132 = vmatprep.subr.mxu0 0.0
    %1133 = vmatpush2.msra.mxu0 0.0
    %1134 = vmatprep.subr.mxu0 0.0
    %1135 = vmatpush2.msra.mxu0 0.0
    %1136 = vmatprep.subr.mxu0 0.0
    %1137 = vmatpush2.msra.mxu0 0.0
    %1138 = vmatprep.subr.mxu0 0.0
    %1139 = vmatpush2.msra.mxu0 0.0
    %1140 = vmatprep.subr.mxu0 0.0
    %1141 = vmatpush2.msra.mxu0 0.0
    %1142 = vmatprep.subr.mxu0 0.0
    %1143 = vmatpush2.msra.mxu0 0.0
    %1144 = vmatprep.subr.mxu0 0.0
    %1145 = vmatpush2.msra.mxu0 0.0
    %1146 = vmatprep.subr.mxu0 0.0
    %1147 = vmatpush2.msra.mxu0 0.0
    %1148 = vmatprep.subr.mxu0 0.0
    %1149 = vmatpush2.msra.mxu0 0.0
    %1150 = vmatprep.subr.mxu0 0.0
    %1151 = vmatpush2.msra.mxu0 0.0
    %1152 = vmatprep.subr.mxu0 0.0
    %1153 = vmatpush2.msra.mxu0 0.0
    %1154 = vmatprep.subr.mxu0 0.0
    %1155 = vmatpush2.msra.mxu0 0.0
    %1156 = vmatprep.subr.mxu0 0.0
    %1157 = vmatpush2.msra.mxu0 0.0
    %1158 = vmatprep.subr.mxu0 0.0
    %1159 = vmatpush2.msra.mxu0 0.0
    %1160 = vmatprep.subr.mxu0 0.0
    %1161 = vmatpush2.msra.mxu0 0.0
    %1162 = vmatprep.mubr.f32.mxu0 0.0
    %1163 = vmatmul.mubr.f32.gmra.mxu0 %v1096
    %v1164 = vpop.f32.mrf.mxu0
    %v1165 = vadd.f32 0.0, %v1164
    %v1166 = vpop.f32.mrf.mxu0
    %1167 = vdwg.mxu0
    %v1169 = vrot.slane %v1165, 6
    %v1171 = vadd.f32 %v344, %v1169
    %v1172 = vmax.f32 %v1171, 0.0
    %v1174 = vrot.slane %v1172, 2
    %v1175 = vsel %vm192, %v1174, 0
    %1177 = vmatprep.subr.mxu0 0.0
    %1178 = vmatpush1.msra.mxu0 0.0
    %1179 = vmatprep.subr.mxu0 0.0
    %1180 = vmatpush1.msra.mxu0 0.0
    %1181 = vmatprep.subr.mxu0 0.0
    %1182 = vmatpush1.msra.mxu0 0.0
    %1183 = vmatprep.subr.mxu0 0.0
    %1184 = vmatpush1.msra.mxu0 0.0
    %1185 = vmatprep.subr.mxu0 0.0
    %1186 = vmatpush1.msra.mxu0 0.0
    %1187 = vmatprep.subr.mxu0 0.0
    %1188 = vmatpush1.msra.mxu0 0.0
    %1189 = vmatprep.subr.mxu0 0.0
    %1190 = vmatpush1.msra.mxu0 0.0
    %1191 = vmatprep.subr.mxu0 0.0
    %1192 = vmatpush1.msra.mxu0 0.0
    %1193 = vmatprep.subr.mxu0 0.0
    %1194 = vmatpush1.msra.mxu0 0.0
    %1195 = vmatprep.subr.mxu0 0.0
    %1196 = vmatpush1.msra.mxu0 0.0
    %1197 = vmatprep.subr.mxu0 0.0
    %1198 = vmatpush1.msra.mxu0 0.0
    %1199 = vmatprep.subr.mxu0 0.0
    %1200 = vmatpush1.msra.mxu0 0.0
    %1201 = vmatprep.subr.mxu0 0.0
    %1202 = vmatpush1.msra.mxu0 %v441
    %1203 = vmatprep.subr.mxu0 0.0
    %1204 = vmatpush1.msra.mxu0 %v440
    %1205 = vmatprep.subr.mxu0 0.0
    %1206 = vmatpush1.msra.mxu0 %v439
    %1207 = vmatprep.subr.mxu0 0.0
    %1208 = vmatpush1.msra.mxu0 %v438
    %1209 = vmatprep.subr.mxu0 0.0
    %1210 = vmatpush2.msra.mxu0 0.0
    %1211 = vmatprep.subr.mxu0 0.0
    %1212 = vmatpush2.msra.mxu0 0.0
    %1213 = vmatprep.subr.mxu0 0.0
    %1214 = vmatpush2.msra.mxu0 0.0
    %1215 = vmatprep.subr.mxu0 0.0
    %1216 = vmatpush2.msra.mxu0 0.0
    %1217 = vmatprep.subr.mxu0 0.0
    %1218 = vmatpush2.msra.mxu0 0.0
    %1219 = vmatprep.subr.mxu0 0.0
    %1220 = vmatpush2.msra.mxu0 0.0
    %1221 = vmatprep.subr.mxu0 0.0
    %1222 = vmatpush2.msra.mxu0 0.0
    %1223 = vmatprep.subr.mxu0 0.0
    %1224 = vmatpush2.msra.mxu0 0.0
    %1225 = vmatprep.subr.mxu0 0.0
    %1226 = vmatpush2.msra.mxu0 0.0
    %1227 = vmatprep.subr.mxu0 0.0
    %1228 = vmatpush2.msra.mxu0 0.0
    %1229 = vmatprep.subr.mxu0 0.0
    %1230 = vmatpush2.msra.mxu0 0.0
    %1231 = vmatprep.subr.mxu0 0.0
    %1232 = vmatpush2.msra.mxu0 0.0
    %1233 = vmatprep.subr.mxu0 0.0
    %1234 = vmatpush2.msra.mxu0 0.0
    %1235 = vmatprep.subr.mxu0 0.0
    %1236 = vmatpush2.msra.mxu0 0.0
    %1237 = vmatprep.subr.mxu0 0.0
    %1238 = vmatpush2.msra.mxu0 0.0
    %1239 = vmatprep.subr.mxu0 0.0
    %1240 = vmatpush2.msra.mxu0 0.0
    %1241 = vmatprep.mubr.f32.mxu0 0.0
    %1242 = vmatmul.mubr.f32.gmra.mxu0 %v1175
    %v1243 = vpop.f32.mrf.mxu0
    %v1244 = vadd.f32 %v442, %v1243
    %v1245 = vpop.f32.mrf.mxu0
    %1246 = vdwg.mxu0
    %v1247 = vadd.f32 %v1075, %v690
    %1249 = vrot.lane.b32.xlu0 %v1247, 96
    %v1250 = vpop.permute.xlu0 %1249
    %v1252 = vadd.f32 %v1244, %v1250
    %v1253 = vxor.u32 %v1252, 2147483648
    %v1254 = vmul.f32 %v1253, 1.442695
    %v1255 = vpow.pop %v1254
    %v1256 = vadd.f32 %v1255, 1.0
    %v1257 = vrcp.pop %v1256
    %v1258 = vmul.f32 1.0, %v1257
    %1259 = vrot.lane.b32.xlu0 %v1247, 32
    %v1260 = vpop.permute.xlu0 %1259
    %v1262 = vmul.f32 %v1258, %v1260
    %1264 = vrot.lane.b32.xlu0 %v1262, 64
    %v1265 = vpop.permute.xlu0 %1264
    %v1267 = vadd.f32 %v1244, %v1265
    %v1268 = vtanh.pop %v1267
    %v1269 = vsub.f32 1.0, %v1258
    %1271 = vrot.lane.b32.xlu0 %v1268, 96
    %v1272 = vpop.permute.xlu0 %1271
    %v1274 = vmul.f32 %v1269, %v1272
    %v1275 = vmul.f32 %v1258, %v1002
    %v1276 = vadd.f32 %v1274, %v1275
    %1278 = vrot.lane.b32.xlu0 %v1276, 96
    %v1279 = vpop.permute.xlu0 %1278
    %v1280 = vsel %vm192, %v1279, 0
    %1282 = vmatprep.subr.mxu0 0.0
    %1283 = vmatpush1.msra.mxu0 0.0
    %1284 = vmatprep.subr.mxu0 0.0
    %1285 = vmatpush1.msra.mxu0 0.0
    %1286 = vmatprep.subr.mxu0 0.0
    %1287 = vmatpush1.msra.mxu0 0.0
    %1288 = vmatprep.subr.mxu0 0.0
    %1289 = vmatpush1.msra.mxu0 0.0
    %1290 = vmatprep.subr.mxu0 0.0
    %1291 = vmatpush1.msra.mxu0 0.0
    %1292 = vmatprep.subr.mxu0 0.0
    %1293 = vmatpush1.msra.mxu0 0.0
    %1294 = vmatprep.subr.mxu0 0.0
    %1295 = vmatpush1.msra.mxu0 0.0
    %1296 = vmatprep.subr.mxu0 0.0
    %1297 = vmatpush1.msra.mxu0 0.0
    %1298 = vmatprep.subr.mxu0 0.0
    %1299 = vmatpush1.msra.mxu0 0.0
    %1300 = vmatprep.subr.mxu0 0.0
    %1301 = vmatpush1.msra.mxu0 0.0
    %1302 = vmatprep.subr.mxu0 0.0
    %1303 = vmatpush1.msra.mxu0 0.0
    %1304 = vmatprep.subr.mxu0 0.0
    %1305 = vmatpush1.msra.mxu0 0.0
    %1306 = vmatprep.subr.mxu0 0.0
    %1307 = vmatpush1.msra.mxu0 %v437
    %1308 = vmatprep.subr.mxu0 0.0
    %1309 = vmatpush1.msra.mxu0 %v436
    %1310 = vmatprep.subr.mxu0 0.0
    %1311 = vmatpush1.msra.mxu0 %v435
    %1312 = vmatprep.subr.mxu0 0.0
    %1313 = vmatpush1.msra.mxu0 %v434
    %1314 = vmatprep.subr.mxu0 0.0
    %1315 = vmatpush2.msra.mxu0 0.0
    %1316 = vmatprep.subr.mxu0 0.0
    %1317 = vmatpush2.msra.mxu0 0.0
    %1318 = vmatprep.subr.mxu0 0.0
    %1319 = vmatpush2.msra.mxu0 0.0
    %1320 = vmatprep.subr.mxu0 0.0
    %1321 = vmatpush2.msra.mxu0 0.0
    %1322 = vmatprep.subr.mxu0 0.0
    %1323 = vmatpush2.msra.mxu0 0.0
    %1324 = vmatprep.subr.mxu0 0.0
    %1325 = vmatpush2.msra.mxu0 0.0
    %1326 = vmatprep.subr.mxu0 0.0
    %1327 = vmatpush2.msra.mxu0 0.0
    %1328 = vmatprep.subr.mxu0 0.0
    %1329 = vmatpush2.msra.mxu0 0.0
    %1330 = vmatprep.subr.mxu0 0.0
    %1331 = vmatpush2.msra.mxu0 0.0
    %1332 = vmatprep.subr.mxu0 0.0
    %1333 = vmatpush2.msra.mxu0 0.0
    %1334 = vmatprep.subr.mxu0 0.0
    %1335 = vmatpush2.msra.mxu0 0.0
    %1336 = vmatprep.subr.mxu0 0.0
    %1337 = vmatpush2.msra.mxu0 0.0
    %1338 = vmatprep.subr.mxu0 0.0
    %1339 = vmatpush2.msra.mxu0 0.0
    %1340 = vmatprep.subr.mxu0 0.0
    %1341 = vmatpush2.msra.mxu0 0.0
    %1342 = vmatprep.subr.mxu0 0.0
    %1343 = vmatpush2.msra.mxu0 0.0
    %1344 = vmatprep.subr.mxu0 0.0
    %1345 = vmatpush2.msra.mxu0 0.0
    %1346 = vmatprep.mubr.f32.mxu0 0.0
    %1347 = vmatmul.mubr.f32.gmra.mxu0 %v1280
    %v1348 = vpop.f32.mrf.mxu0
    %v1349 = vadd.f32 0.0, %v1348
    %v1350 = vpop.f32.mrf.mxu0
    %1351 = vdwg.mxu0
    %v1353 = vrot.slane %v1349, 5
    %v1355 = vadd.f32 %v263, %v1353
    %vm1356 = vcmask 93187
    %v1357 = vsel %vm1356, %v1355, -inf
    %1358 = vmax.xlane.f32.xlu0 %v1357
    %v1359 = vpop.xlane.xlu0 %1358
    %v1360 = vsub.f32 %v1355, %v1359
    %v1361 = vmul.f32 %v1360, 1.442695
    %v1362 = vpow.pop %v1361
    %v1363 = vsel %vm1356, %v1362, 0.0
    %1364 = vadd.xlane.f32.xlu0 %v1363
    %v1365 = vpop.xlane.xlu0 %1364
    %v1366 = vrcp.pop %v1365
    %v1367 = vmul.f32 %v1362, %v1366
    %v1369 = vrot.slane %v1367, 3
    %v1370 = vsel %vm531, %v1369, 0
    %1372 = vmatprep.subr.mxu0 0.0
    %1373 = vmatpush1.msra.mxu0 0.0
    %1374 = vmatprep.subr.mxu0 0.0
    %1375 = vmatpush1.msra.mxu0 0.0
    %1376 = vmatprep.subr.mxu0 0.0
    %1377 = vmatpush1.msra.mxu0 0.0
    %1378 = vmatprep.subr.mxu0 0.0
    %1379 = vmatpush1.msra.mxu0 0.0
    %1380 = vmatprep.subr.mxu0 0.0
    %1381 = vmatpush1.msra.mxu0 0.0
    %1382 = vmatprep.subr.mxu0 0.0
    %1383 = vmatpush1.msra.mxu0 0.0
    %1384 = vmatprep.subr.mxu0 0.0
    %1385 = vmatpush1.msra.mxu0 0.0
    %1386 = vmatprep.subr.mxu0 0.0
    %1387 = vmatpush1.msra.mxu0 0.0
    %1388 = vmatprep.subr.mxu0 0.0
    %1389 = vmatpush1.msra.mxu0 0.0
    %1390 = vmatprep.subr.mxu0 0.0
    %1391 = vmatpush1.msra.mxu0 0.0
    %1392 = vmatprep.subr.mxu0 0.0
    %1393 = vmatpush1.msra.mxu0 0.0
    %1394 = vmatprep.subr.mxu0 0.0
    %1395 = vmatpush1.msra.mxu0 0.0
    %1396 = vmatprep.subr.mxu0 0.0
    %1397 = vmatpush1.msra.mxu0 0.0
    %1398 = vmatprep.subr.mxu0 0.0
    %1399 = vmatpush1.msra.mxu0 0.0
    %1400 = vmatprep.subr.mxu0 0.0
    %1401 = vmatpush1.msra.mxu0 %v537
    %1402 = vmatprep.subr.mxu0 0.0
    %1403 = vmatpush1.msra.mxu0 %v426
    %1404 = vmatprep.subr.mxu0 0.0
    %1405 = vmatpush2.msra.mxu0 0.0
    %1406 = vmatprep.subr.mxu0 0.0
    %1407 = vmatpush2.msra.mxu0 0.0
    %1408 = vmatprep.subr.mxu0 0.0
    %1409 = vmatpush2.msra.mxu0 0.0
    %1410 = vmatprep.subr.mxu0 0.0
    %1411 = vmatpush2.msra.mxu0 0.0
    %1412 = vmatprep.subr.mxu0 0.0
    %1413 = vmatpush2.msra.mxu0 0.0
    %1414 = vmatprep.subr.mxu0 0.0
    %1415 = vmatpush2.msra.mxu0 0.0
    %1416 = vmatprep.subr.mxu0 0.0
    %1417 = vmatpush2.msra.mxu0 0.0
    %1418 = vmatprep.subr.mxu0 0.0
    %1419 = vmatpush2.msra.mxu0 0.0
    %1420 = vmatprep.subr.mxu0 0.0
    %1421 = vmatpush2.msra.mxu0 0.0
    %1422 = vmatprep.subr.mxu0 0.0
    %1423 = vmatpush2.msra.mxu0 0.0
    %1424 = vmatprep.subr.mxu0 0.0
    %1425 = vmatpush2.msra.mxu0 0.0
    %1426 = vmatprep.subr.mxu0 0.0
    %1427 = vmatpush2.msra.mxu0 0.0
    %1428 = vmatprep.subr.mxu0 0.0
    %1429 = vmatpush2.msra.mxu0 0.0
    %1430 = vmatprep.subr.mxu0 0.0
    %1431 = vmatpush2.msra.mxu0 0.0
    %1432 = vmatprep.subr.mxu0 0.0
    %1433 = vmatpush2.msra.mxu0 0.0
    %1434 = vmatprep.subr.mxu0 0.0
    %1435 = vmatpush2.msra.mxu0 0.0
    %1436 = vmatprep.mubr.f32.mxu0 0.0
    %1437 = vmatmul.mubr.f32.gmra.mxu0 %v1370
    %v1438 = vpop.f32.mrf.mxu0
    %v1439 = vadd.f32 0.0, %v1438
    %v1440 = vpop.f32.mrf.mxu0
    %1441 = vdwg.mxu0
    %v1443 = vrot.slane %v1439, 5
    %v1445 = vadd.f32 %v344, %v1443
    %v1446 = vmax.f32 %v1445, 0.0
    %v1448 = vrot.slane %v1446, 3
    %v1449 = vsel %vm192, %v1448, 0
    %1451 = vmatprep.subr.mxu0 0.0
    %1452 = vmatpush1.msra.mxu0 0.0
    %1453 = vmatprep.subr.mxu0 0.0
    %1454 = vmatpush1.msra.mxu0 0.0
    %1455 = vmatprep.subr.mxu0 0.0
    %1456 = vmatpush1.msra.mxu0 0.0
    %1457 = vmatprep.subr.mxu0 0.0
    %1458 = vmatpush1.msra.mxu0 0.0
    %1459 = vmatprep.subr.mxu0 0.0
    %1460 = vmatpush1.msra.mxu0 0.0
    %1461 = vmatprep.subr.mxu0 0.0
    %1462 = vmatpush1.msra.mxu0 0.0
    %1463 = vmatprep.subr.mxu0 0.0
    %1464 = vmatpush1.msra.mxu0 0.0
    %1465 = vmatprep.subr.mxu0 0.0
    %1466 = vmatpush1.msra.mxu0 0.0
    %1467 = vmatprep.subr.mxu0 0.0
    %1468 = vmatpush1.msra.mxu0 0.0
    %1469 = vmatprep.subr.mxu0 0.0
    %1470 = vmatpush1.msra.mxu0 0.0
    %1471 = vmatprep.subr.mxu0 0.0
    %1472 = vmatpush1.msra.mxu0 0.0
    %1473 = vmatprep.subr.mxu0 0.0
    %1474 = vmatpush1.msra.mxu0 0.0
    %1475 = vmatprep.subr.mxu0 0.0
    %1476 = vmatpush1.msra.mxu0 %v441
    %1477 = vmatprep.subr.mxu0 0.0
    %1478 = vmatpush1.msra.mxu0 %v440
    %1479 = vmatprep.subr.mxu0 0.0
    %1480 = vmatpush1.msra.mxu0 %v439
    %1481 = vmatprep.subr.mxu0 0.0
    %1482 = vmatpush1.msra.mxu0 %v438
    %1483 = vmatprep.subr.mxu0 0.0
    %1484 = vmatpush2.msra.mxu0 0.0
    %1485 = vmatprep.subr.mxu0 0.0
    %1486 = vmatpush2.msra.mxu0 0.0
    %1487 = vmatprep.subr.mxu0 0.0
    %1488 = vmatpush2.msra.mxu0 0.0
    %1489 = vmatprep.subr.mxu0 0.0
    %1490 = vmatpush2.msra.mxu0 0.0
    %1491 = vmatprep.subr.mxu0 0.0
    %1492 = vmatpush2.msra.mxu0 0.0
    %1493 = vmatprep.subr.mxu0 0.0
    %1494 = vmatpush2.msra.mxu0 0.0
    %1495 = vmatprep.subr.mxu0 0.0
    %1496 = vmatpush2.msra.mxu0 0.0
    %1497 = vmatprep.subr.mxu0 0.0
    %1498 = vmatpush2.msra.mxu0 0.0
    %1499 = vmatprep.subr.mxu0 0.0
    %1500 = vmatpush2.msra.mxu0 0.0
    %1501 = vmatprep.subr.mxu0 0.0
    %1502 = vmatpush2.msra.mxu0 0.0
    %1503 = vmatprep.subr.mxu0 0.0
    %1504 = vmatpush2.msra.mxu0 0.0
    %1505 = vmatprep.subr.mxu0 0.0
    %1506 = vmatpush2.msra.mxu0 0.0
    %1507 = vmatprep.subr.mxu0 0.0
    %1508 = vmatpush2.msra.mxu0 0.0
    %1509 = vmatprep.subr.mxu0 0.0
    %1510 = vmatpush2.msra.mxu0 0.0
    %1511 = vmatprep.subr.mxu0 0.0
    %1512 = vmatpush2.msra.mxu0 0.0
    %1513 = vmatprep.subr.mxu0 0.0
    %1514 = vmatpush2.msra.mxu0 0.0
    %1515 = vmatprep.mubr.f32.mxu0 0.0
    %1516 = vmatmul.mubr.f32.gmra.mxu0 %v1449
    %v1517 = vpop.f32.mrf.mxu0
    %v1518 = vadd.f32 %v442, %v1517
    %v1519 = vpop.f32.mrf.mxu0
    %1520 = vdwg.mxu0
    %v1521 = vadd.f32 %v1349, %v690
    %1523 = vrot.lane.b32.xlu0 %v1521, 96
    %v1524 = vpop.permute.xlu0 %1523
    %v1526 = vadd.f32 %v1518, %v1524
    %v1527 = vxor.u32 %v1526, 2147483648
    %v1528 = vmul.f32 %v1527, 1.442695
    %v1529 = vpow.pop %v1528
    %v1530 = vadd.f32 %v1529, 1.0
    %v1531 = vrcp.pop %v1530
    %v1532 = vmul.f32 1.0, %v1531
    %1533 = vrot.lane.b32.xlu0 %v1521, 32
    %v1534 = vpop.permute.xlu0 %1533
    %v1536 = vmul.f32 %v1532, %v1534
    %1538 = vrot.lane.b32.xlu0 %v1536, 64
    %v1539 = vpop.permute.xlu0 %1538
    %v1541 = vadd.f32 %v1518, %v1539
    %v1542 = vtanh.pop %v1541
    %v1543 = vsub.f32 1.0, %v1532
    %1545 = vrot.lane.b32.xlu0 %v1542, 96
    %v1546 = vpop.permute.xlu0 %1545
    %v1548 = vmul.f32 %v1543, %v1546
    %v1549 = vmul.f32 %v1532, %v1276
    %v1550 = vadd.f32 %v1548, %v1549
    %1552 = vrot.lane.b32.xlu0 %v1550, 96
    %v1553 = vpop.permute.xlu0 %1552
    %v1554 = vsel %vm192, %v1553, 0
    %1556 = vmatprep.subr.mxu0 0.0
    %1557 = vmatpush1.msra.mxu0 0.0
    %1558 = vmatprep.subr.mxu0 0.0
    %1559 = vmatpush1.msra.mxu0 0.0
    %1560 = vmatprep.subr.mxu0 0.0
    %1561 = vmatpush1.msra.mxu0 0.0
    %1562 = vmatprep.subr.mxu0 0.0
    %1563 = vmatpush1.msra.mxu0 0.0
    %1564 = vmatprep.subr.mxu0 0.0
    %1565 = vmatpush1.msra.mxu0 0.0
    %1566 = vmatprep.subr.mxu0 0.0
    %1567 = vmatpush1.msra.mxu0 0.0
    %1568 = vmatprep.subr.mxu0 0.0
    %1569 = vmatpush1.msra.mxu0 0.0
    %1570 = vmatprep.subr.mxu0 0.0
    %1571 = vmatpush1.msra.mxu0 0.0
    %1572 = vmatprep.subr.mxu0 0.0
    %1573 = vmatpush1.msra.mxu0 0.0
    %1574 = vmatprep.subr.mxu0 0.0
    %1575 = vmatpush1.msra.mxu0 0.0
    %1576 = vmatprep.subr.mxu0 0.0
    %1577 = vmatpush1.msra.mxu0 0.0
    %1578 = vmatprep.subr.mxu0 0.0
    %1579 = vmatpush1.msra.mxu0 0.0
    %1580 = vmatprep.subr.mxu0 0.0
    %1581 = vmatpush1.msra.mxu0 %v437
    %1582 = vmatprep.subr.mxu0 0.0
    %1583 = vmatpush1.msra.mxu0 %v436
    %1584 = vmatprep.subr.mxu0 0.0
    %1585 = vmatpush1.msra.mxu0 %v435
    %1586 = vmatprep.subr.mxu0 0.0
    %1587 = vmatpush1.msra.mxu0 %v434
    %1588 = vmatprep.subr.mxu0 0.0
    %1589 = vmatpush2.msra.mxu0 0.0
    %1590 = vmatprep.subr.mxu0 0.0
    %1591 = vmatpush2.msra.mxu0 0.0
    %1592 = vmatprep.subr.mxu0 0.0
    %1593 = vmatpush2.msra.mxu0 0.0
    %1594 = vmatprep.subr.mxu0 0.0
    %1595 = vmatpush2.msra.mxu0 0.0
    %1596 = vmatprep.subr.mxu0 0.0
    %1597 = vmatpush2.msra.mxu0 0.0
    %1598 = vmatprep.subr.mxu0 0.0
    %1599 = vmatpush2.msra.mxu0 0.0
    %1600 = vmatprep.subr.mxu0 0.0
    %1601 = vmatpush2.msra.mxu0 0.0
    %1602 = vmatprep.subr.mxu0 0.0
    %1603 = vmatpush2.msra.mxu0 0.0
    %1604 = vmatprep.subr.mxu0 0.0
    %1605 = vmatpush2.msra.mxu0 0.0
    %1606 = vmatprep.subr.mxu0 0.0
    %1607 = vmatpush2.msra.mxu0 0.0
    %1608 = vmatprep.subr.mxu0 0.0
    %1609 = vmatpush2.msra.mxu0 0.0
    %1610 = vmatprep.subr.mxu0 0.0
    %1611 = vmatpush2.msra.mxu0 0.0
    %1612 = vmatprep.subr.mxu0 0.0
    %1613 = vmatpush2.msra.mxu0 0.0
    %1614 = vmatprep.subr.mxu0 0.0
    %1615 = vmatpush2.msra.mxu0 0.0
    %1616 = vmatprep.subr.mxu0 0.0
    %1617 = vmatpush2.msra.mxu0 0.0
    %1618 = vmatprep.subr.mxu0 0.0
    %1619 = vmatpush2.msra.mxu0 0.0
    %1620 = vmatprep.mubr.f32.mxu0 0.0
    %1621 = vmatmul.mubr.f32.gmra.mxu0 %v1554
    %v1622 = vpop.f32.mrf.mxu0
    %v1623 = vadd.f32 0.0, %v1622
    %v1624 = vpop.f32.mrf.mxu0
    %1625 = vdwg.mxu0
    %v1627 = vrot.slane %v1623, 4
    %v1629 = vadd.f32 %v263, %v1627
    %vm1630 = vcmask 94212
    %v1631 = vsel %vm1630, %v1629, -inf
    %1632 = vmax.xlane.f32.xlu0 %v1631
    %v1633 = vpop.xlane.xlu0 %1632
    %v1634 = vsub.f32 %v1629, %v1633
    %v1635 = vmul.f32 %v1634, 1.442695
    %v1636 = vpow.pop %v1635
    %v1637 = vsel %vm1630, %v1636, 0.0
    %1638 = vadd.xlane.f32.xlu0 %v1637
    %v1639 = vpop.xlane.xlu0 %1638
    %v1640 = vrcp.pop %v1639
    %v1641 = vmul.f32 %v1636, %v1640
    %v1643 = vrot.slane %v1641, 4
    %v1644 = vsel %vm531, %v1643, 0
    %1646 = vmatprep.subr.mxu0 0.0
    %1647 = vmatpush1.msra.mxu0 0.0
    %1648 = vmatprep.subr.mxu0 0.0
    %1649 = vmatpush1.msra.mxu0 0.0
    %1650 = vmatprep.subr.mxu0 0.0
    %1651 = vmatpush1.msra.mxu0 0.0
    %1652 = vmatprep.subr.mxu0 0.0
    %1653 = vmatpush1.msra.mxu0 0.0
    %1654 = vmatprep.subr.mxu0 0.0
    %1655 = vmatpush1.msra.mxu0 0.0
    %1656 = vmatprep.subr.mxu0 0.0
    %1657 = vmatpush1.msra.mxu0 0.0
    %1658 = vmatprep.subr.mxu0 0.0
    %1659 = vmatpush1.msra.mxu0 0.0
    %1660 = vmatprep.subr.mxu0 0.0
    %1661 = vmatpush1.msra.mxu0 0.0
    %1662 = vmatprep.subr.mxu0 0.0
    %1663 = vmatpush1.msra.mxu0 0.0
    %1664 = vmatprep.subr.mxu0 0.0
    %1665 = vmatpush1.msra.mxu0 0.0
    %1666 = vmatprep.subr.mxu0 0.0
    %1667 = vmatpush1.msra.mxu0 0.0
    %1668 = vmatprep.subr.mxu0 0.0
    %1669 = vmatpush1.msra.mxu0 0.0
    %1670 = vmatprep.subr.mxu0 0.0
    %1671 = vmatpush1.msra.mxu0 0.0
    %1672 = vmatprep.subr.mxu0 0.0
    %1673 = vmatpush1.msra.mxu0 0.0
    %1674 = vmatprep.subr.mxu0 0.0
    %1675 = vmatpush1.msra.mxu0 %v537
    %1676 = vmatprep.subr.mxu0 0.0
    %1677 = vmatpush1.msra.mxu0 %v426
    %1678 = vmatprep.subr.mxu0 0.0
    %1679 = vmatpush2.msra.mxu0 0.0
    %1680 = vmatprep.subr.mxu0 0.0
    %1681 = vmatpush2.msra.mxu0 0.0
    %1682 = vmatprep.subr.mxu0 0.0
    %1683 = vmatpush2.msra.mxu0 0.0
    %1684 = vmatprep.subr.mxu0 0.0
    %1685 = vmatpush2.msra.mxu0 0.0
    %1686 = vmatprep.subr.mxu0 0.0
    %1687 = vmatpush2.msra.mxu0 0.0
    %1688 = vmatprep.subr.mxu0 0.0
    %1689 = vmatpush2.msra.mxu0 0.0
    %1690 = vmatprep.subr.mxu0 0.0
    %1691 = vmatpush2.msra.mxu0 0.0
    %1692 = vmatprep.subr.mxu0 0.0
    %1693 = vmatpush2.msra.mxu0 0.0
    %1694 = vmatprep.subr.mxu0 0.0
    %1695 = vmatpush2.msra.mxu0 0.0
    %1696 = vmatprep.subr.mxu0 0.0
    %1697 = vmatpush2.msra.mxu0 0.0
    %1698 = vmatprep.subr.mxu0 0.0
    %1699 = vmatpush2.msra.mxu0 0.0
    %1700 = vmatprep.subr.mxu0 0.0
    %1701 = vmatpush2.msra.mxu0 0.0
    %1702 = vmatprep.subr.mxu0 0.0
    %1703 = vmatpush2.msra.mxu0 0.0
    %1704 = vmatprep.subr.mxu0 0.0
    %1705 = vmatpush2.msra.mxu0 0.0
    %1706 = vmatprep.subr.mxu0 0.0
    %1707 = vmatpush2.msra.mxu0 0.0
    %1708 = vmatprep.subr.mxu0 0.0
    %1709 = vmatpush2.msra.mxu0 0.0
    %1710 = vmatprep.mubr.f32.mxu0 0.0
    %1711 = vmatmul.mubr.f32.gmra.mxu0 %v1644
    %v1712 = vpop.f32.mrf.mxu0
    %v1713 = vadd.f32 0.0, %v1712
    %v1714 = vpop.f32.mrf.mxu0
    %1715 = vdwg.mxu0
    %v1717 = vrot.slane %v1713, 4
    %v1719 = vadd.f32 %v344, %v1717
    %v1720 = vmax.f32 %v1719, 0.0
    %v1722 = vrot.slane %v1720, 4
    %v1723 = vsel %vm192, %v1722, 0
    %1725 = vmatprep.subr.mxu0 0.0
    %1726 = vmatpush1.msra.mxu0 0.0
    %1727 = vmatprep.subr.mxu0 0.0
    %1728 = vmatpush1.msra.mxu0 0.0
    %1729 = vmatprep.subr.mxu0 0.0
    %1730 = vmatpush1.msra.mxu0 0.0
    %1731 = vmatprep.subr.mxu0 0.0
    %1732 = vmatpush1.msra.mxu0 0.0
    %1733 = vmatprep.subr.mxu0 0.0
    %1734 = vmatpush1.msra.mxu0 0.0
    %1735 = vmatprep.subr.mxu0 0.0
    %1736 = vmatpush1.msra.mxu0 0.0
    %1737 = vmatprep.subr.mxu0 0.0
    %1738 = vmatpush1.msra.mxu0 0.0
    %1739 = vmatprep.subr.mxu0 0.0
    %1740 = vmatpush1.msra.mxu0 0.0
    %1741 = vmatprep.subr.mxu0 0.0
    %1742 = vmatpush1.msra.mxu0 0.0
    %1743 = vmatprep.subr.mxu0 0.0
    %1744 = vmatpush1.msra.mxu0 0.0
    %1745 = vmatprep.subr.mxu0 0.0
    %1746 = vmatpush1.msra.mxu0 0.0
    %1747 = vmatprep.subr.mxu0 0.0
    %1748 = vmatpush1.msra.mxu0 0.0
    %1749 = vmatprep.subr.mxu0 0.0
    %1750 = vmatpush1.msra.mxu0 %v441
    %1751 = vmatprep.subr.mxu0 0.0
    %1752 = vmatpush1.msra.mxu0 %v440
    %1753 = vmatprep.subr.mxu0 0.0
    %1754 = vmatpush1.msra.mxu0 %v439
    %1755 = vmatprep.subr.mxu0 0.0
    %1756 = vmatpush1.msra.mxu0 %v438
    %1757 = vmatprep.subr.mxu0 0.0
    %1758 = vmatpush2.msra.mxu0 0.0
    %1759 = vmatprep.subr.mxu0 0.0
    %1760 = vmatpush2.msra.mxu0 0.0
    %1761 = vmatprep.subr.mxu0 0.0
    %1762 = vmatpush2.msra.mxu0 0.0
    %1763 = vmatprep.subr.mxu0 0.0
    %1764 = vmatpush2.msra.mxu0 0.0
    %1765 = vmatprep.subr.mxu0 0.0
    %1766 = vmatpush2.msra.mxu0 0.0
    %1767 = vmatprep.subr.mxu0 0.0
    %1768 = vmatpush2.msra.mxu0 0.0
    %1769 = vmatprep.subr.mxu0 0.0
    %1770 = vmatpush2.msra.mxu0 0.0
    %1771 = vmatprep.subr.mxu0 0.0
    %1772 = vmatpush2.msra.mxu0 0.0
    %1773 = vmatprep.subr.mxu0 0.0
    %1774 = vmatpush2.msra.mxu0 0.0
    %1775 = vmatprep.subr.mxu0 0.0
    %1776 = vmatpush2.msra.mxu0 0.0
    %1777 = vmatprep.subr.mxu0 0.0
    %1778 = vmatpush2.msra.mxu0 0.0
    %1779 = vmatprep.subr.mxu0 0.0
    %1780 = vmatpush2.msra.mxu0 0.0
    %1781 = vmatprep.subr.mxu0 0.0
    %1782 = vmatpush2.msra.mxu0 0.0
    %1783 = vmatprep.subr.mxu0 0.0
    %1784 = vmatpush2.msra.mxu0 0.0
    %1785 = vmatprep.subr.mxu0 0.0
    %1786 = vmatpush2.msra.mxu0 0.0
    %1787 = vmatprep.subr.mxu0 0.0
    %1788 = vmatpush2.msra.mxu0 0.0
    %1789 = vmatprep.mubr.f32.mxu0 0.0
    %1790 = vmatmul.mubr.f32.gmra.mxu0 %v1723
    %v1791 = vpop.f32.mrf.mxu0
    %v1792 = vadd.f32 %v442, %v1791
    %v1793 = vpop.f32.mrf.mxu0
    %1794 = vdwg.mxu0
    %v1795 = vadd.f32 %v1623, %v690
    %1797 = vrot.lane.b32.xlu0 %v1795, 96
    %v1798 = vpop.permute.xlu0 %1797
    %v1800 = vadd.f32 %v1792, %v1798
    %v1801 = vxor.u32 %v1800, 2147483648
    %v1802 = vmul.f32 %v1801, 1.442695
    %v1803 = vpow.pop %v1802
    %v1804 = vadd.f32 %v1803, 1.0
    %v1805 = vrcp.pop %v1804
    %v1806 = vmul.f32 1.0, %v1805
    %1807 = vrot.lane.b32.xlu0 %v1795, 32
    %v1808 = vpop.permute.xlu0 %1807
    %v1810 = vmul.f32 %v1806, %v1808
    %1812 = vrot.lane.b32.xlu0 %v1810, 64
    %v1813 = vpop.permute.xlu0 %1812
    %v1815 = vadd.f32 %v1792, %v1813
    %v1816 = vtanh.pop %v1815
    %v1817 = vsub.f32 1.0, %v1806
    %1819 = vrot.lane.b32.xlu0 %v1816, 96
    %v1820 = vpop.permute.xlu0 %1819
    %v1822 = vmul.f32 %v1817, %v1820
    %v1823 = vmul.f32 %v1806, %v1550
    %v1824 = vadd.f32 %v1822, %v1823
    %1826 = vrot.lane.b32.xlu0 %v1824, 96
    %v1827 = vpop.permute.xlu0 %1826
    %v1828 = vsel %vm192, %v1827, 0
    %1830 = vmatprep.subr.mxu0 0.0
    %1831 = vmatpush1.msra.mxu0 0.0
    %1832 = vmatprep.subr.mxu0 0.0
    %1833 = vmatpush1.msra.mxu0 0.0
    %1834 = vmatprep.subr.mxu0 0.0
    %1835 = vmatpush1.msra.mxu0 0.0
    %1836 = vmatprep.subr.mxu0 0.0
    %1837 = vmatpush1.msra.mxu0 0.0
    %1838 = vmatprep.subr.mxu0 0.0
    %1839 = vmatpush1.msra.mxu0 0.0
    %1840 = vmatprep.subr.mxu0 0.0
    %1841 = vmatpush1.msra.mxu0 0.0
    %1842 = vmatprep.subr.mxu0 0.0
    %1843 = vmatpush1.msra.mxu0 0.0
    %1844 = vmatprep.subr.mxu0 0.0
    %1845 = vmatpush1.msra.mxu0 0.0
    %1846 = vmatprep.subr.mxu0 0.0
    %1847 = vmatpush1.msra.mxu0 0.0
    %1848 = vmatprep.subr.mxu0 0.0
    %1849 = vmatpush1.msra.mxu0 0.0
    %1850 = vmatprep.subr.mxu0 0.0
    %1851 = vmatpush1.msra.mxu0 0.0
    %1852 = vmatprep.subr.mxu0 0.0
    %1853 = vmatpush1.msra.mxu0 0.0
    %1854 = vmatprep.subr.mxu0 0.0
    %1855 = vmatpush1.msra.mxu0 %v437
    %1856 = vmatprep.subr.mxu0 0.0
    %1857 = vmatpush1.msra.mxu0 %v436
    %1858 = vmatprep.subr.mxu0 0.0
    %1859 = vmatpush1.msra.mxu0 %v435
    %1860 = vmatprep.subr.mxu0 0.0
    %1861 = vmatpush1.msra.mxu0 %v434
    %1862 = vmatprep.subr.mxu0 0.0
    %1863 = vmatpush2.msra.mxu0 0.0
    %1864 = vmatprep.subr.mxu0 0.0
    %1865 = vmatpush2.msra.mxu0 0.0
    %1866 = vmatprep.subr.mxu0 0.0
    %1867 = vmatpush2.msra.mxu0 0.0
    %1868 = vmatprep.subr.mxu0 0.0
    %1869 = vmatpush2.msra.mxu0 0.0
    %1870 = vmatprep.subr.mxu0 0.0
    %1871 = vmatpush2.msra.mxu0 0.0
    %1872 = vmatprep.subr.mxu0 0.0
    %1873 = vmatpush2.msra.mxu0 0.0
    %1874 = vmatprep.subr.mxu0 0.0
    %1875 = vmatpush2.msra.mxu0 0.0
    %1876 = vmatprep.subr.mxu0 0.0
    %1877 = vmatpush2.msra.mxu0 0.0
    %1878 = vmatprep.subr.mxu0 0.0
    %1879 = vmatpush2.msra.mxu0 0.0
    %1880 = vmatprep.subr.mxu0 0.0
    %1881 = vmatpush2.msra.mxu0 0.0
    %1882 = vmatprep.subr.mxu0 0.0
    %1883 = vmatpush2.msra.mxu0 0.0
    %1884 = vmatprep.subr.mxu0 0.0
    %1885 = vmatpush2.msra.mxu0 0.0
    %1886 = vmatprep.subr.mxu0 0.0
    %1887 = vmatpush2.msra.mxu0 0.0
    %1888 = vmatprep.subr.mxu0 0.0
    %1889 = vmatpush2.msra.mxu0 0.0
    %1890 = vmatprep.subr.mxu0 0.0
    %1891 = vmatpush2.msra.mxu0 0.0
    %1892 = vmatprep.subr.mxu0 0.0
    %1893 = vmatpush2.msra.mxu0 0.0
    %1894 = vmatprep.mubr.f32.mxu0 0.0
    %1895 = vmatmul.mubr.f32.gmra.mxu0 %v1828
    %v1896 = vpop.f32.mrf.mxu0
    %v1897 = vadd.f32 0.0, %v1896
    %v1898 = vpop.f32.mrf.mxu0
    %1899 = vdwg.mxu0
    %v1901 = vrot.slane %v1897, 3
    %v1903 = vadd.f32 %v263, %v1901
    %vm1904 = vcmask 95237
    %v1905 = vsel %vm1904, %v1903, -inf
    %1906 = vmax.xlane.f32.xlu0 %v1905
    %v1907 = vpop.xlane.xlu0 %1906
    %v1908 = vsub.f32 %v1903, %v1907
    %v1909 = vmul.f32 %v1908, 1.442695
    %v1910 = vpow.pop %v1909
    %v1911 = vsel %vm1904, %v1910, 0.0
    %1912 = vadd.xlane.f32.xlu0 %v1911
    %v1913 = vpop.xlane.xlu0 %1912
    %v1914 = vrcp.pop %v1913
    %v1915 = vmul.f32 %v1910, %v1914
    %v1917 = vrot.slane %v1915, 5
    %v1918 = vsel %vm531, %v1917, 0
    %1920 = vmatprep.subr.mxu0 0.0
    %1921 = vmatpush1.msra.mxu0 0.0
    %1922 = vmatprep.subr.mxu0 0.0
    %1923 = vmatpush1.msra.mxu0 0.0
    %1924 = vmatprep.subr.mxu0 0.0
    %1925 = vmatpush1.msra.mxu0 0.0
    %1926 = vmatprep.subr.mxu0 0.0
    %1927 = vmatpush1.msra.mxu0 0.0
    %1928 = vmatprep.subr.mxu0 0.0
    %1929 = vmatpush1.msra.mxu0 0.0
    %1930 = vmatprep.subr.mxu0 0.0
    %1931 = vmatpush1.msra.mxu0 0.0
    %1932 = vmatprep.subr.mxu0 0.0
    %1933 = vmatpush1.msra.mxu0 0.0
    %1934 = vmatprep.subr.mxu0 0.0
    %1935 = vmatpush1.msra.mxu0 0.0
    %1936 = vmatprep.subr.mxu0 0.0
    %1937 = vmatpush1.msra.mxu0 0.0
    %1938 = vmatprep.subr.mxu0 0.0
    %1939 = vmatpush1.msra.mxu0 0.0
    %1940 = vmatprep.subr.mxu0 0.0
    %1941 = vmatpush1.msra.mxu0 0.0
    %1942 = vmatprep.subr.mxu0 0.0
    %1943 = vmatpush1.msra.mxu0 0.0
    %1944 = vmatprep.subr.mxu0 0.0
    %1945 = vmatpush1.msra.mxu0 0.0
    %1946 = vmatprep.subr.mxu0 0.0
    %1947 = vmatpush1.msra.mxu0 0.0
    %1948 = vmatprep.subr.mxu0 0.0
    %1949 = vmatpush1.msra.mxu0 %v537
    %1950 = vmatprep.subr.mxu0 0.0
    %1951 = vmatpush1.msra.mxu0 %v426
    %1952 = vmatprep.subr.mxu0 0.0
    %1953 = vmatpush2.msra.mxu0 0.0
    %1954 = vmatprep.subr.mxu0 0.0
    %1955 = vmatpush2.msra.mxu0 0.0
    %1956 = vmatprep.subr.mxu0 0.0
    %1957 = vmatpush2.msra.mxu0 0.0
    %1958 = vmatprep.subr.mxu0 0.0
    %1959 = vmatpush2.msra.mxu0 0.0
    %1960 = vmatprep.subr.mxu0 0.0
    %1961 = vmatpush2.msra.mxu0 0.0
    %1962 = vmatprep.subr.mxu0 0.0
    %1963 = vmatpush2.msra.mxu0 0.0
    %1964 = vmatprep.subr.mxu0 0.0
    %1965 = vmatpush2.msra.mxu0 0.0
    %1966 = vmatprep.subr.mxu0 0.0
    %1967 = vmatpush2.msra.mxu0 0.0
    %1968 = vmatprep.subr.mxu0 0.0
    %1969 = vmatpush2.msra.mxu0 0.0
    %1970 = vmatprep.subr.mxu0 0.0
    %1971 = vmatpush2.msra.mxu0 0.0
    %1972 = vmatprep.subr.mxu0 0.0
    %1973 = vmatpush2.msra.mxu0 0.0
    %1974 = vmatprep.subr.mxu0 0.0
    %1975 = vmatpush2.msra.mxu0 0.0
    %1976 = vmatprep.subr.mxu0 0.0
    %1977 = vmatpush2.msra.mxu0 0.0
    %1978 = vmatprep.subr.mxu0 0.0
    %1979 = vmatpush2.msra.mxu0 0.0
    %1980 = vmatprep.subr.mxu0 0.0
    %1981 = vmatpush2.msra.mxu0 0.0
    %1982 = vmatprep.subr.mxu0 0.0
    %1983 = vmatpush2.msra.mxu0 0.0
    %1984 = vmatprep.mubr.f32.mxu0 0.0
    %1985 = vmatmul.mubr.f32.gmra.mxu0 %v1918
    %v1986 = vpop.f32.mrf.mxu0
    %v1987 = vadd.f32 0.0, %v1986
    %v1988 = vpop.f32.mrf.mxu0
    %1989 = vdwg.mxu0
    %v1991 = vrot.slane %v1987, 3
    %v1993 = vadd.f32 %v344, %v1991
    %v1994 = vmax.f32 %v1993, 0.0
    %v1996 = vrot.slane %v1994, 5
    %v1997 = vsel %vm192, %v1996, 0
    %1999 = vmatprep.subr.mxu0 0.0
    %2000 = vmatpush1.msra.mxu0 0.0
    %2001 = vmatprep.subr.mxu0 0.0
    %2002 = vmatpush1.msra.mxu0 0.0
    %2003 = vmatprep.subr.mxu0 0.0
    %2004 = vmatpush1.msra.mxu0 0.0
    %2005 = vmatprep.subr.mxu0 0.0
    %2006 = vmatpush1.msra.mxu0 0.0
    %2007 = vmatprep.subr.mxu0 0.0
    %2008 = vmatpush1.msra.mxu0 0.0
    %2009 = vmatprep.subr.mxu0 0.0
    %2010 = vmatpush1.msra.mxu0 0.0
    %2011 = vmatprep.subr.mxu0 0.0
    %2012 = vmatpush1.msra.mxu0 0.0
    %2013 = vmatprep.subr.mxu0 0.0
    %2014 = vmatpush1.msra.mxu0 0.0
    %2015 = vmatprep.subr.mxu0 0.0
    %2016 = vmatpush1.msra.mxu0 0.0
    %2017 = vmatprep.subr.mxu0 0.0
    %2018 = vmatpush1.msra.mxu0 0.0
    %2019 = vmatprep.subr.mxu0 0.0
    %2020 = vmatpush1.msra.mxu0 0.0
    %2021 = vmatprep.subr.mxu0 0.0
    %2022 = vmatpush1.msra.mxu0 0.0
    %2023 = vmatprep.subr.mxu0 0.0
    %2024 = vmatpush1.msra.mxu0 %v441
    %2025 = vmatprep.subr.mxu0 0.0
    %2026 = vmatpush1.msra.mxu0 %v440
    %2027 = vmatprep.subr.mxu0 0.0
    %2028 = vmatpush1.msra.mxu0 %v439
    %2029 = vmatprep.subr.mxu0 0.0
    %2030 = vmatpush1.msra.mxu0 %v438
    %2031 = vmatprep.subr.mxu0 0.0
    %2032 = vmatpush2.msra.mxu0 0.0
    %2033 = vmatprep.subr.mxu0 0.0
    %2034 = vmatpush2.msra.mxu0 0.0
    %2035 = vmatprep.subr.mxu0 0.0
    %2036 = vmatpush2.msra.mxu0 0.0
    %2037 = vmatprep.subr.mxu0 0.0
    %2038 = vmatpush2.msra.mxu0 0.0
    %2039 = vmatprep.subr.mxu0 0.0
    %2040 = vmatpush2.msra.mxu0 0.0
    %2041 = vmatprep.subr.mxu0 0.0
    %2042 = vmatpush2.msra.mxu0 0.0
    %2043 = vmatprep.subr.mxu0 0.0
    %2044 = vmatpush2.msra.mxu0 0.0
    %2045 = vmatprep.subr.mxu0 0.0
    %2046 = vmatpush2.msra.mxu0 0.0
    %2047 = vmatprep.subr.mxu0 0.0
    %2048 = vmatpush2.msra.mxu0 0.0
    %2049 = vmatprep.subr.mxu0 0.0
    %2050 = vmatpush2.msra.mxu0 0.0
    %2051 = vmatprep.subr.mxu0 0.0
    %2052 = vmatpush2.msra.mxu0 0.0
    %2053 = vmatprep.subr.mxu0 0.0
    %2054 = vmatpush2.msra.mxu0 0.0
    %2055 = vmatprep.subr.mxu0 0.0
    %2056 = vmatpush2.msra.mxu0 0.0
    %2057 = vmatprep.subr.mxu0 0.0
    %2058 = vmatpush2.msra.mxu0 0.0
    %2059 = vmatprep.subr.mxu0 0.0
    %2060 = vmatpush2.msra.mxu0 0.0
    %2061 = vmatprep.subr.mxu0 0.0
    %2062 = vmatpush2.msra.mxu0 0.0
    %2063 = vmatprep.mubr.f32.mxu0 0.0
    %2064 = vmatmul.mubr.f32.gmra.mxu0 %v1997
    %v2065 = vpop.f32.mrf.mxu0
    %v2066 = vadd.f32 %v442, %v2065
    %v2067 = vpop.f32.mrf.mxu0
    %2068 = vdwg.mxu0
    %v2069 = vadd.f32 %v1897, %v690
    %2071 = vrot.lane.b32.xlu0 %v2069, 96
    %v2072 = vpop.permute.xlu0 %2071
    %v2074 = vadd.f32 %v2066, %v2072
    %v2075 = vxor.u32 %v2074, 2147483648
    %v2076 = vmul.f32 %v2075, 1.442695
    %v2077 = vpow.pop %v2076
    %v2078 = vadd.f32 %v2077, 1.0
    %v2079 = vrcp.pop %v2078
    %v2080 = vmul.f32 1.0, %v2079
    %2081 = vrot.lane.b32.xlu0 %v2069, 32
    %v2082 = vpop.permute.xlu0 %2081
    %v2084 = vmul.f32 %v2080, %v2082
    %2086 = vrot.lane.b32.xlu0 %v2084, 64
    %v2087 = vpop.permute.xlu0 %2086
    %v2089 = vadd.f32 %v2066, %v2087
    %v2090 = vtanh.pop %v2089
    %v2091 = vsub.f32 1.0, %v2080
    %2093 = vrot.lane.b32.xlu0 %v2090, 96
    %v2094 = vpop.permute.xlu0 %2093
    %v2096 = vmul.f32 %v2091, %v2094
    %v2097 = vmul.f32 %v2080, %v1824
    %v2098 = vadd.f32 %v2096, %v2097
    %2100 = vrot.lane.b32.xlu0 %v2098, 96
    %v2101 = vpop.permute.xlu0 %2100
    %v2102 = vsel %vm192, %v2101, 0
    %2104 = vmatprep.subr.mxu0 0.0
    %2105 = vmatpush1.msra.mxu0 0.0
    %2106 = vmatprep.subr.mxu0 0.0
    %2107 = vmatpush1.msra.mxu0 0.0
    %2108 = vmatprep.subr.mxu0 0.0
    %2109 = vmatpush1.msra.mxu0 0.0
    %2110 = vmatprep.subr.mxu0 0.0
    %2111 = vmatpush1.msra.mxu0 0.0
    %2112 = vmatprep.subr.mxu0 0.0
    %2113 = vmatpush1.msra.mxu0 0.0
    %2114 = vmatprep.subr.mxu0 0.0
    %2115 = vmatpush1.msra.mxu0 0.0
    %2116 = vmatprep.subr.mxu0 0.0
    %2117 = vmatpush1.msra.mxu0 0.0
    %2118 = vmatprep.subr.mxu0 0.0
    %2119 = vmatpush1.msra.mxu0 0.0
    %2120 = vmatprep.subr.mxu0 0.0
    %2121 = vmatpush1.msra.mxu0 0.0
    %2122 = vmatprep.subr.mxu0 0.0
    %2123 = vmatpush1.msra.mxu0 0.0
    %2124 = vmatprep.subr.mxu0 0.0
    %2125 = vmatpush1.msra.mxu0 0.0
    %2126 = vmatprep.subr.mxu0 0.0
    %2127 = vmatpush1.msra.mxu0 0.0
    %2128 = vmatprep.subr.mxu0 0.0
    %2129 = vmatpush1.msra.mxu0 %v437
    %2130 = vmatprep.subr.mxu0 0.0
    %2131 = vmatpush1.msra.mxu0 %v436
    %2132 = vmatprep.subr.mxu0 0.0
    %2133 = vmatpush1.msra.mxu0 %v435
    %2134 = vmatprep.subr.mxu0 0.0
    %2135 = vmatpush1.msra.mxu0 %v434
    %2136 = vmatprep.subr.mxu0 0.0
    %2137 = vmatpush2.msra.mxu0 0.0
    %2138 = vmatprep.subr.mxu0 0.0
    %2139 = vmatpush2.msra.mxu0 0.0
    %2140 = vmatprep.subr.mxu0 0.0
    %2141 = vmatpush2.msra.mxu0 0.0
    %2142 = vmatprep.subr.mxu0 0.0
    %2143 = vmatpush2.msra.mxu0 0.0
    %2144 = vmatprep.subr.mxu0 0.0
    %2145 = vmatpush2.msra.mxu0 0.0
    %2146 = vmatprep.subr.mxu0 0.0
    %2147 = vmatpush2.msra.mxu0 0.0
    %2148 = vmatprep.subr.mxu0 0.0
    %2149 = vmatpush2.msra.mxu0 0.0
    %2150 = vmatprep.subr.mxu0 0.0
    %2151 = vmatpush2.msra.mxu0 0.0
    %2152 = vmatprep.subr.mxu0 0.0
    %2153 = vmatpush2.msra.mxu0 0.0
    %2154 = vmatprep.subr.mxu0 0.0
    %2155 = vmatpush2.msra.mxu0 0.0
    %2156 = vmatprep.subr.mxu0 0.0
    %2157 = vmatpush2.msra.mxu0 0.0
    %2158 = vmatprep.subr.mxu0 0.0
    %2159 = vmatpush2.msra.mxu0 0.0
    %2160 = vmatprep.subr.mxu0 0.0
    %2161 = vmatpush2.msra.mxu0 0.0
    %2162 = vmatprep.subr.mxu0 0.0
    %2163 = vmatpush2.msra.mxu0 0.0
    %2164 = vmatprep.subr.mxu0 0.0
    %2165 = vmatpush2.msra.mxu0 0.0
    %2166 = vmatprep.subr.mxu0 0.0
    %2167 = vmatpush2.msra.mxu0 0.0
    %2168 = vmatprep.mubr.f32.mxu0 0.0
    %2169 = vmatmul.mubr.f32.gmra.mxu0 %v2102
    %v2170 = vpop.f32.mrf.mxu0
    %v2171 = vadd.f32 0.0, %v2170
    %v2172 = vpop.f32.mrf.mxu0
    %2173 = vdwg.mxu0
    %v2175 = vrot.slane %v2171, 2
    %v2177 = vadd.f32 %v263, %v2175
    %vm2178 = vcmask 96262
    %v2179 = vsel %vm2178, %v2177, -inf
    %2180 = vmax.xlane.f32.xlu0 %v2179
    %v2181 = vpop.xlane.xlu0 %2180
    %v2182 = vsub.f32 %v2177, %v2181
    %v2183 = vmul.f32 %v2182, 1.442695
    %v2184 = vpow.pop %v2183
    %v2185 = vsel %vm2178, %v2184, 0.0
    %2186 = vadd.xlane.f32.xlu0 %v2185
    %v2187 = vpop.xlane.xlu0 %2186
    %v2188 = vrcp.pop %v2187
    %v2189 = vmul.f32 %v2184, %v2188
    %v2191 = vrot.slane %v2189, 6
    %v2192 = vsel %vm531, %v2191, 0
    %2194 = vmatprep.subr.mxu0 0.0
    %2195 = vmatpush1.msra.mxu0 0.0
    %2196 = vmatprep.subr.mxu0 0.0
    %2197 = vmatpush1.msra.mxu0 0.0
    %2198 = vmatprep.subr.mxu0 0.0
    %2199 = vmatpush1.msra.mxu0 0.0
    %2200 = vmatprep.subr.mxu0 0.0
    %2201 = vmatpush1.msra.mxu0 0.0
    %2202 = vmatprep.subr.mxu0 0.0
    %2203 = vmatpush1.msra.mxu0 0.0
    %2204 = vmatprep.subr.mxu0 0.0
    %2205 = vmatpush1.msra.mxu0 0.0
    %2206 = vmatprep.subr.mxu0 0.0
    %2207 = vmatpush1.msra.mxu0 0.0
    %2208 = vmatprep.subr.mxu0 0.0
    %2209 = vmatpush1.msra.mxu0 0.0
    %2210 = vmatprep.subr.mxu0 0.0
    %2211 = vmatpush1.msra.mxu0 0.0
    %2212 = vmatprep.subr.mxu0 0.0
    %2213 = vmatpush1.msra.mxu0 0.0
    %2214 = vmatprep.subr.mxu0 0.0
    %2215 = vmatpush1.msra.mxu0 0.0
    %2216 = vmatprep.subr.mxu0 0.0
    %2217 = vmatpush1.msra.mxu0 0.0
    %2218 = vmatprep.subr.mxu0 0.0
    %2219 = vmatpush1.msra.mxu0 0.0
    %2220 = vmatprep.subr.mxu0 0.0
    %2221 = vmatpush1.msra.mxu0 0.0
    %2222 = vmatprep.subr.mxu0 0.0
    %2223 = vmatpush1.msra.mxu0 %v537
    %2224 = vmatprep.subr.mxu0 0.0
    %2225 = vmatpush1.msra.mxu0 %v426
    %2226 = vmatprep.subr.mxu0 0.0
    %2227 = vmatpush2.msra.mxu0 0.0
    %2228 = vmatprep.subr.mxu0 0.0
    %2229 = vmatpush2.msra.mxu0 0.0
    %2230 = vmatprep.subr.mxu0 0.0
    %2231 = vmatpush2.msra.mxu0 0.0
    %2232 = vmatprep.subr.mxu0 0.0
    %2233 = vmatpush2.msra.mxu0 0.0
    %2234 = vmatprep.subr.mxu0 0.0
    %2235 = vmatpush2.msra.mxu0 0.0
    %2236 = vmatprep.subr.mxu0 0.0
    %2237 = vmatpush2.msra.mxu0 0.0
    %2238 = vmatprep.subr.mxu0 0.0
    %2239 = vmatpush2.msra.mxu0 0.0
    %2240 = vmatprep.subr.mxu0 0.0
    %2241 = vmatpush2.msra.mxu0 0.0
    %2242 = vmatprep.subr.mxu0 0.0
    %2243 = vmatpush2.msra.mxu0 0.0
    %2244 = vmatprep.subr.mxu0 0.0
    %2245 = vmatpush2.msra.mxu0 0.0
    %2246 = vmatprep.subr.mxu0 0.0
    %2247 = vmatpush2.msra.mxu0 0.0
    %2248 = vmatprep.subr.mxu0 0.0
    %2249 = vmatpush2.msra.mxu0 0.0
    %2250 = vmatprep.subr.mxu0 0.0
    %2251 = vmatpush2.msra.mxu0 0.0
    %2252 = vmatprep.subr.mxu0 0.0
    %2253 = vmatpush2.msra.mxu0 0.0
    %2254 = vmatprep.subr.mxu0 0.0
    %2255 = vmatpush2.msra.mxu0 0.0
    %2256 = vmatprep.subr.mxu0 0.0
    %2257 = vmatpush2.msra.mxu0 0.0
    %2258 = vmatprep.mubr.f32.mxu0 0.0
    %2259 = vmatmul.mubr.f32.gmra.mxu0 %v2192
    %v2260 = vpop.f32.mrf.mxu0
    %v2261 = vadd.f32 0.0, %v2260
    %v2262 = vpop.f32.mrf.mxu0
    %2263 = vdwg.mxu0
    %v2265 = vrot.slane %v2261, 2
    %v2267 = vadd.f32 %v344, %v2265
    %v2268 = vmax.f32 %v2267, 0.0
    %v2270 = vrot.slane %v2268, 6
    %v2271 = vsel %vm192, %v2270, 0
    %2273 = vmatprep.subr.mxu0 0.0
    %2274 = vmatpush1.msra.mxu0 0.0
    %2275 = vmatprep.subr.mxu0 0.0
    %2276 = vmatpush1.msra.mxu0 0.0
    %2277 = vmatprep.subr.mxu0 0.0
    %2278 = vmatpush1.msra.mxu0 0.0
    %2279 = vmatprep.subr.mxu0 0.0
    %2280 = vmatpush1.msra.mxu0 0.0
    %2281 = vmatprep.subr.mxu0 0.0
    %2282 = vmatpush1.msra.mxu0 0.0
    %2283 = vmatprep.subr.mxu0 0.0
    %2284 = vmatpush1.msra.mxu0 0.0
    %2285 = vmatprep.subr.mxu0 0.0
    %2286 = vmatpush1.msra.mxu0 0.0
    %2287 = vmatprep.subr.mxu0 0.0
    %2288 = vmatpush1.msra.mxu0 0.0
    %2289 = vmatprep.subr.mxu0 0.0
    %2290 = vmatpush1.msra.mxu0 0.0
    %2291 = vmatprep.subr.mxu0 0.0
    %2292 = vmatpush1.msra.mxu0 0.0
    %2293 = vmatprep.subr.mxu0 0.0
    %2294 = vmatpush1.msra.mxu0 0.0
    %2295 = vmatprep.subr.mxu0 0.0
    %2296 = vmatpush1.msra.mxu0 0.0
    %2297 = vmatprep.subr.mxu0 0.0
    %2298 = vmatpush1.msra.mxu0 %v441
    %2299 = vmatprep.subr.mxu0 0.0
    %2300 = vmatpush1.msra.mxu0 %v440
    %2301 = vmatprep.subr.mxu0 0.0
    %2302 = vmatpush1.msra.mxu0 %v439
    %2303 = vmatprep.subr.mxu0 0.0
    %2304 = vmatpush1.msra.mxu0 %v438
    %2305 = vmatprep.subr.mxu0 0.0
    %2306 = vmatpush2.msra.mxu0 0.0
    %2307 = vmatprep.subr.mxu0 0.0
    %2308 = vmatpush2.msra.mxu0 0.0
    %2309 = vmatprep.subr.mxu0 0.0
    %2310 = vmatpush2.msra.mxu0 0.0
    %2311 = vmatprep.subr.mxu0 0.0
    %2312 = vmatpush2.msra.mxu0 0.0
    %2313 = vmatprep.subr.mxu0 0.0
    %2314 = vmatpush2.msra.mxu0 0.0
    %2315 = vmatprep.subr.mxu0 0.0
    %2316 = vmatpush2.msra.mxu0 0.0
    %2317 = vmatprep.subr.mxu0 0.0
    %2318 = vmatpush2.msra.mxu0 0.0
    %2319 = vmatprep.subr.mxu0 0.0
    %2320 = vmatpush2.msra.mxu0 0.0
    %2321 = vmatprep.subr.mxu0 0.0
    %2322 = vmatpush2.msra.mxu0 0.0
    %2323 = vmatprep.subr.mxu0 0.0
    %2324 = vmatpush2.msra.mxu0 0.0
    %2325 = vmatprep.subr.mxu0 0.0
    %2326 = vmatpush2.msra.mxu0 0.0
    %2327 = vmatprep.subr.mxu0 0.0
    %2328 = vmatpush2.msra.mxu0 0.0
    %2329 = vmatprep.subr.mxu0 0.0
    %2330 = vmatpush2.msra.mxu0 0.0
    %2331 = vmatprep.subr.mxu0 0.0
    %2332 = vmatpush2.msra.mxu0 0.0
    %2333 = vmatprep.subr.mxu0 0.0
    %2334 = vmatpush2.msra.mxu0 0.0
    %2335 = vmatprep.subr.mxu0 0.0
    %2336 = vmatpush2.msra.mxu0 0.0
    %2337 = vmatprep.mubr.f32.mxu0 0.0
    %2338 = vmatmul.mubr.f32.gmra.mxu0 %v2271
    %v2339 = vpop.f32.mrf.mxu0
    %v2340 = vadd.f32 %v442, %v2339
    %v2341 = vpop.f32.mrf.mxu0
    %2342 = vdwg.mxu0
    %v2343 = vadd.f32 %v2171, %v690
    %2345 = vrot.lane.b32.xlu0 %v2343, 96
    %v2346 = vpop.permute.xlu0 %2345
    %v2348 = vadd.f32 %v2340, %v2346
    %v2349 = vxor.u32 %v2348, 2147483648
    %v2350 = vmul.f32 %v2349, 1.442695
    %v2351 = vpow.pop %v2350
    %v2352 = vadd.f32 %v2351, 1.0
    %v2353 = vrcp.pop %v2352
    %v2354 = vmul.f32 1.0, %v2353
    %2355 = vrot.lane.b32.xlu0 %v2343, 32
    %v2356 = vpop.permute.xlu0 %2355
    %v2358 = vmul.f32 %v2354, %v2356
    %2360 = vrot.lane.b32.xlu0 %v2358, 64
    %v2361 = vpop.permute.xlu0 %2360
    %v2363 = vadd.f32 %v2340, %v2361
    %v2364 = vtanh.pop %v2363
    %v2365 = vsub.f32 1.0, %v2354
    %2367 = vrot.lane.b32.xlu0 %v2364, 96
    %v2368 = vpop.permute.xlu0 %2367
    %v2370 = vmul.f32 %v2365, %v2368
    %v2371 = vmul.f32 %v2354, %v2098
    %v2372 = vadd.f32 %v2370, %v2371
    %2374 = vrot.lane.b32.xlu0 %v2372, 96
    %v2375 = vpop.permute.xlu0 %2374
    %v2376 = vsel %vm192, %v2375, 0
    %2378 = vmatprep.subr.mxu0 0.0
    %2379 = vmatpush1.msra.mxu0 0.0
    %2380 = vmatprep.subr.mxu0 0.0
    %2381 = vmatpush1.msra.mxu0 0.0
    %2382 = vmatprep.subr.mxu0 0.0
    %2383 = vmatpush1.msra.mxu0 0.0
    %2384 = vmatprep.subr.mxu0 0.0
    %2385 = vmatpush1.msra.mxu0 0.0
    %2386 = vmatprep.subr.mxu0 0.0
    %2387 = vmatpush1.msra.mxu0 0.0
    %2388 = vmatprep.subr.mxu0 0.0
    %2389 = vmatpush1.msra.mxu0 0.0
    %2390 = vmatprep.subr.mxu0 0.0
    %2391 = vmatpush1.msra.mxu0 0.0
    %2392 = vmatprep.subr.mxu0 0.0
    %2393 = vmatpush1.msra.mxu0 0.0
    %2394 = vmatprep.subr.mxu0 0.0
    %2395 = vmatpush1.msra.mxu0 0.0
    %2396 = vmatprep.subr.mxu0 0.0
    %2397 = vmatpush1.msra.mxu0 0.0
    %2398 = vmatprep.subr.mxu0 0.0
    %2399 = vmatpush1.msra.mxu0 0.0
    %2400 = vmatprep.subr.mxu0 0.0
    %2401 = vmatpush1.msra.mxu0 0.0
    %2402 = vmatprep.subr.mxu0 0.0
    %2403 = vmatpush1.msra.mxu0 %v437
    %2404 = vmatprep.subr.mxu0 0.0
    %2405 = vmatpush1.msra.mxu0 %v436
    %2406 = vmatprep.subr.mxu0 0.0
    %2407 = vmatpush1.msra.mxu0 %v435
    %2408 = vmatprep.subr.mxu0 0.0
    %2409 = vmatpush1.msra.mxu0 %v434
    %2410 = vmatprep.subr.mxu0 0.0
    %2411 = vmatpush2.msra.mxu0 0.0
    %2412 = vmatprep.subr.mxu0 0.0
    %2413 = vmatpush2.msra.mxu0 0.0
    %2414 = vmatprep.subr.mxu0 0.0
    %2415 = vmatpush2.msra.mxu0 0.0
    %2416 = vmatprep.subr.mxu0 0.0
    %2417 = vmatpush2.msra.mxu0 0.0
    %2418 = vmatprep.subr.mxu0 0.0
    %2419 = vmatpush2.msra.mxu0 0.0
    %2420 = vmatprep.subr.mxu0 0.0
    %2421 = vmatpush2.msra.mxu0 0.0
    %2422 = vmatprep.subr.mxu0 0.0
    %2423 = vmatpush2.msra.mxu0 0.0
    %2424 = vmatprep.subr.mxu0 0.0
    %2425 = vmatpush2.msra.mxu0 0.0
    %2426 = vmatprep.subr.mxu0 0.0
    %2427 = vmatpush2.msra.mxu0 0.0
    %2428 = vmatprep.subr.mxu0 0.0
    %2429 = vmatpush2.msra.mxu0 0.0
    %2430 = vmatprep.subr.mxu0 0.0
    %2431 = vmatpush2.msra.mxu0 0.0
    %2432 = vmatprep.subr.mxu0 0.0
    %2433 = vmatpush2.msra.mxu0 0.0
    %2434 = vmatprep.subr.mxu0 0.0
    %2435 = vmatpush2.msra.mxu0 0.0
    %2436 = vmatprep.subr.mxu0 0.0
    %2437 = vmatpush2.msra.mxu0 0.0
    %2438 = vmatprep.subr.mxu0 0.0
    %2439 = vmatpush2.msra.mxu0 0.0
    %2440 = vmatprep.subr.mxu0 0.0
    %2441 = vmatpush2.msra.mxu0 0.0
    %2442 = vmatprep.mubr.f32.mxu0 0.0
    %2443 = vmatmul.mubr.f32.gmra.mxu0 %v2376
    %v2444 = vpop.f32.mrf.mxu0
    %v2445 = vadd.f32 0.0, %v2444
    %v2446 = vpop.f32.mrf.mxu0
    %2447 = vdwg.mxu0
    %v2449 = vrot.slane %v2445, 1
    %v2451 = vadd.f32 %v263, %v2449
    %vm2452 = vcmask 97287
    %v2453 = vsel %vm2452, %v2451, -inf
    %2454 = vmax.xlane.f32.xlu0 %v2453
    %v2455 = vpop.xlane.xlu0 %2454
    %v2456 = vsub.f32 %v2451, %v2455
    %v2457 = vmul.f32 %v2456, 1.442695
    %v2458 = vpow.pop %v2457
    %v2459 = vsel %vm2452, %v2458, 0.0
    %2460 = vadd.xlane.f32.xlu0 %v2459
    %v2461 = vpop.xlane.xlu0 %2460
    %v2462 = vrcp.pop %v2461
    %v2463 = vmul.f32 %v2458, %v2462
    %v2465 = vrot.slane %v2463, 7
    %v2466 = vsel %vm531, %v2465, 0
    %2468 = vmatprep.subr.mxu0 0.0
    %2469 = vmatpush1.msra.mxu0 0.0
    %2470 = vmatprep.subr.mxu0 0.0
    %2471 = vmatpush1.msra.mxu0 0.0
    %2472 = vmatprep.subr.mxu0 0.0
    %2473 = vmatpush1.msra.mxu0 0.0
    %2474 = vmatprep.subr.mxu0 0.0
    %2475 = vmatpush1.msra.mxu0 0.0
    %2476 = vmatprep.subr.mxu0 0.0
    %2477 = vmatpush1.msra.mxu0 0.0
    %2478 = vmatprep.subr.mxu0 0.0
    %2479 = vmatpush1.msra.mxu0 0.0
    %2480 = vmatprep.subr.mxu0 0.0
    %2481 = vmatpush1.msra.mxu0 0.0
    %2482 = vmatprep.subr.mxu0 0.0
    %2483 = vmatpush1.msra.mxu0 0.0
    %2484 = vmatprep.subr.mxu0 0.0
    %2485 = vmatpush1.msra.mxu0 0.0
    %2486 = vmatprep.subr.mxu0 0.0
    %2487 = vmatpush1.msra.mxu0 0.0
    %2488 = vmatprep.subr.mxu0 0.0
    %2489 = vmatpush1.msra.mxu0 0.0
    %2490 = vmatprep.subr.mxu0 0.0
    %2491 = vmatpush1.msra.mxu0 0.0
    %2492 = vmatprep.subr.mxu0 0.0
    %2493 = vmatpush1.msra.mxu0 0.0
    %2494 = vmatprep.subr.mxu0 0.0
    %2495 = vmatpush1.msra.mxu0 0.0
    %2496 = vmatprep.subr.mxu0 0.0
    %2497 = vmatpush1.msra.mxu0 %v537
    %2498 = vmatprep.subr.mxu0 0.0
    %2499 = vmatpush1.msra.mxu0 %v426
    %2500 = vmatprep.subr.mxu0 0.0
    %2501 = vmatpush2.msra.mxu0 0.0
    %2502 = vmatprep.subr.mxu0 0.0
    %2503 = vmatpush2.msra.mxu0 0.0
    %2504 = vmatprep.subr.mxu0 0.0
    %2505 = vmatpush2.msra.mxu0 0.0
    %2506 = vmatprep.subr.mxu0 0.0
    %2507 = vmatpush2.msra.mxu0 0.0
    %2508 = vmatprep.subr.mxu0 0.0
    %2509 = vmatpush2.msra.mxu0 0.0
    %2510 = vmatprep.subr.mxu0 0.0
    %2511 = vmatpush2.msra.mxu0 0.0
    %2512 = vmatprep.subr.mxu0 0.0
    %2513 = vmatpush2.msra.mxu0 0.0
    %2514 = vmatprep.subr.mxu0 0.0
    %2515 = vmatpush2.msra.mxu0 0.0
    %2516 = vmatprep.subr.mxu0 0.0
    %2517 = vmatpush2.msra.mxu0 0.0
    %2518 = vmatprep.subr.mxu0 0.0
    %2519 = vmatpush2.msra.mxu0 0.0
    %2520 = vmatprep.subr.mxu0 0.0
    %2521 = vmatpush2.msra.mxu0 0.0
    %2522 = vmatprep.subr.mxu0 0.0
    %2523 = vmatpush2.msra.mxu0 0.0
    %2524 = vmatprep.subr.mxu0 0.0
    %2525 = vmatpush2.msra.mxu0 0.0
    %2526 = vmatprep.subr.mxu0 0.0
    %2527 = vmatpush2.msra.mxu0 0.0
    %2528 = vmatprep.subr.mxu0 0.0
    %2529 = vmatpush2.msra.mxu0 0.0
    %2530 = vmatprep.subr.mxu0 0.0
    %2531 = vmatpush2.msra.mxu0 0.0
    %2532 = vmatprep.mubr.f32.mxu0 0.0
    %2533 = vmatmul.mubr.f32.gmra.mxu0 %v2466
    %v2534 = vpop.f32.mrf.mxu0
    %v2535 = vadd.f32 0.0, %v2534
    %v2536 = vpop.f32.mrf.mxu0
    %2537 = vdwg.mxu0
    %v2539 = vrot.slane %v2535, 1
    %v2541 = vadd.f32 %v344, %v2539
    %v2542 = vmax.f32 %v2541, 0.0
    %v2544 = vrot.slane %v2542, 7
    %v2545 = vsel %vm192, %v2544, 0
    %2547 = vmatprep.subr.mxu0 0.0
    %2548 = vmatpush1.msra.mxu0 0.0
    %2549 = vmatprep.subr.mxu0 0.0
    %2550 = vmatpush1.msra.mxu0 0.0
    %2551 = vmatprep.subr.mxu0 0.0
    %2552 = vmatpush1.msra.mxu0 0.0
    %2553 = vmatprep.subr.mxu0 0.0
    %2554 = vmatpush1.msra.mxu0 0.0
    %2555 = vmatprep.subr.mxu0 0.0
    %2556 = vmatpush1.msra.mxu0 0.0
    %2557 = vmatprep.subr.mxu0 0.0
    %2558 = vmatpush1.msra.mxu0 0.0
    %2559 = vmatprep.subr.mxu0 0.0
    %2560 = vmatpush1.msra.mxu0 0.0
    %2561 = vmatprep.subr.mxu0 0.0
    %2562 = vmatpush1.msra.mxu0 0.0
    %2563 = vmatprep.subr.mxu0 0.0
    %2564 = vmatpush1.msra.mxu0 0.0
    %2565 = vmatprep.subr.mxu0 0.0
    %2566 = vmatpush1.msra.mxu0 0.0
    %2567 = vmatprep.subr.mxu0 0.0
    %2568 = vmatpush1.msra.mxu0 0.0
    %2569 = vmatprep.subr.mxu0 0.0
    %2570 = vmatpush1.msra.mxu0 0.0
    %2571 = vmatprep.subr.mxu0 0.0
    %2572 = vmatpush1.msra.mxu0 %v441
    %2573 = vmatprep.subr.mxu0 0.0
    %2574 = vmatpush1.msra.mxu0 %v440
    %2575 = vmatprep.subr.mxu0 0.0
    %2576 = vmatpush1.msra.mxu0 %v439
    %2577 = vmatprep.subr.mxu0 0.0
    %2578 = vmatpush1.msra.mxu0 %v438
    %2579 = vmatprep.subr.mxu0 0.0
    %2580 = vmatpush2.msra.mxu0 0.0
    %2581 = vmatprep.subr.mxu0 0.0
    %2582 = vmatpush2.msra.mxu0 0.0
    %2583 = vmatprep.subr.mxu0 0.0
    %2584 = vmatpush2.msra.mxu0 0.0
    %2585 = vmatprep.subr.mxu0 0.0
    %2586 = vmatpush2.msra.mxu0 0.0
    %2587 = vmatprep.subr.mxu0 0.0
    %2588 = vmatpush2.msra.mxu0 0.0
    %2589 = vmatprep.subr.mxu0 0.0
    %2590 = vmatpush2.msra.mxu0 0.0
    %2591 = vmatprep.subr.mxu0 0.0
    %2592 = vmatpush2.msra.mxu0 0.0
    %2593 = vmatprep.subr.mxu0 0.0
    %2594 = vmatpush2.msra.mxu0 0.0
    %2595 = vmatprep.subr.mxu0 0.0
    %2596 = vmatpush2.msra.mxu0 0.0
    %2597 = vmatprep.subr.mxu0 0.0
    %2598 = vmatpush2.msra.mxu0 0.0
    %2599 = vmatprep.subr.mxu0 0.0
    %2600 = vmatpush2.msra.mxu0 0.0
    %2601 = vmatprep.subr.mxu0 0.0
    %2602 = vmatpush2.msra.mxu0 0.0
    %2603 = vmatprep.subr.mxu0 0.0
    %2604 = vmatpush2.msra.mxu0 0.0
    %2605 = vmatprep.subr.mxu0 0.0
    %2606 = vmatpush2.msra.mxu0 0.0
    %2607 = vmatprep.subr.mxu0 0.0
    %2608 = vmatpush2.msra.mxu0 0.0
    %2609 = vmatprep.subr.mxu0 0.0
    %2610 = vmatpush2.msra.mxu0 0.0
    %2611 = vmatprep.mubr.f32.mxu0 0.0
    %2612 = vmatmul.mubr.f32.gmra.mxu0 %v2545
    %v2613 = vpop.f32.mrf.mxu0
    %v2614 = vadd.f32 %v442, %v2613
    %v2615 = vpop.f32.mrf.mxu0
    %2616 = vdwg.mxu0
    %v2617 = vadd.f32 %v2445, %v690
    %2619 = vrot.lane.b32.xlu0 %v2617, 96
    %v2620 = vpop.permute.xlu0 %2619
    %v2622 = vadd.f32 %v2614, %v2620
    %v2623 = vxor.u32 %v2622, 2147483648
    %v2624 = vmul.f32 %v2623, 1.442695
    %v2625 = vpow.pop %v2624
    %v2626 = vadd.f32 %v2625, 1.0
    %v2627 = vrcp.pop %v2626
    %v2628 = vmul.f32 1.0, %v2627
    %2629 = vrot.lane.b32.xlu0 %v2617, 32
    %v2630 = vpop.permute.xlu0 %2629
    %v2632 = vmul.f32 %v2628, %v2630
    %2634 = vrot.lane.b32.xlu0 %v2632, 64
    %v2635 = vpop.permute.xlu0 %2634
    %v2637 = vadd.f32 %v2614, %v2635
    %v2638 = vtanh.pop %v2637
    %v2639 = vsub.f32 1.0, %v2628
    %2641 = vrot.lane.b32.xlu0 %v2638, 96
    %v2642 = vpop.permute.xlu0 %2641
    %v2644 = vmul.f32 %v2639, %v2642
    %v2645 = vmul.f32 %v2628, %v2372
    %v2646 = vadd.f32 %v2644, %v2645
    %v2647 = vrot.slane %v1002, 7
    %v2649 = vrot.slane %v1276, 6
    %v2651 = vrot.slane %v1550, 5
    %v2653 = vrot.slane %v1824, 4
    %v2655 = vrot.slane %v2098, 3
    %v2657 = vrot.slane %v2372, 2
    %v2660 = vrot.slane %v2646, 1
    %vm2662 = vcmask 1040384
    %v2663 = vsel %vm2662, %v728, %v2647
    %vm2664 = vcmask 1041408
    %v2665 = vsel %vm2664, %v2663, %v2649
    %vm2666 = vcmask 1042432
    %v2667 = vsel %vm2666, %v2665, %v2651
    %v2668 = vsel %vm535, %v2667, %v2653
    %vm2669 = vcmask 1044480
    %v2670 = vsel %vm2669, %v2668, %v2655
    %vm2671 = vcmask 1045504
    %v2672 = vsel %vm2671, %v2670, %v2657
    %vm2673 = vcmask 1046528
    %v2674 = vsel %vm2673, %v2672, %v2660
    %v2675 = vsel %vm2662, %v530, %v819
    %v2676 = vsel %vm2664, %v2675, %v1093
    %v2677 = vsel %vm2666, %v2676, %v1367
    %v2678 = vsel %vm535, %v2677, %v1641
    %v2679 = vsel %vm2669, %v2678, %v1915
    %v2680 = vsel %vm2671, %v2679, %v2189
    %v2681 = vsel %vm2673, %v2680, %v2463
    %v2682 = vld [vmem:[#allocation7] sm:$0xff]
    %v2683 = vld [vmem:[#allocation7 + $0x8] sm:$0xff]
    %v2684 = vld [vmem:[#allocation7 + $0x10] sm:$0xff]
    %v2685 = vld [vmem:[#allocation7 + $0x18] sm:$0xff]
    %v2686 = vld [vmem:[%s14] sm:$0x1]
    %v2688 = vlaneseq
    %v2689 = vshrl.u32 %v2688, 7
    %v2690 = vsub.s32 0, %v2689
    %v2691 = vrot.slane %v2686, %v2690
    %2694 = vrot.lane.b32.xlu0 %v2674, 96
    %v2695 = vpop.permute.xlu0 %2694
    %v2696 = vsel %vm192, %v2695, 0
    %2698 = vmatprep.subr.mxu0 0.0
    %2699 = vmatpush1.msra.mxu0 0.0
    %2700 = vmatprep.subr.mxu0 0.0
    %2701 = vmatpush1.msra.mxu0 0.0
    %2702 = vmatprep.subr.mxu0 0.0
    %2703 = vmatpush1.msra.mxu0 0.0
    %2704 = vmatprep.subr.mxu0 0.0
    %2705 = vmatpush1.msra.mxu0 0.0
    %2706 = vmatprep.subr.mxu0 0.0
    %2707 = vmatpush1.msra.mxu0 0.0
    %2708 = vmatprep.subr.mxu0 0.0
    %2709 = vmatpush1.msra.mxu0 0.0
    %2710 = vmatprep.subr.mxu0 0.0
    %2711 = vmatpush1.msra.mxu0 0.0
    %2712 = vmatprep.subr.mxu0 0.0
    %2713 = vmatpush1.msra.mxu0 0.0
    %2714 = vmatprep.subr.mxu0 0.0
    %2715 = vmatpush1.msra.mxu0 0.0
    %2716 = vmatprep.subr.mxu0 0.0
    %2717 = vmatpush1.msra.mxu0 0.0
    %2718 = vmatprep.subr.mxu0 0.0
    %2719 = vmatpush1.msra.mxu0 0.0
    %2720 = vmatprep.subr.mxu0 0.0
    %2721 = vmatpush1.msra.mxu0 0.0
    %2722 = vmatprep.subr.mxu0 0.0
    %2723 = vmatpush1.msra.mxu0 %v2685
    %2724 = vmatprep.subr.mxu0 0.0
    %2725 = vmatpush1.msra.mxu0 %v2684
    %2726 = vmatprep.subr.mxu0 0.0
    %2727 = vmatpush1.msra.mxu0 %v2683
    %2728 = vmatprep.subr.mxu0 0.0
    %2729 = vmatpush1.msra.mxu0 %v2682
    %2730 = vmatprep.subr.mxu0 0.0
    %2731 = vmatpush2.msra.mxu0 0.0
    %2732 = vmatprep.subr.mxu0 0.0
    %2733 = vmatpush2.msra.mxu0 0.0
    %2734 = vmatprep.subr.mxu0 0.0
    %2735 = vmatpush2.msra.mxu0 0.0
    %2736 = vmatprep.subr.mxu0 0.0
    %2737 = vmatpush2.msra.mxu0 0.0
    %2738 = vmatprep.subr.mxu0 0.0
    %2739 = vmatpush2.msra.mxu0 0.0
    %2740 = vmatprep.subr.mxu0 0.0
    %2741 = vmatpush2.msra.mxu0 0.0
    %2742 = vmatprep.subr.mxu0 0.0
    %2743 = vmatpush2.msra.mxu0 0.0
    %2744 = vmatprep.subr.mxu0 0.0
    %2745 = vmatpush2.msra.mxu0 0.0
    %2746 = vmatprep.subr.mxu0 0.0
    %2747 = vmatpush2.msra.mxu0 0.0
    %2748 = vmatprep.subr.mxu0 0.0
    %2749 = vmatpush2.msra.mxu0 0.0
    %2750 = vmatprep.subr.mxu0 0.0
    %2751 = vmatpush2.msra.mxu0 0.0
    %2752 = vmatprep.subr.mxu0 0.0
    %2753 = vmatpush2.msra.mxu0 0.0
    %2754 = vmatprep.subr.mxu0 0.0
    %2755 = vmatpush2.msra.mxu0 0.0
    %2756 = vmatprep.subr.mxu0 0.0
    %2757 = vmatpush2.msra.mxu0 0.0
    %2758 = vmatprep.subr.mxu0 0.0
    %2759 = vmatpush2.msra.mxu0 0.0
    %2760 = vmatprep.subr.mxu0 0.0
    %2761 = vmatpush2.msra.mxu0 0.0
    %2762 = vmatprep.mubr.f32.mxu0 0.0
    %2763 = vmatmul.mubr.f32.gmra.mxu0 %v2696
    %v2764 = vpop.f32.mrf.mxu0
    %v2765 = vadd.f32 %v2691, %v2764
    %v2766 = vpop.f32.mrf.mxu0
    %2767 = vdwg.mxu0
    %v2768 = vsel %vm107, %v2765, -inf
    %2769 = vmax.xlane.f32.xlu0 %v2768
    %v2770 = vpop.xlane.xlu0 %2769
    %v2771 = vsub.f32 %v2765, %v2770
    %v2772 = vmul.f32 %v2771, 1.442695
    %v2773 = vpow.pop %v2772
    %v2774 = vsel %vm107, %v2773, 0.0
    %2775 = vadd.xlane.f32.xlu0 %v2774
    %v2776 = vpop.xlane.xlu0 %2775
    %v2777 = vlog2.pop %v2776
    %v2778 = vmul.f32 %v2777, 0.6931472
    %v2779 = vsub.f32 %v2771, %v2778
    %2780 = vrot.lane.b32.xlu0 %v2674, 32
    %v2781 = vpop.permute.xlu0 %2780
    %2784 = vrot.lane.b32.xlu0 %v2681, 96
    %v2785 = vpop.permute.xlu0 %2784
    %v2787 = vsel %vm107, %v2779, %v2781
    %vm2788 = vcmask 785408
    %v2789 = vsel %vm2788, %v2787, %v2785
    %vm2790 = vcmask 883712
    %v2791 = vsel %vm2790, %v2789, 0.0
    %2792 = vst [vmem:[#allocation8] sm:$0xff] %v2791
    // Predicated region
    $region74: #{tpu_custom_call.1} parent=1 // pred_check
      _
    $region75: #{tpu_custom_call.1} parent=1 // pred_check_branch
      %2794 = sbr.rel (0) target = $region77
    $region76: #{tpu_custom_call.1} parent=1 // pred_region
      %s2796 = ssub.s32 128, 128
      %2797 = vsyncadd [#allocation4], %s2796
      %s2799 = sshll.u32 [#allocation8], 4
      %s2800 = int_to_ptr.vmem [resolvable:$true] %s2799
      %2802 = dma.vmem_to_hbm [thread:$0]  %s2800, 128, %s15, [#allocation4]
    $region77: #{tpu_custom_call.1} parent=1 // pred_fallthru
      _
    // Predicated region
    $region78: #{tpu_custom_call.1} parent=1 // pred_check
      _
    $region79: #{tpu_custom_call.1} parent=1 // pred_check_branch
      %2804 = sbr.rel (0) target = $region81
    $region80: #{tpu_custom_call.1} parent=1 // pred_region
      %2805 = dma.done [#allocation4], 128
    $region81: #{tpu_custom_call.1} parent=1 // pred_fallthru
      _
    %2806 = vsyncpa [#allocation3], 1
    %2807 = vsyncpa [#allocation6], 1
    %2808 = vsyncpa [#allocation4], 1

</llo_original>
